<compile_context>
chip_gen: v5e
topology: v5e:2x2
jax: 0.10.0
libtpu: 0.0.40
codegen_flags: <defaults>
</compile_context>

<pallas_src>
import numpy as np
import jax
import jax.numpy as jnp
from jax.experimental import pallas as pl
from jax.experimental.pallas import tpu as pltpu

NEG_SLOPE = 0.01          # nn.LeakyReLU() default negative_slope
LANE = 128                # TPU lane width: out-channels padded to a multiple of this
PARITY_MIN_HW = 64        # layers with Ho*Wo >= this use the parity-plane conv kernel

_VMEM_CAP = None


def _round_up(x, m):
    return (x + m - 1) // m * m


def _vmem_capacity_bytes():
    """Per-core VMEM capacity (queried once; safe fallback if the query fails)."""
    global _VMEM_CAP
    if _VMEM_CAP is None:
        cap = None
        try:
            cap = int(getattr(pltpu.get_tpu_info(), "vmem_capacity_bytes"))
        except Exception:
            cap = None
        _VMEM_CAP = cap if cap else 64 * 1024 * 1024
    return _VMEM_CAP


def _vmem_limit_bytes():
    cap = _vmem_capacity_bytes()
    return max(32 * 1024 * 1024, min(int(cap * 0.75), 96 * 1024 * 1024))


# --------------------------------------------------------------------------- #
# Conv2d(kernel=3, stride=2, padding=1) + LeakyReLU  (parity-plane kernel)     #
# --------------------------------------------------------------------------- #
def _conv3x3_s2_lrelu_kernel(x_ref, w_ref, b_ref, o_ref, acc_ref):
    """One (image-group, row-parity) grid step.

    x_ref  : (nb, Ho+1, 2, Wo+1, Cin) bf16  parity plane of the zero-padded input
    w_ref  : (3, 3, Cin, Ncp)         bf16  full conv weights (grid-resident)
    b_ref  : (1, Ncp)                 f32   bias
    o_ref  : (nb, Ho*Wo, Ncp)         bf16  per-group output tile
    acc_ref: (nb*Ho*Wo, Ncp)          f32   accumulator (lives across the parity axis)
    """
    nb = x_ref.shape[0]
    Ho = x_ref.shape[1] - 1
    Wo = x_ref.shape[3] - 1
    Cin = x_ref.shape[4]
    Ncp = o_ref.shape[-1]
    p = pl.program_id(1)

    def add_row_taps(kh, acc):
        # row tap kh lives in plane parity kh % 2 at in-plane row offset kh // 2
        dh = kh // 2
        for kw in range(3):                              # column taps, statically unrolled
            pw, dw = kw % 2, kw // 2
            patch = x_ref[pl.ds(0, nb), pl.ds(dh, Ho), pw, pl.ds(dw, Wo), :]
            patch = patch.reshape(nb * Ho * Wo, Cin)
            acc = acc + jnp.dot(patch, w_ref[kh, kw],    # static weight indexing
                                preferred_element_type=jnp.float32)
        return acc

    @pl.when(p == 0)                                     # parity 0 carries row taps 0 and 2
    def _parity0():
        acc = jnp.zeros((nb * Ho * Wo, Ncp), jnp.float32)
        acc = add_row_taps(0, acc)
        acc = add_row_taps(2, acc)
        acc_ref[...] = acc

    @pl.when(p == 1)                                     # parity 1 carries row tap 1; finalize
    def _parity1():
        acc = add_row_taps(1, acc_ref[...])
        y = acc + b_ref[...]                             # f32 bias add
        y = jnp.where(y > 0, y, NEG_SLOPE * y)
        o_ref[...] = y.reshape(nb, Ho * Wo, Ncp).astype(o_ref.dtype)


def _space_to_depth_pad(x):
    """x: (B, H, W, C) with H, W even ->
    planes: (2*B, H//2+1, 2, W//2+1, C) with
        planes[ph*B + b, i, pw, j, c] == xpad[b, 2*i + ph, 2*j + pw, c]
    where xpad is x zero-padded by 1 on each spatial border.
    One fused XLA pad+reshape+transpose pass over the input (no 9x im2col)."""
    B, H, W, C = x.shape
    Ho, Wo = H // 2, W // 2
    xp = jnp.pad(x, ((0, 0), (1, 1), (1, 1), (0, 0)))
    xr = xp.reshape(B, Ho + 1, 2, Wo + 1, 2, C)
    planes = jnp.transpose(xr, (2, 0, 1, 4, 3, 5))       # (2, B, Ho+1, 2, Wo+1, C)
    # TODO(synk): have the previous conv's finalize store directly into this layout
    # to avoid the extra activation HBM roundtrip on every layer.
    return planes.reshape(2 * B, Ho + 1, 2, Wo + 1, C), Ho, Wo


def _pick_nb(B, Ho, Wo, Cin, Ncp, budget_bytes, target_m=256):
    """Images per grid step: smallest batch divisor reaching M = nb*Ho*Wo >= target_m
    within the VMEM budget; otherwise the largest feasible divisor."""
    def need(nb):
        plane = 2 * nb * (Ho + 1) * 2 * (Wo + 1) * Cin * 2   # double-buffered bf16 planes
        outb = 2 * nb * Ho * Wo * Ncp * 2                    # double-buffered bf16 outputs
        acc = nb * Ho * Wo * Ncp * 4                         # f32 accumulator
        wgt = 2 * 9 * Cin * Ncp * 2                          # resident weights (2 buffers)
        return plane + outb + acc + wgt + 2 * Ncp * 4
    divs = [d for d in range(1, B + 1) if B % d == 0 and need(d) <= budget_bytes]
    if not divs:
        return 1
    for d in divs:
        if d * Ho * Wo >= target_m:
            return d
    return divs[-1]


def conv3x3_s2_lrelu(x, w, b):
    """x: (B, H, W, Cin) bf16; w: (3, 3, Cin, Ncp) bf16; b: (1, Ncp) f32.
    Returns LeakyReLU(conv(x)) as (B, H//2, W//2, Ncp) bf16."""
    B, H, W, Cin = x.shape
    Ncp = w.shape[-1]
    planes, Ho, Wo = _space_to_depth_pad(x)

    nb = _pick_nb(B, Ho, Wo, Cin, Ncp, budget_bytes=int(_vmem_capacity_bytes() * 0.5))
    nb_groups = B // nb

    cost = pl.CostEstimate(
        flops=int(2 * B * Ho * Wo * 9 * Cin * Ncp),
        transcendentals=0,
        bytes_accessed=int(planes.size * 2 + w.size * 2 + b.size * 4
                           + B * Ho * Wo * Ncp * 2),     # weights counted once (resident)
    )

    out = pl.pallas_call(
        _conv3x3_s2_lrelu_kernel,
        out_shape=jax.ShapeDtypeStruct((B, Ho * Wo, Ncp), jnp.bfloat16),
        grid_spec=pltpu.PrefetchScalarGridSpec(
            num_scalar_prefetch=0,
            grid=(nb_groups, 2),                         # (image-group, row-parity)
            in_specs=[
                pl.BlockSpec((nb, Ho + 1, 2, Wo + 1, Cin),
                             lambda bi, p: (p * nb_groups + bi, 0, 0, 0, 0)),
                # full weights, constant index -> DMA'd once, resident across the grid
                pl.BlockSpec((3, 3, Cin, Ncp), lambda bi, p: (0, 0, 0, 0)),
                pl.BlockSpec((1, Ncp), lambda bi, p: (0, 0)),
            ],
            out_specs=pl.BlockSpec((nb, Ho * Wo, Ncp), lambda bi, p: (bi, 0, 0)),
            scratch_shapes=[pltpu.VMEM((nb * Ho * Wo, Ncp), jnp.float32)],
        ),
        compiler_params=pltpu.CompilerParams(
            dimension_semantics=("parallel", "arbitrary"),
            vmem_limit_bytes=_vmem_limit_bytes()),
        cost_estimate=cost,
    )(planes, w, b)
    return out.reshape(B, Ho, Wo, Ncp)


# --------------------------------------------------------------------------- #
# Tiled matmul + bias + LeakyReLU (im2col'd tiny conv layers)                  #
# --------------------------------------------------------------------------- #
def _matmul_bias_lrelu_kernel(x_ref, w_ref, b_ref, o_ref, acc_ref):
    @pl.when(pl.program_id(2) == 0)
    def _init():
        acc_ref[...] = jnp.zeros_like(acc_ref)

    acc_ref[...] += jnp.dot(x_ref[...], w_ref[...],
                            preferred_element_type=jnp.float32)

    @pl.when(pl.program_id(2) == pl.num_programs(2) - 1)
    def _finalize():
        y = acc_ref[...] + b_ref[...]
        o_ref[...] = jnp.where(y > 0, y, NEG_SLOPE * y).astype(o_ref.dtype)


def _pick_tile(dim, target, align):
    """Largest divisor of `dim` that is <= target and a multiple of `align`;
    falls back to the full dimension (always a legal single block)."""
    if dim <= target:
        return dim
    for t in range(target, 0, -1):
        if dim % t == 0 and t % align == 0:
            return t
    return dim


def matmul_bias_lrelu(x, w, b, out_dtype=jnp.float32):
    """LeakyReLU(x @ w + b): bf16 operands, f32 accumulation, tiled M/N/K grid."""
    M, K = x.shape
    K2, N = w.shape
    assert K == K2, (K, K2)
    xb = x.astype(jnp.bfloat16)
    wb = w.astype(jnp.bfloat16)
    b2 = b.reshape(1, N).astype(jnp.float32)
    tm = _pick_tile(M, 256, 8)
    tn = _pick_tile(N, 512, 128)
    tk = _pick_tile(K, 512, 128)
    cost = pl.CostEstimate(
        flops=int(2 * M * N * K), transcendentals=0,
        bytes_accessed=int(M * K * 2 + K * N * 2 + N * 4
                           + M * N * jnp.dtype(out_dtype).itemsize))
    return pl.pallas_call(
        _matmul_bias_lrelu_kernel,
        out_shape=jax.ShapeDtypeStruct((M, N), out_dtype),
        grid_spec=pltpu.PrefetchScalarGridSpec(
            num_scalar_prefetch=0,
            grid=(M // tm, N // tn, K // tk),
            in_specs=[
                pl.BlockSpec((tm, tk), lambda i, j, k: (i, k)),
                pl.BlockSpec((tk, tn), lambda i, j, k: (k, j)),
                pl.BlockSpec((1, tn), lambda i, j, k: (0, j)),
            ],
            out_specs=pl.BlockSpec((tm, tn), lambda i, j, k: (i, j)),
            scratch_shapes=[pltpu.VMEM((tm, tn), jnp.float32)],
        ),
        compiler_params=pltpu.CompilerParams(
            dimension_semantics=("parallel", "parallel", "arbitrary"),
            vmem_limit_bytes=_vmem_limit_bytes()),
        cost_estimate=cost,
    )(xb, wb, b2)


def _im2col_s2(x):
    """x: (B, H, W, C), H and W even -> (B*Ho*Wo, 9*C) patches for k=3, s=2, p=1.
    Tap order is kh-major / kw-minor / channel-last (matches w.reshape(9*C, N))."""
    B, H, W, C = x.shape
    Ho, Wo = H // 2, W // 2
    xp = jnp.pad(x, ((0, 0), (1, 1), (1, 1), (0, 0)))
    taps = []
    for kh in range(3):
        for kw in range(3):
            taps.append(xp[:, kh:kh + 2 * Ho:2, kw:kw + 2 * Wo:2, :])   # (B,Ho,Wo,C)
    patches = jnp.stack(taps, axis=3)                                   # (B,Ho,Wo,9,C)
    return patches.reshape(B * Ho * Wo, 9 * C), Ho, Wo


# --------------------------------------------------------------------------- #
# Fused tail: last conv (2x2 -> 1x1) + Linear + LeakyReLU                      #
# --------------------------------------------------------------------------- #
def _tail_fused_kernel(x_ref, w1_ref, b1_ref, w2_ref, b2_ref, o_ref):
    """x_ref: (Mp, 4*Cin) bf16 flattened 2x2 activations; w1: (4*Cin, Cp) bf16 (valid
    conv taps); w2: (Cp, Cp) bf16 linear weight; biases f32; o_ref: (Mp, Cp) f32."""
    y = jnp.dot(x_ref[...], w1_ref[...], preferred_element_type=jnp.float32) + b1_ref[...]
    y = jnp.where(y > 0, y, NEG_SLOPE * y).astype(w2_ref.dtype)          # bf16 between layers
    z = jnp.dot(y, w2_ref[...], preferred_element_type=jnp.float32) + b2_ref[...]
    o_ref[...] = jnp.where(z > 0, z, NEG_SLOPE * z)


def tail_conv2x2_linear(x4, w1, b1, w2, b2):
    """x4: (B, 2, 2, Cin) bf16. Returns LeakyReLU(Linear(LeakyReLU(conv(x4)))) as (B, Cp) f32."""
    B, Hh, Ww, Cin = x4.shape
    assert Hh == 2 and Ww == 2, (Hh, Ww)
    Cp = w1.shape[-1]
    xf = x4.reshape(B, 4 * Cin)
    Mp = max(8, _round_up(B, 8))                       # 8-row minimum for unmasked stores
    if Mp != B:
        xf = jnp.pad(xf, ((0, Mp - B), (0, 0)))
    out = pl.pallas_call(
        _tail_fused_kernel,
        out_shape=jax.ShapeDtypeStruct((Mp, Cp), jnp.float32),
        grid_spec=pltpu.PrefetchScalarGridSpec(
            num_scalar_prefetch=0,
            grid=(1,),
            in_specs=[
                pl.BlockSpec((Mp, 4 * Cin), lambda i: (0, 0)),
                pl.BlockSpec((4 * Cin, Cp), lambda i: (0, 0)),
                pl.BlockSpec((1, Cp), lambda i: (0, 0)),
                pl.BlockSpec((Cp, Cp), lambda i: (0, 0)),
                pl.BlockSpec((1, Cp), lambda i: (0, 0)),
            ],
            out_specs=pl.BlockSpec((Mp, Cp), lambda i: (0, 0)),
        ),
        compiler_params=pltpu.CompilerParams(
            dimension_semantics=("arbitrary",),
            vmem_limit_bytes=_vmem_limit_bytes()),
    )(xf, w1, b1, w2, b2)
    return out[:B]


# --------------------------------------------------------------------------- #
# Module init / param prep (hoisted, done once) / forward                      #
# --------------------------------------------------------------------------- #
def init_gradual_style_block(key, in_c, out_c, spatial):
    assert (spatial & (spatial - 1)) == 0, "spatial must be a power of two"
    num_pools = int(np.log2(spatial))
    keys = jax.random.split(key, 2 * (num_pools + 1))
    params = {"in_c": in_c, "out_c": out_c, "convs": []}
    c_in = in_c
    for i in range(num_pools):
        kw_, kb_ = keys[2 * i], keys[2 * i + 1]
        bound = 1.0 / np.sqrt(c_in * 9)
        w = jax.random.uniform(kw_, (3, 3, c_in, out_c), jnp.float32, -bound, bound)
        b = jax.random.uniform(kb_, (out_c,), jnp.float32, -bound, bound)
        params["convs"].append((w, b))
        c_in = out_c
    bound = 1.0 / np.sqrt(out_c)
    params["lin_w"] = jax.random.uniform(keys[-2], (out_c, out_c), jnp.float32, -bound, bound)
    params["lin_b"] = jax.random.uniform(keys[-1], (out_c,), jnp.float32, -bound, bound)
    return params


def prepare_params(params):
    """bf16 weights, f32 biases, out-channels zero-padded to the 128-lane width.
    NOTE: padded channels stay exactly 0 only because weight AND bias padding are 0
    and LeakyReLU(0) == 0; changing either silently contaminates downstream layers."""
    in_c, out_c = params["in_c"], params["out_c"]
    ncp = _round_up(out_c, LANE)
    n_convs = len(params["convs"])
    prepared = {"convs": []}
    c_in_eff = in_c                                   # first layer sees raw input channels
    for idx, (w, b) in enumerate(params["convs"]):
        c_in, c_out = w.shape[2], w.shape[3]
        wp = jnp.zeros((3, 3, c_in_eff, ncp), jnp.float32).at[:, :, :c_in, :c_out].set(w)
        bp = jnp.zeros((ncp,), jnp.float32).at[:c_out].set(b).reshape(1, ncp)
        if idx == n_convs - 1:
            # last conv input is always 2x2; only taps (kh,kw) in {1,2}x{1,2} see data
            prepared["w_last"] = wp[1:3, 1:3].reshape(4 * c_in_eff, ncp).astype(jnp.bfloat16)
            prepared["b_last"] = bp
        else:
            prepared["convs"].append((wp.astype(jnp.bfloat16), bp))
        c_in_eff = ncp                                # later layers carry lane-padded channels
    prepared["lin_w"] = jnp.zeros((ncp, ncp), jnp.float32).at[:out_c, :out_c].set(
        params["lin_w"]).astype(jnp.bfloat16)
    prepared["lin_b"] = jnp.zeros((ncp,), jnp.float32).at[:out_c].set(
        params["lin_b"]).reshape(1, ncp)
    return prepared


def _forward_impl(prepared, x_nchw, out_c):
    x = jnp.transpose(x_nchw, (0, 2, 3, 1)).astype(jnp.bfloat16)     # NCHW -> NHWC, bf16
    for (w, b) in prepared["convs"]:
        B, H, W, _ = x.shape
        Ho, Wo = H // 2, W // 2
        if Ho * Wo >= PARITY_MIN_HW:
            # large layer: parity-plane kernel, no HBM im2col expansion
            x = conv3x3_s2_lrelu(x, w, b)
        else:
            # tiny layer: cheap XLA im2col -> one well-shaped matmul (M=B*Ho*Wo, K=9*Cin)
            patches, Ho, Wo = _im2col_s2(x)
            y = matmul_bias_lrelu(patches, w.reshape(9 * w.shape[2], w.shape[3]), b,
                                  out_dtype=jnp.bfloat16)
            x = y.reshape(B, Ho, Wo, -1)
    # fused: last conv (2x2 -> 1x1) + view(-1, out_c) + Linear + LeakyReLU
    assert x.shape[1] == 2 and x.shape[2] == 2, x.shape
    y = tail_conv2x2_linear(x, prepared["w_last"], prepared["b_last"],
                            prepared["lin_w"], prepared["lin_b"])
    return y[:, :out_c]


def make_forward(params):
    """Prepare (pad + cast) parameters once; return a jitted forward fn of x only."""
    prepared = prepare_params(params)
    out_c = params["out_c"]

    def fwd(x_nchw):
        return _forward_impl(prepared, x_nchw, out_c)

    return jax.jit(fwd)


# --------------------------------------------------------------------------- #
# Plain-JAX reference (mirrors the kernel's bf16-operand / f32-accum numerics) #
# --------------------------------------------------------------------------- #
def _leaky(v):
    return jnp.where(v > 0, v, NEG_SLOPE * v)


def reference_forward(params, x_nchw):
    out_c = params["out_c"]
    x = jnp.transpose(x_nchw, (0, 2, 3, 1)).astype(jnp.bfloat16)
    for (w, b) in params["convs"]:
        y = jax.lax.conv_general_dilated(
            x.astype(jnp.float32),
            w.astype(jnp.bfloat16).astype(jnp.float32),
            window_strides=(2, 2), padding=((1, 1), (1, 1)),
            dimension_numbers=("NHWC", "HWIO", "NHWC"))
        x = _leaky(y + b).astype(jnp.bfloat16)
    x = x.reshape(-1, out_c).astype(jnp.float32)
    w = params["lin_w"].astype(jnp.bfloat16).astype(jnp.float32)
    return _leaky(x @ w + params["lin_b"])


# --------------------------------------------------------------------------- #
if __name__ == "__main__":
    key = jax.random.PRNGKey(0)
    k_x, k_p = jax.random.split(key)

    B, in_c, out_c, spatial = 2, 4, 32, 16
    x = jax.random.normal(k_x, (B, in_c, spatial, spatial), jnp.float32)   # NCHW like PyTorch

    params = init_gradual_style_block(k_p, in_c, out_c, spatial)

    forward = make_forward(params)            # prepare + jit once (hoisted out of the call)
    out = jax.block_until_ready(forward(x))
    assert out.shape == (B, out_c), out.shape

    ref = jax.block_until_ready(reference_forward(params, x))
    np.testing.assert_allclose(np.asarray(out, dtype=np.float32),
                               np.asarray(ref, dtype=np.float32),
                               rtol=1e-2, atol=1e-2)

    print("KERNEL_OK")
</pallas_src>

<mosaic_0001>
module attributes {stable_mosaic.version = 11 : i64} {
  func.func @_conv3x3_s2_lrelu_kernel(%arg0: i32, %arg1: i32, %arg2: memref<2x9x2x9x4xbf16, #tpu.memory_space<vmem>>, %arg3: memref<3x3x4x128xbf16, #tpu.memory_space<vmem>>, %arg4: memref<1x128xf32, #tpu.memory_space<vmem>>, %arg5: memref<2x64x128xbf16, #tpu.memory_space<vmem>>, %arg6: memref<128x128xf32, #tpu.memory_space<vmem>>) attributes {dimension_semantics = [#tpu.dimension_semantics<parallel>, #tpu.dimension_semantics<arbitrary>], iteration_bounds = array<i64: 1, 2>, scalar_prefetch = 0 : i64, scratch_operands = 1 : i64, tpu.core_type = #tpu.core_type<tc>, window_params = [{transform_indices = @transform_0, window_bounds = array<i64: 2, 9, 2, 9, 4>}, {pipeline_mode = #tpu.pipeline_mode<synchronous>, transform_indices = @transform_1, window_bounds = array<i64: 3, 3, 4, 128>}, {pipeline_mode = #tpu.pipeline_mode<synchronous>, transform_indices = @transform_2, window_bounds = array<i64: 1, 128>}, {transform_indices = @transform_3, window_bounds = array<i64: 2, 64, 128>}]} {
    %c0_i32 = arith.constant 0 : i32
    %0 = arith.cmpi eq, %arg1, %c0_i32 : i32
    %1 = arith.extui %0 : i1 to i32
    %c0_i32_0 = arith.constant 0 : i32
    %2 = arith.cmpi ne, %1, %c0_i32_0 : i32
    scf.if %2 {
      %cst = arith.constant 0.000000e+00 : f32
      %6 = vector.broadcast %cst : f32 to vector<128x128xf32>
      %c0 = arith.constant 0 : index
      %c0_2 = arith.constant 0 : index
      %c0_3 = arith.constant 0 : index
      %c0_4 = arith.constant 0 : index
      %c0_5 = arith.constant 0 : index
      %7 = vector.load %arg2[%c0, %c0_2, %c0_3, %c0_4, %c0_5] : memref<2x9x2x9x4xbf16, #tpu.memory_space<vmem>>, vector<2x8x1x8x4xbf16>
      %8 = vector.shape_cast %7 : vector<2x8x1x8x4xbf16> to vector<2x8x8x4xbf16>
      %9 = vector.shape_cast %8 : vector<2x8x8x4xbf16> to vector<128x4xbf16>
      %c0_6 = arith.constant 0 : index
      %c0_7 = arith.constant 0 : index
      %c0_8 = arith.constant 0 : index
      %c0_9 = arith.constant 0 : index
      %10 = vector.load %arg3[%c0_6, %c0_7, %c0_8, %c0_9] : memref<3x3x4x128xbf16, #tpu.memory_space<vmem>>, vector<1x1x4x128xbf16>
      %11 = vector.shape_cast %10 : vector<1x1x4x128xbf16> to vector<4x128xbf16>
      %cst_10 = arith.constant dense<0.000000e+00> : vector<128x128xf32>
      %12 = tpu.matmul %9, %11, %cst_10 {dimension_numbers = #tpu.dot_dimension_numbers<[1], [0], [0], [1], [0, 0, 1, 1], [], []>} : vector<128x4xbf16>, vector<4x128xbf16>, vector<128x128xf32> -> vector<128x128xf32>
      %13 = arith.addf %6, %12 : vector<128x128xf32>
      %c0_11 = arith.constant 0 : index
      %c0_12 = arith.constant 0 : index
      %c1 = arith.constant 1 : index
      %c0_13 = arith.constant 0 : index
      %c0_14 = arith.constant 0 : index
      %14 = vector.load %arg2[%c0_11, %c0_12, %c1, %c0_13, %c0_14] : memref<2x9x2x9x4xbf16, #tpu.memory_space<vmem>>, vector<2x8x1x8x4xbf16>
      %15 = vector.shape_cast %14 : vector<2x8x1x8x4xbf16> to vector<2x8x8x4xbf16>
      %16 = vector.shape_cast %15 : vector<2x8x8x4xbf16> to vector<128x4xbf16>
      %c0_15 = arith.constant 0 : index
      %c1_16 = arith.constant 1 : index
      %c0_17 = arith.constant 0 : index
      %c0_18 = arith.constant 0 : index
      %17 = vector.load %arg3[%c0_15, %c1_16, %c0_17, %c0_18] : memref<3x3x4x128xbf16, #tpu.memory_space<vmem>>, vector<1x1x4x128xbf16>
      %18 = vector.shape_cast %17 : vector<1x1x4x128xbf16> to vector<4x128xbf16>
      %cst_19 = arith.constant dense<0.000000e+00> : vector<128x128xf32>
      %19 = tpu.matmul %16, %18, %cst_19 {dimension_numbers = #tpu.dot_dimension_numbers<[1], [0], [0], [1], [0, 0, 1, 1], [], []>} : vector<128x4xbf16>, vector<4x128xbf16>, vector<128x128xf32> -> vector<128x128xf32>
      %20 = arith.addf %13, %19 : vector<128x128xf32>
      %c0_20 = arith.constant 0 : index
      %c0_21 = arith.constant 0 : index
      %c0_22 = arith.constant 0 : index
      %c1_23 = arith.constant 1 : index
      %c0_24 = arith.constant 0 : index
      %21 = vector.load %arg2[%c0_20, %c0_21, %c0_22, %c1_23, %c0_24] : memref<2x9x2x9x4xbf16, #tpu.memory_space<vmem>>, vector<2x8x1x8x4xbf16>
      %22 = vector.shape_cast %21 : vector<2x8x1x8x4xbf16> to vector<2x8x8x4xbf16>
      %23 = vector.shape_cast %22 : vector<2x8x8x4xbf16> to vector<128x4xbf16>
      %c0_25 = arith.constant 0 : index
      %c2 = arith.constant 2 : index
      %c0_26 = arith.constant 0 : index
      %c0_27 = arith.constant 0 : index
      %24 = vector.load %arg3[%c0_25, %c2, %c0_26, %c0_27] : memref<3x3x4x128xbf16, #tpu.memory_space<vmem>>, vector<1x1x4x128xbf16>
      %25 = vector.shape_cast %24 : vector<1x1x4x128xbf16> to vector<4x128xbf16>
      %cst_28 = arith.constant dense<0.000000e+00> : vector<128x128xf32>
      %26 = tpu.matmul %23, %25, %cst_28 {dimension_numbers = #tpu.dot_dimension_numbers<[1], [0], [0], [1], [0, 0, 1, 1], [], []>} : vector<128x4xbf16>, vector<4x128xbf16>, vector<128x128xf32> -> vector<128x128xf32>
      %27 = arith.addf %20, %26 : vector<128x128xf32>
      %c0_29 = arith.constant 0 : index
      %c1_30 = arith.constant 1 : index
      %c0_31 = arith.constant 0 : index
      %c0_32 = arith.constant 0 : index
      %c0_33 = arith.constant 0 : index
      %28 = vector.load %arg2[%c0_29, %c1_30, %c0_31, %c0_32, %c0_33] : memref<2x9x2x9x4xbf16, #tpu.memory_space<vmem>>, vector<2x8x1x8x4xbf16>
      %29 = vector.shape_cast %28 : vector<2x8x1x8x4xbf16> to vector<2x8x8x4xbf16>
      %30 = vector.shape_cast %29 : vector<2x8x8x4xbf16> to vector<128x4xbf16>
      %c2_34 = arith.constant 2 : index
      %c0_35 = arith.constant 0 : index
      %c0_36 = arith.constant 0 : index
      %c0_37 = arith.constant 0 : index
      %31 = vector.load %arg3[%c2_34, %c0_35, %c0_36, %c0_37] : memref<3x3x4x128xbf16, #tpu.memory_space<vmem>>, vector<1x1x4x128xbf16>
      %32 = vector.shape_cast %31 : vector<1x1x4x128xbf16> to vector<4x128xbf16>
      %cst_38 = arith.constant dense<0.000000e+00> : vector<128x128xf32>
      %33 = tpu.matmul %30, %32, %cst_38 {dimension_numbers = #tpu.dot_dimension_numbers<[1], [0], [0], [1], [0, 0, 1, 1], [], []>} : vector<128x4xbf16>, vector<4x128xbf16>, vector<128x128xf32> -> vector<128x128xf32>
      %34 = arith.addf %27, %33 : vector<128x128xf32>
      %c0_39 = arith.constant 0 : index
      %c1_40 = arith.constant 1 : index
      %c1_41 = arith.constant 1 : index
      %c0_42 = arith.constant 0 : index
      %c0_43 = arith.constant 0 : index
      %35 = vector.load %arg2[%c0_39, %c1_40, %c1_41, %c0_42, %c0_43] : memref<2x9x2x9x4xbf16, #tpu.memory_space<vmem>>, vector<2x8x1x8x4xbf16>
      %36 = vector.shape_cast %35 : vector<2x8x1x8x4xbf16> to vector<2x8x8x4xbf16>
      %37 = vector.shape_cast %36 : vector<2x8x8x4xbf16> to vector<128x4xbf16>
      %c2_44 = arith.constant 2 : index
      %c1_45 = arith.constant 1 : index
      %c0_46 = arith.constant 0 : index
      %c0_47 = arith.constant 0 : index
      %38 = vector.load %arg3[%c2_44, %c1_45, %c0_46, %c0_47] : memref<3x3x4x128xbf16, #tpu.memory_space<vmem>>, vector<1x1x4x128xbf16>
      %39 = vector.shape_cast %38 : vector<1x1x4x128xbf16> to vector<4x128xbf16>
      %cst_48 = arith.constant dense<0.000000e+00> : vector<128x128xf32>
      %40 = tpu.matmul %37, %39, %cst_48 {dimension_numbers = #tpu.dot_dimension_numbers<[1], [0], [0], [1], [0, 0, 1, 1], [], []>} : vector<128x4xbf16>, vector<4x128xbf16>, vector<128x128xf32> -> vector<128x128xf32>
      %41 = arith.addf %34, %40 : vector<128x128xf32>
      %c0_49 = arith.constant 0 : index
      %c1_50 = arith.constant 1 : index
      %c0_51 = arith.constant 0 : index
      %c1_52 = arith.constant 1 : index
      %c0_53 = arith.constant 0 : index
      %42 = vector.load %arg2[%c0_49, %c1_50, %c0_51, %c1_52, %c0_53] : memref<2x9x2x9x4xbf16, #tpu.memory_space<vmem>>, vector<2x8x1x8x4xbf16>
      %43 = vector.shape_cast %42 : vector<2x8x1x8x4xbf16> to vector<2x8x8x4xbf16>
      %44 = vector.shape_cast %43 : vector<2x8x8x4xbf16> to vector<128x4xbf16>
      %c2_54 = arith.constant 2 : index
      %c2_55 = arith.constant 2 : index
      %c0_56 = arith.constant 0 : index
      %c0_57 = arith.constant 0 : index
      %45 = vector.load %arg3[%c2_54, %c2_55, %c0_56, %c0_57] : memref<3x3x4x128xbf16, #tpu.memory_space<vmem>>, vector<1x1x4x128xbf16>
      %46 = vector.shape_cast %45 : vector<1x1x4x128xbf16> to vector<4x128xbf16>
      %cst_58 = arith.constant dense<0.000000e+00> : vector<128x128xf32>
      %47 = tpu.matmul %44, %46, %cst_58 {dimension_numbers = #tpu.dot_dimension_numbers<[1], [0], [0], [1], [0, 0, 1, 1], [], []>} : vector<128x4xbf16>, vector<4x128xbf16>, vector<128x128xf32> -> vector<128x128xf32>
      %48 = arith.addf %41, %47 : vector<128x128xf32>
      %c0_59 = arith.constant 0 : index
      %c0_60 = arith.constant 0 : index
      %49 = vector.load %arg6[%c0_59, %c0_60] : memref<128x128xf32, #tpu.memory_space<vmem>>, vector<128x128xf32>
      tpu.vector_store %arg6[%c0_59, %c0_60], %48 {strides = array<i32>} : memref<128x128xf32, #tpu.memory_space<vmem>>, vector<128x128xf32>,
    } else {
    }
    %c1_i32 = arith.constant 1 : i32
    %3 = arith.cmpi eq, %arg1, %c1_i32 : i32
    %4 = arith.extui %3 : i1 to i32
    %c0_i32_1 = arith.constant 0 : i32
    %5 = arith.cmpi ne, %4, %c0_i32_1 : i32
    scf.if %5 {
      %c0 = arith.constant 0 : index
      %c0_2 = arith.constant 0 : index
      %6 = vector.load %arg6[%c0, %c0_2] : memref<128x128xf32, #tpu.memory_space<vmem>>, vector<128x128xf32>
      %c0_3 = arith.constant 0 : index
      %c0_4 = arith.constant 0 : index
      %c0_5 = arith.constant 0 : index
      %c0_6 = arith.constant 0 : index
      %c0_7 = arith.constant 0 : index
      %7 = vector.load %arg2[%c0_3, %c0_4, %c0_5, %c0_6, %c0_7] : memref<2x9x2x9x4xbf16, #tpu.memory_space<vmem>>, vector<2x8x1x8x4xbf16>
      %8 = vector.shape_cast %7 : vector<2x8x1x8x4xbf16> to vector<2x8x8x4xbf16>
      %9 = vector.shape_cast %8 : vector<2x8x8x4xbf16> to vector<128x4xbf16>
      %c1 = arith.constant 1 : index
      %c0_8 = arith.constant 0 : index
      %c0_9 = arith.constant 0 : index
      %c0_10 = arith.constant 0 : index
      %10 = vector.load %arg3[%c1, %c0_8, %c0_9, %c0_10] : memref<3x3x4x128xbf16, #tpu.memory_space<vmem>>, vector<1x1x4x128xbf16>
      %11 = vector.shape_cast %10 : vector<1x1x4x128xbf16> to vector<4x128xbf16>
      %cst = arith.constant dense<0.000000e+00> : vector<128x128xf32>
      %12 = tpu.matmul %9, %11, %cst {dimension_numbers = #tpu.dot_dimension_numbers<[1], [0], [0], [1], [0, 0, 1, 1], [], []>} : vector<128x4xbf16>, vector<4x128xbf16>, vector<128x128xf32> -> vector<128x128xf32>
      %13 = arith.addf %6, %12 : vector<128x128xf32>
      %c0_11 = arith.constant 0 : index
      %c0_12 = arith.constant 0 : index
      %c1_13 = arith.constant 1 : index
      %c0_14 = arith.constant 0 : index
      %c0_15 = arith.constant 0 : index
      %14 = vector.load %arg2[%c0_11, %c0_12, %c1_13, %c0_14, %c0_15] : memref<2x9x2x9x4xbf16, #tpu.memory_space<vmem>>, vector<2x8x1x8x4xbf16>
      %15 = vector.shape_cast %14 : vector<2x8x1x8x4xbf16> to vector<2x8x8x4xbf16>
      %16 = vector.shape_cast %15 : vector<2x8x8x4xbf16> to vector<128x4xbf16>
      %c1_16 = arith.constant 1 : index
      %c1_17 = arith.constant 1 : index
      %c0_18 = arith.constant 0 : index
      %c0_19 = arith.constant 0 : index
      %17 = vector.load %arg3[%c1_16, %c1_17, %c0_18, %c0_19] : memref<3x3x4x128xbf16, #tpu.memory_space<vmem>>, vector<1x1x4x128xbf16>
      %18 = vector.shape_cast %17 : vector<1x1x4x128xbf16> to vector<4x128xbf16>
      %cst_20 = arith.constant dense<0.000000e+00> : vector<128x128xf32>
      %19 = tpu.matmul %16, %18, %cst_20 {dimension_numbers = #tpu.dot_dimension_numbers<[1], [0], [0], [1], [0, 0, 1, 1], [], []>} : vector<128x4xbf16>, vector<4x128xbf16>, vector<128x128xf32> -> vector<128x128xf32>
      %20 = arith.addf %13, %19 : vector<128x128xf32>
      %c0_21 = arith.constant 0 : index
      %c0_22 = arith.constant 0 : index
      %c0_23 = arith.constant 0 : index
      %c1_24 = arith.constant 1 : index
      %c0_25 = arith.constant 0 : index
      %21 = vector.load %arg2[%c0_21, %c0_22, %c0_23, %c1_24, %c0_25] : memref<2x9x2x9x4xbf16, #tpu.memory_space<vmem>>, vector<2x8x1x8x4xbf16>
      %22 = vector.shape_cast %21 : vector<2x8x1x8x4xbf16> to vector<2x8x8x4xbf16>
      %23 = vector.shape_cast %22 : vector<2x8x8x4xbf16> to vector<128x4xbf16>
      %c1_26 = arith.constant 1 : index
      %c2 = arith.constant 2 : index
      %c0_27 = arith.constant 0 : index
      %c0_28 = arith.constant 0 : index
      %24 = vector.load %arg3[%c1_26, %c2, %c0_27, %c0_28] : memref<3x3x4x128xbf16, #tpu.memory_space<vmem>>, vector<1x1x4x128xbf16>
      %25 = vector.shape_cast %24 : vector<1x1x4x128xbf16> to vector<4x128xbf16>
      %cst_29 = arith.constant dense<0.000000e+00> : vector<128x128xf32>
      %26 = tpu.matmul %23, %25, %cst_29 {dimension_numbers = #tpu.dot_dimension_numbers<[1], [0], [0], [1], [0, 0, 1, 1], [], []>} : vector<128x4xbf16>, vector<4x128xbf16>, vector<128x128xf32> -> vector<128x128xf32>
      %27 = arith.addf %20, %26 : vector<128x128xf32>
      %c0_30 = arith.constant 0 : index
      %c0_31 = arith.constant 0 : index
      %28 = vector.load %arg4[%c0_30, %c0_31] : memref<1x128xf32, #tpu.memory_space<vmem>>, vector<1x128xf32>
      %29 = vector.broadcast %28 : vector<1x128xf32> to vector<128x128xf32>
      %30 = arith.addf %27, %29 : vector<128x128xf32>
      %cst_32 = arith.constant 0.000000e+00 : f32
      %31 = vector.broadcast %cst_32 : f32 to vector<128x128xf32>
      %32 = arith.cmpf ogt, %30, %31 : vector<128x128xf32>
      %cst_33 = arith.constant 0.00999999977 : f32
      %33 = vector.broadcast %cst_33 : f32 to vector<128x128xf32>
      %34 = arith.mulf %33, %30 : vector<128x128xf32>
      %35 = arith.select %32, %30, %34 : vector<128x128xi1>, vector<128x128xf32>
      %36 = vector.shape_cast %35 : vector<128x128xf32> to vector<2x64x128xf32>
      %37 = arith.truncf %36 : vector<2x64x128xf32> to vector<2x64x128xbf16>
      %c0_34 = arith.constant 0 : index
      %c0_35 = arith.constant 0 : index
      %c0_36 = arith.constant 0 : index
      %38 = vector.load %arg5[%c0_34, %c0_35, %c0_36] : memref<2x64x128xbf16, #tpu.memory_space<vmem>>, vector<2x64x128xbf16>
      tpu.vector_store %arg5[%c0_34, %c0_35, %c0_36], %37 {strides = array<i32>} : memref<2x64x128xbf16, #tpu.memory_space<vmem>>, vector<2x64x128xbf16>,
    } else {
    }
    return
  }
  func.func @transform_0(%arg0: i32, %arg1: i32) -> (i32, i32, i32, i32, i32) {
    %c1_i32 = arith.constant 1 : i32
    %0 = arith.muli %arg1, %c1_i32 : i32
    %1 = arith.addi %0, %arg0 : i32
    %c0_i32 = arith.constant 0 : i32
    %c0_i32_0 = arith.constant 0 : i32
    %c0_i32_1 = arith.constant 0 : i32
    %c0_i32_2 = arith.constant 0 : i32
    %c0_i32_3 = arith.constant 0 : i32
    return %1, %c0_i32, %c0_i32_0, %c0_i32_1, %c0_i32_2 : i32, i32, i32, i32, i32
  }
  func.func @transform_1(%arg0: i32, %arg1: i32) -> (i32, i32, i32, i32) {
    %c0_i32 = arith.constant 0 : i32
    %c0_i32_0 = arith.constant 0 : i32
    %c0_i32_1 = arith.constant 0 : i32
    %c0_i32_2 = arith.constant 0 : i32
    %c0_i32_3 = arith.constant 0 : i32
    return %c0_i32, %c0_i32_0, %c0_i32_1, %c0_i32_2 : i32, i32, i32, i32
  }
  func.func @transform_2(%arg0: i32, %arg1: i32) -> (i32, i32) {
    %c0_i32 = arith.constant 0 : i32
    %c0_i32_0 = arith.constant 0 : i32
    %c0_i32_1 = arith.constant 0 : i32
    return %c0_i32, %c0_i32_0 : i32, i32
  }
  func.func @transform_3(%arg0: i32, %arg1: i32) -> (i32, i32, i32) {
    %c0_i32 = arith.constant 0 : i32
    %c0_i32_0 = arith.constant 0 : i32
    %c0_i32_1 = arith.constant 0 : i32
    return %arg0, %c0_i32, %c0_i32_0 : i32, i32, i32
  }
}

module attributes {stable_mosaic.version = 11 : i64} {
  func.func @_matmul_bias_lrelu_kernel(%arg0: i32, %arg1: i32, %arg2: i32, %arg3: memref<32x384xbf16, #tpu.memory_space<vmem>>, %arg4: memref<384x128xbf16, #tpu.memory_space<vmem>>, %arg5: memref<1x128xf32, #tpu.memory_space<vmem>>, %arg6: memref<32x128xbf16, #tpu.memory_space<vmem>>, %arg7: memref<32x128xf32, #tpu.memory_space<vmem>>) attributes {dimension_semantics = [#tpu.dimension_semantics<parallel>, #tpu.dimension_semantics<parallel>, #tpu.dimension_semantics<arbitrary>], iteration_bounds = array<i64: 1, 1, 3>, scalar_prefetch = 0 : i64, scratch_operands = 1 : i64, tpu.core_type = #tpu.core_type<tc>, window_params = [{transform_indices = @transform_0, window_bounds = array<i64: 32, 384>}, {transform_indices = @transform_1, window_bounds = array<i64: 384, 128>}, {transform_indices = @transform_2, window_bounds = array<i64: 1, 128>}, {transform_indices = @transform_3, window_bounds = array<i64: 32, 128>}]} {
    %c0_i32 = arith.constant 0 : i32
    %0 = arith.cmpi eq, %arg2, %c0_i32 : i32
    %1 = arith.extui %0 : i1 to i32
    %c0_i32_0 = arith.constant 0 : i32
    %2 = arith.cmpi ne, %1, %c0_i32_0 : i32
    scf.if %2 {
      %cst_9 = arith.constant 0.000000e+00 : f32
      %12 = vector.broadcast %cst_9 : f32 to vector<32x128xf32>
      %c0_10 = arith.constant 0 : index
      %c0_11 = arith.constant 0 : index
      %13 = vector.load %arg7[%c0_10, %c0_11] : memref<32x128xf32, #tpu.memory_space<vmem>>, vector<32x128xf32>
      tpu.vector_store %arg7[%c0_10, %c0_11], %12 {strides = array<i32>} : memref<32x128xf32, #tpu.memory_space<vmem>>, vector<32x128xf32>,
    } else {
    }
    %c0 = arith.constant 0 : index
    %c0_1 = arith.constant 0 : index
    %3 = vector.load %arg7[%c0, %c0_1] : memref<32x128xf32, #tpu.memory_space<vmem>>, vector<32x128xf32>
    %c0_2 = arith.constant 0 : index
    %c0_3 = arith.constant 0 : index
    %4 = vector.load %arg3[%c0_2, %c0_3] : memref<32x384xbf16, #tpu.memory_space<vmem>>, vector<32x384xbf16>
    %c0_4 = arith.constant 0 : index
    %c0_5 = arith.constant 0 : index
    %5 = vector.load %arg4[%c0_4, %c0_5] : memref<384x128xbf16, #tpu.memory_space<vmem>>, vector<384x128xbf16>
    %cst = arith.constant dense<0.000000e+00> : vector<32x128xf32>
    %6 = tpu.matmul %4, %5, %cst {dimension_numbers = #tpu.dot_dimension_numbers<[1], [0], [0], [1], [0, 0, 1, 1], [], []>} : vector<32x384xbf16>, vector<384x128xbf16>, vector<32x128xf32> -> vector<32x128xf32>
    %7 = arith.addf %3, %6 : vector<32x128xf32>
    %c0_6 = arith.constant 0 : index
    %c0_7 = arith.constant 0 : index
    %8 = vector.load %arg7[%c0_6, %c0_7] : memref<32x128xf32, #tpu.memory_space<vmem>>, vector<32x128xf32>
    tpu.vector_store %arg7[%c0_6, %c0_7], %7 {strides = array<i32>} : memref<32x128xf32, #tpu.memory_space<vmem>>, vector<32x128xf32>,
    %c2_i32 = arith.constant 2 : i32
    %9 = arith.cmpi eq, %arg2, %c2_i32 : i32
    %10 = arith.extui %9 : i1 to i32
    %c0_i32_8 = arith.constant 0 : i32
    %11 = arith.cmpi ne, %10, %c0_i32_8 : i32
    scf.if %11 {
      %c0_9 = arith.constant 0 : index
      %c0_10 = arith.constant 0 : index
      %12 = vector.load %arg7[%c0_9, %c0_10] : memref<32x128xf32, #tpu.memory_space<vmem>>, vector<32x128xf32>
      %c0_11 = arith.constant 0 : index
      %c0_12 = arith.constant 0 : index
      %13 = vector.load %arg5[%c0_11, %c0_12] : memref<1x128xf32, #tpu.memory_space<vmem>>, vector<1x128xf32>
      %14 = vector.broadcast %13 : vector<1x128xf32> to vector<32x128xf32>
      %15 = arith.addf %12, %14 : vector<32x128xf32>
      %cst_13 = arith.constant 0.000000e+00 : f32
      %16 = vector.broadcast %cst_13 : f32 to vector<32x128xf32>
      %17 = arith.cmpf ogt, %15, %16 : vector<32x128xf32>
      %cst_14 = arith.constant 0.00999999977 : f32
      %18 = vector.broadcast %cst_14 : f32 to vector<32x128xf32>
      %19 = arith.mulf %18, %15 : vector<32x128xf32>
      %20 = arith.select %17, %15, %19 : vector<32x128xi1>, vector<32x128xf32>
      %21 = arith.truncf %20 : vector<32x128xf32> to vector<32x128xbf16>
      %c0_15 = arith.constant 0 : index
      %c0_16 = arith.constant 0 : index
      %22 = vector.load %arg6[%c0_15, %c0_16] : memref<32x128xbf16, #tpu.memory_space<vmem>>, vector<32x128xbf16>
      tpu.vector_store %arg6[%c0_15, %c0_16], %21 {strides = array<i32>} : memref<32x128xbf16, #tpu.memory_space<vmem>>, vector<32x128xbf16>,
    } else {
    }
    return
  }
  func.func @transform_0(%arg0: i32, %arg1: i32, %arg2: i32) -> (i32, i32) {
    %c0_i32 = arith.constant 0 : i32
    return %arg0, %arg2 : i32, i32
  }
  func.func @transform_1(%arg0: i32, %arg1: i32, %arg2: i32) -> (i32, i32) {
    %c0_i32 = arith.constant 0 : i32
    return %arg2, %arg1 : i32, i32
  }
  func.func @transform_2(%arg0: i32, %arg1: i32, %arg2: i32) -> (i32, i32) {
    %c0_i32 = arith.constant 0 : i32
    %c0_i32_0 = arith.constant 0 : i32
    return %c0_i32, %arg1 : i32, i32
  }
  func.func @transform_3(%arg0: i32, %arg1: i32, %arg2: i32) -> (i32, i32) {
    %c0_i32 = arith.constant 0 : i32
    return %arg0, %arg1 : i32, i32
  }
}

module attributes {stable_mosaic.version = 11 : i64} {
  func.func @_matmul_bias_lrelu_kernel(%arg0: i32, %arg1: i32, %arg2: i32, %arg3: memref<8x384xbf16, #tpu.memory_space<vmem>>, %arg4: memref<384x128xbf16, #tpu.memory_space<vmem>>, %arg5: memref<1x128xf32, #tpu.memory_space<vmem>>, %arg6: memref<8x128xbf16, #tpu.memory_space<vmem>>, %arg7: memref<8x128xf32, #tpu.memory_space<vmem>>) attributes {dimension_semantics = [#tpu.dimension_semantics<parallel>, #tpu.dimension_semantics<parallel>, #tpu.dimension_semantics<arbitrary>], iteration_bounds = array<i64: 1, 1, 3>, scalar_prefetch = 0 : i64, scratch_operands = 1 : i64, tpu.core_type = #tpu.core_type<tc>, window_params = [{transform_indices = @transform_0, window_bounds = array<i64: 8, 384>}, {transform_indices = @transform_1, window_bounds = array<i64: 384, 128>}, {transform_indices = @transform_2, window_bounds = array<i64: 1, 128>}, {transform_indices = @transform_3, window_bounds = array<i64: 8, 128>}]} {
    %c0_i32 = arith.constant 0 : i32
    %0 = arith.cmpi eq, %arg2, %c0_i32 : i32
    %1 = arith.extui %0 : i1 to i32
    %c0_i32_0 = arith.constant 0 : i32
    %2 = arith.cmpi ne, %1, %c0_i32_0 : i32
    scf.if %2 {
      %cst_9 = arith.constant 0.000000e+00 : f32
      %12 = vector.broadcast %cst_9 : f32 to vector<8x128xf32>
      %c0_10 = arith.constant 0 : index
      %c0_11 = arith.constant 0 : index
      %13 = vector.load %arg7[%c0_10, %c0_11] : memref<8x128xf32, #tpu.memory_space<vmem>>, vector<8x128xf32>
      tpu.vector_store %arg7[%c0_10, %c0_11], %12 {strides = array<i32>} : memref<8x128xf32, #tpu.memory_space<vmem>>, vector<8x128xf32>,
    } else {
    }
    %c0 = arith.constant 0 : index
    %c0_1 = arith.constant 0 : index
    %3 = vector.load %arg7[%c0, %c0_1] : memref<8x128xf32, #tpu.memory_space<vmem>>, vector<8x128xf32>
    %c0_2 = arith.constant 0 : index
    %c0_3 = arith.constant 0 : index
    %4 = vector.load %arg3[%c0_2, %c0_3] : memref<8x384xbf16, #tpu.memory_space<vmem>>, vector<8x384xbf16>
    %c0_4 = arith.constant 0 : index
    %c0_5 = arith.constant 0 : index
    %5 = vector.load %arg4[%c0_4, %c0_5] : memref<384x128xbf16, #tpu.memory_space<vmem>>, vector<384x128xbf16>
    %cst = arith.constant dense<0.000000e+00> : vector<8x128xf32>
    %6 = tpu.matmul %4, %5, %cst {dimension_numbers = #tpu.dot_dimension_numbers<[1], [0], [0], [1], [0, 0, 1, 1], [], []>} : vector<8x384xbf16>, vector<384x128xbf16>, vector<8x128xf32> -> vector<8x128xf32>
    %7 = arith.addf %3, %6 : vector<8x128xf32>
    %c0_6 = arith.constant 0 : index
    %c0_7 = arith.constant 0 : index
    %8 = vector.load %arg7[%c0_6, %c0_7] : memref<8x128xf32, #tpu.memory_space<vmem>>, vector<8x128xf32>
    tpu.vector_store %arg7[%c0_6, %c0_7], %7 {strides = array<i32>} : memref<8x128xf32, #tpu.memory_space<vmem>>, vector<8x128xf32>,
    %c2_i32 = arith.constant 2 : i32
    %9 = arith.cmpi eq, %arg2, %c2_i32 : i32
    %10 = arith.extui %9 : i1 to i32
    %c0_i32_8 = arith.constant 0 : i32
    %11 = arith.cmpi ne, %10, %c0_i32_8 : i32
    scf.if %11 {
      %c0_9 = arith.constant 0 : index
      %c0_10 = arith.constant 0 : index
      %12 = vector.load %arg7[%c0_9, %c0_10] : memref<8x128xf32, #tpu.memory_space<vmem>>, vector<8x128xf32>
      %c0_11 = arith.constant 0 : index
      %c0_12 = arith.constant 0 : index
      %13 = vector.load %arg5[%c0_11, %c0_12] : memref<1x128xf32, #tpu.memory_space<vmem>>, vector<1x128xf32>
      %14 = vector.broadcast %13 : vector<1x128xf32> to vector<8x128xf32>
      %15 = arith.addf %12, %14 : vector<8x128xf32>
      %cst_13 = arith.constant 0.000000e+00 : f32
      %16 = vector.broadcast %cst_13 : f32 to vector<8x128xf32>
      %17 = arith.cmpf ogt, %15, %16 : vector<8x128xf32>
      %cst_14 = arith.constant 0.00999999977 : f32
      %18 = vector.broadcast %cst_14 : f32 to vector<8x128xf32>
      %19 = arith.mulf %18, %15 : vector<8x128xf32>
      %20 = arith.select %17, %15, %19 : vector<8x128xi1>, vector<8x128xf32>
      %21 = arith.truncf %20 : vector<8x128xf32> to vector<8x128xbf16>
      %c0_15 = arith.constant 0 : index
      %c0_16 = arith.constant 0 : index
      %22 = vector.load %arg6[%c0_15, %c0_16] : memref<8x128xbf16, #tpu.memory_space<vmem>>, vector<8x128xbf16>
      tpu.vector_store %arg6[%c0_15, %c0_16], %21 {strides = array<i32>} : memref<8x128xbf16, #tpu.memory_space<vmem>>, vector<8x128xbf16>,
    } else {
    }
    return
  }
  func.func @transform_0(%arg0: i32, %arg1: i32, %arg2: i32) -> (i32, i32) {
    %c0_i32 = arith.constant 0 : i32
    return %arg0, %arg2 : i32, i32
  }
  func.func @transform_1(%arg0: i32, %arg1: i32, %arg2: i32) -> (i32, i32) {
    %c0_i32 = arith.constant 0 : i32
    return %arg2, %arg1 : i32, i32
  }
  func.func @transform_2(%arg0: i32, %arg1: i32, %arg2: i32) -> (i32, i32) {
    %c0_i32 = arith.constant 0 : i32
    %c0_i32_0 = arith.constant 0 : i32
    return %c0_i32, %arg1 : i32, i32
  }
  func.func @transform_3(%arg0: i32, %arg1: i32, %arg2: i32) -> (i32, i32) {
    %c0_i32 = arith.constant 0 : i32
    return %arg0, %arg1 : i32, i32
  }
}

module attributes {stable_mosaic.version = 11 : i64} {
  func.func @_tail_fused_kernel(%arg0: i32, %arg1: memref<8x512xbf16, #tpu.memory_space<vmem>>, %arg2: memref<512x128xbf16, #tpu.memory_space<vmem>>, %arg3: memref<1x128xf32, #tpu.memory_space<vmem>>, %arg4: memref<128x128xbf16, #tpu.memory_space<vmem>>, %arg5: memref<1x128xf32, #tpu.memory_space<vmem>>, %arg6: memref<8x128xf32, #tpu.memory_space<vmem>>) attributes {dimension_semantics = [#tpu.dimension_semantics<arbitrary>], iteration_bounds = array<i64: 1>, scalar_prefetch = 0 : i64, scratch_operands = 0 : i64, tpu.core_type = #tpu.core_type<tc>, window_params = [{pipeline_mode = #tpu.pipeline_mode<synchronous>, transform_indices = @transform_0, window_bounds = array<i64: 8, 512>}, {pipeline_mode = #tpu.pipeline_mode<synchronous>, transform_indices = @transform_1, window_bounds = array<i64: 512, 128>}, {pipeline_mode = #tpu.pipeline_mode<synchronous>, transform_indices = @transform_2, window_bounds = array<i64: 1, 128>}, {pipeline_mode = #tpu.pipeline_mode<synchronous>, transform_indices = @transform_3, window_bounds = array<i64: 128, 128>}, {pipeline_mode = #tpu.pipeline_mode<synchronous>, transform_indices = @transform_4, window_bounds = array<i64: 1, 128>}, {pipeline_mode = #tpu.pipeline_mode<synchronous>, transform_indices = @transform_5, window_bounds = array<i64: 8, 128>}]} {
    %c0 = arith.constant 0 : index
    %c0_0 = arith.constant 0 : index
    %0 = vector.load %arg1[%c0, %c0_0] : memref<8x512xbf16, #tpu.memory_space<vmem>>, vector<8x512xbf16>
    %c0_1 = arith.constant 0 : index
    %c0_2 = arith.constant 0 : index
    %1 = vector.load %arg2[%c0_1, %c0_2] : memref<512x128xbf16, #tpu.memory_space<vmem>>, vector<512x128xbf16>
    %cst = arith.constant dense<0.000000e+00> : vector<8x128xf32>
    %2 = tpu.matmul %0, %1, %cst {dimension_numbers = #tpu.dot_dimension_numbers<[1], [0], [0], [1], [0, 0, 1, 1], [], []>} : vector<8x512xbf16>, vector<512x128xbf16>, vector<8x128xf32> -> vector<8x128xf32>
    %c0_3 = arith.constant 0 : index
    %c0_4 = arith.constant 0 : index
    %3 = vector.load %arg3[%c0_3, %c0_4] : memref<1x128xf32, #tpu.memory_space<vmem>>, vector<1x128xf32>
    %4 = vector.broadcast %3 : vector<1x128xf32> to vector<8x128xf32>
    %5 = arith.addf %2, %4 : vector<8x128xf32>
    %cst_5 = arith.constant 0.000000e+00 : f32
    %6 = vector.broadcast %cst_5 : f32 to vector<8x128xf32>
    %7 = arith.cmpf ogt, %5, %6 : vector<8x128xf32>
    %cst_6 = arith.constant 0.00999999977 : f32
    %8 = vector.broadcast %cst_6 : f32 to vector<8x128xf32>
    %9 = arith.mulf %8, %5 : vector<8x128xf32>
    %10 = arith.select %7, %5, %9 : vector<8x128xi1>, vector<8x128xf32>
    %11 = arith.truncf %10 : vector<8x128xf32> to vector<8x128xbf16>
    %c0_7 = arith.constant 0 : index
    %c0_8 = arith.constant 0 : index
    %12 = vector.load %arg4[%c0_7, %c0_8] : memref<128x128xbf16, #tpu.memory_space<vmem>>, vector<128x128xbf16>
    %cst_9 = arith.constant dense<0.000000e+00> : vector<8x128xf32>
    %13 = tpu.matmul %11, %12, %cst_9 {dimension_numbers = #tpu.dot_dimension_numbers<[1], [0], [0], [1], [0, 0, 1, 1], [], []>} : vector<8x128xbf16>, vector<128x128xbf16>, vector<8x128xf32> -> vector<8x128xf32>
    %c0_10 = arith.constant 0 : index
    %c0_11 = arith.constant 0 : index
    %14 = vector.load %arg5[%c0_10, %c0_11] : memref<1x128xf32, #tpu.memory_space<vmem>>, vector<1x128xf32>
    %15 = vector.broadcast %14 : vector<1x128xf32> to vector<8x128xf32>
    %16 = arith.addf %13, %15 : vector<8x128xf32>
    %cst_12 = arith.constant 0.000000e+00 : f32
    %17 = vector.broadcast %cst_12 : f32 to vector<8x128xf32>
    %18 = arith.cmpf ogt, %16, %17 : vector<8x128xf32>
    %cst_13 = arith.constant 0.00999999977 : f32
    %19 = vector.broadcast %cst_13 : f32 to vector<8x128xf32>
    %20 = arith.mulf %19, %16 : vector<8x128xf32>
    %21 = arith.select %18, %16, %20 : vector<8x128xi1>, vector<8x128xf32>
    %c0_14 = arith.constant 0 : index
    %c0_15 = arith.constant 0 : index
    %22 = vector.load %arg6[%c0_14, %c0_15] : memref<8x128xf32, #tpu.memory_space<vmem>>, vector<8x128xf32>
    tpu.vector_store %arg6[%c0_14, %c0_15], %21 {strides = array<i32>} : memref<8x128xf32, #tpu.memory_space<vmem>>, vector<8x128xf32>,
    return
  }
  func.func @transform_0(%arg0: i32) -> (i32, i32) {
    %c0_i32 = arith.constant 0 : i32
    %c0_i32_0 = arith.constant 0 : i32
    %c0_i32_1 = arith.constant 0 : i32
    return %c0_i32, %c0_i32_0 : i32, i32
  }
  func.func @transform_1(%arg0: i32) -> (i32, i32) {
    %c0_i32 = arith.constant 0 : i32
    %c0_i32_0 = arith.constant 0 : i32
    %c0_i32_1 = arith.constant 0 : i32
    return %c0_i32, %c0_i32_0 : i32, i32
  }
  func.func @transform_2(%arg0: i32) -> (i32, i32) {
    %c0_i32 = arith.constant 0 : i32
    %c0_i32_0 = arith.constant 0 : i32
    %c0_i32_1 = arith.constant 0 : i32
    return %c0_i32, %c0_i32_0 : i32, i32
  }
  func.func @transform_3(%arg0: i32) -> (i32, i32) {
    %c0_i32 = arith.constant 0 : i32
    %c0_i32_0 = arith.constant 0 : i32
    %c0_i32_1 = arith.constant 0 : i32
    return %c0_i32, %c0_i32_0 : i32, i32
  }
  func.func @transform_4(%arg0: i32) -> (i32, i32) {
    %c0_i32 = arith.constant 0 : i32
    %c0_i32_0 = arith.constant 0 : i32
    %c0_i32_1 = arith.constant 0 : i32
    return %c0_i32, %c0_i32_0 : i32, i32
  }
  func.func @transform_5(%arg0: i32) -> (i32, i32) {
    %c0_i32 = arith.constant 0 : i32
    %c0_i32_0 = arith.constant 0 : i32
    %c0_i32_1 = arith.constant 0 : i32
    return %c0_i32, %c0_i32_0 : i32, i32
  }
}

</mosaic_0001>

<llo_original>
// kernel: fwd.5
$region0: #{fwd.5}
  #allocation0 [shape = 'u32[]', space=smem, size = 0x4, offset = 0x4, fixed_abs, tag = 'smem constant byte address 0x4 - core index']
  #allocation1 [shape = 'u32[72,128]{1,0:T(1,128)}', space=vmem, size = 0x9000, scoped, tag = 'internal scratch']
  #allocation2 [shape = 'f32[32,128]{1,0:T(8,128)}', space=vmem, size = 0x4000, scoped, tag = 'scratch operand']
  %s0 = inlined_call_operand.vmem [shape: bf16[32,1152], index: 0, kind: input, shape index: {}]
  %s1 = inlined_call_operand.vmem [shape: bf16[1152,128], index: 1, kind: input, shape index: {}]
  %s2 = inlined_call_operand.vmem [shape: f32[1,128], index: 2, kind: input, shape index: {}]
  %s3 = inlined_call_operand.vmem [shape: bf16[32,128], index: 3, kind: output, shape index: {}]
  %s4 = sld [smem:[#allocation0]]
  $region79: #{fwd.5} parent=0
    _
  %s6 = ssub.s32 1, %s4
  %s7 = scalar_select 0, %s6, %s4
  $region1: #{fwd.5} parent=0
    #allocation3 [shape = 'u8[49152]{0}', space=vmem, size = 0xc000, scoped, tag = 'input window, operand 0']
    loop: start=0, step=1, limit=5
    $region2: #{fwd.5} parent=1 // loop_pre_header
      _
    $region3: #{fwd.5} parent=1 // loop_header
      %s9 = sphi 0, %s13
      %p10 = scmp.ge.s32.totalorder %s9, 5
      %s16 = sphi 0, %s35
      %s17 = sphi 0, %s31
      %s18 = sphi 0, %s27
      %s19 = sphi 0, %s16
      %s20 = sphi 0, %s17
      %s21 = sphi 0, %s18
      %s22 = sphi 0, %s19
      %s23 = sphi 0, %s20
      %s24 = sphi 0, %s21
      %s40 = sphi 0, %s42
      %s43 = sphi 0, %s40
      %s44 = sphi 0, %s43
      %s60 = sphi 0, %s44
      %s68 = sphi 0, %s70
      %s71 = sphi 0, %s68
      %s72 = sphi 0, %s71
      %s88 = sphi 0, %s72
      %s94 = sphi 0, %s96
      %s97 = sphi 0, %s94
      %s98 = sphi 0, %s97
      %s114 = sphi 0, %s98
      %s122 = sphi 0, %s124
      %s125 = sphi 0, %s122
      %s126 = sphi 0, %s125
      %s142 = sphi 0, %s126
    $region4: #{fwd.5} parent=1 // loop_header_branch
      %12 = sbr.rel (%p10) target = $region8
    $region5: #{fwd.5} parent=1 // loop_body
      %s14 = ssub.s32 %s9, 1
      %s15 = ssub.s32 %s9, 2
      %s25 = sadd.s32 1, %s18
      %p26 = scmp.ge.s32.totalorder %s25, 3
      %s27 = scalar_select %p26, 0, %s25
      %s28 = sadd.s32 1, %s17
      %s29 = scalar_select %p26, %s28, %s17
      %p30 = scmp.ge.s32.totalorder %s29, 1
      %s31 = scalar_select %p30, 0, %s29
      %s32 = sadd.s32 1, %s16
      %s33 = scalar_select %p30, %s32, %s16
      %p34 = scmp.ge.s32.totalorder %s33, 1
      %s35 = scalar_select %p34, 0, %s33
      %s36 = ssub.s32 %s16, %s35
      %s37 = ssub.s32 %s18, %s27
      %s38 = sor.u32 %s36, %s37
      %p39 = scmp.eq.s32.totalorder %s38, 0
      %s41 = sadd.s32 %s40, 1
      %s42 = scalar_select %p39, %s40, %s41
      %p45 = pneg %p39
      %p46 = scmp.eq.s32.totalorder %s9, 2
      %p47 = por %p45, %p46
      %p48 = scmp.ne.s32.totalorder %s40, %s43
      %p49 = scmp.eq.s32.totalorder %s9, 0
      %p50 = por %p48, %p49
      %p51 = scmp.ne.s32.totalorder %s40, %s43
      %p52 = scmp.eq.s32.totalorder %s14, 2
      %p53 = por %p51, %p52
      %p54 = scmp.ne.s32.totalorder %s43, %s44
      %p55 = scmp.eq.s32.totalorder %s14, 0
      %p56 = por %p54, %p55
      %p57 = scmp.ne.s32.totalorder %s43, %s44
      %p58 = scmp.eq.s32.totalorder %s15, 2
      %p59 = por %p57, %p58
      %p61 = scmp.ne.s32.totalorder %s44, %s60
      %p62 = scmp.eq.s32.totalorder %s15, 0
      %p63 = por %p61, %p62
      %s64 = ssub.s32 %s18, %s27
      %s65 = ssub.s32 %s17, %s31
      %s66 = sor.u32 %s64, %s65
      %p67 = scmp.eq.s32.totalorder %s66, 0
      %s69 = sadd.s32 %s68, 1
      %s70 = scalar_select %p67, %s68, %s69
      %p73 = pneg %p67
      %p74 = scmp.eq.s32.totalorder %s9, 2
      %p75 = por %p73, %p74
      %p76 = scmp.ne.s32.totalorder %s68, %s71
      %p77 = scmp.eq.s32.totalorder %s9, 0
      %p78 = por %p76, %p77
      %p79 = scmp.ne.s32.totalorder %s68, %s71
      %p80 = scmp.eq.s32.totalorder %s14, 2
      %p81 = por %p79, %p80
      %p82 = scmp.ne.s32.totalorder %s71, %s72
      %p83 = scmp.eq.s32.totalorder %s14, 0
      %p84 = por %p82, %p83
      %p85 = scmp.ne.s32.totalorder %s71, %s72
      %p86 = scmp.eq.s32.totalorder %s15, 2
      %p87 = por %p85, %p86
      %p89 = scmp.ne.s32.totalorder %s72, %s88
      %p90 = scmp.eq.s32.totalorder %s15, 0
      %p91 = por %p89, %p90
      %s92 = ssub.s32 %s17, %s31
      %p93 = scmp.eq.s32.totalorder %s92, 0
      %s95 = sadd.s32 %s94, 1
      %s96 = scalar_select %p93, %s94, %s95
      %p99 = pneg %p93
      %p100 = scmp.eq.s32.totalorder %s9, 2
      %p101 = por %p99, %p100
      %p102 = scmp.ne.s32.totalorder %s94, %s97
      %p103 = scmp.eq.s32.totalorder %s9, 0
      %p104 = por %p102, %p103
      %p105 = scmp.ne.s32.totalorder %s94, %s97
      %p106 = scmp.eq.s32.totalorder %s14, 2
      %p107 = por %p105, %p106
      %p108 = scmp.ne.s32.totalorder %s97, %s98
      %p109 = scmp.eq.s32.totalorder %s14, 0
      %p110 = por %p108, %p109
      %p111 = scmp.ne.s32.totalorder %s97, %s98
      %p112 = scmp.eq.s32.totalorder %s15, 2
      %p113 = por %p111, %p112
      %p115 = scmp.ne.s32.totalorder %s98, %s114
      %p116 = scmp.eq.s32.totalorder %s15, 0
      %p117 = por %p115, %p116
      %s118 = ssub.s32 %s16, %s35
      %s119 = ssub.s32 %s17, %s31
      %s120 = sor.u32 %s118, %s119
      %p121 = scmp.eq.s32.totalorder %s120, 0
      %s123 = sadd.s32 %s122, 1
      %s124 = scalar_select %p121, %s122, %s123
      %p127 = pneg %p121
      %p128 = scmp.eq.s32.totalorder %s9, 2
      %p129 = por %p127, %p128
      %p130 = scmp.ne.s32.totalorder %s122, %s125
      %p131 = scmp.eq.s32.totalorder %s9, 0
      %p132 = por %p130, %p131
      %p133 = scmp.ne.s32.totalorder %s122, %s125
      %p134 = scmp.eq.s32.totalorder %s14, 2
      %p135 = por %p133, %p134
      %p136 = scmp.ne.s32.totalorder %s125, %s126
      %p137 = scmp.eq.s32.totalorder %s14, 0
      %p138 = por %p136, %p137
      %p139 = scmp.ne.s32.totalorder %s125, %s126
      %p140 = scmp.eq.s32.totalorder %s15, 2
      %p141 = por %p139, %p140
      %p143 = scmp.ne.s32.totalorder %s126, %s142
      %p144 = scmp.eq.s32.totalorder %s15, 0
      %p145 = por %p143, %p144
      %p146 = scmp.le.s32.totalorder 1, %s9
      %p147 = scmp.lt.s32.totalorder %s9, 4
      %p148 = pnand %p146, %p147
      %p149 = pneg %p148
      // Predicated region
      $region9: #{fwd.5} parent=5 // pred_check
        _
      $region10: #{fwd.5} parent=5 // pred_check_branch
        %151 = sbr.rel (%p148) target = $region12
      $region11: #{fwd.5} parent=5 // pred_region
        %s152 = ssub.s32 %s9, 1
        // Predicated region
        $region13: #{fwd.5} parent=11 // pred_check
          %p153 = pneg %p110
        $region14: #{fwd.5} parent=11 // pred_check_branch
          %155 = sbr.rel (%p153) target = $region16
        $region15: #{fwd.5} parent=11 // pred_region
          %p156 = scmp.lt.s32.totalorder %s20, 0
          %s157 = scalar_select %p156, %s20, 0
          %s158 = scalar_lea.vmem %s2, %s157
        $region16: #{fwd.5} parent=11 // pred_fallthru
          _
      $region12: #{fwd.5} parent=5 // pred_fallthru
        _
      %p159 = scmp.lt.s32.totalorder %s9, 3
      // Predicated region
      $region17: #{fwd.5} parent=5 // pred_check
        %p160 = pneg %p159
      $region18: #{fwd.5} parent=5 // pred_check_branch
        %162 = sbr.rel (%p160) target = $region20
      $region19: #{fwd.5} parent=5 // pred_region
        // Predicated region
        $region21: #{fwd.5} parent=19 // pred_check
          %p163 = pneg %p50
        $region22: #{fwd.5} parent=19 // pred_check_branch
          %165 = sbr.rel (%p163) target = $region24
        $region23: #{fwd.5} parent=19 // pred_region
          %s166 = sand.u32 %s40, 1
          %s167 = sand.u32 %s40, 1
          %s168 = smul.addr %s167, 48
          %s169 = scalar_lea.vmem [#allocation3], %s168
          %s170 = smul.u32 4, %s16
          %s171 = smul.u32 3, %s18
          %s172 = smul.addr %s170, 9
          %s173 = sadd.s32 %s171, %s172
          %s174 = smul.addr %s173, 4
          %s175 = scalar_lea.vmem %s0, %s174
          // Predicated region
          $region25: #{fwd.5} parent=23 // pred_check
            _
          $region26: #{fwd.5} parent=23 // pred_check_branch
            %177 = sbr.rel (0) target = $region28
          $region27: #{fwd.5} parent=23 // pred_region
            // Predicated region
            $region29: #{fwd.5} parent=27 // pred_check
              _
            $region30: #{fwd.5} parent=27 // pred_check_branch
              %179 = sbr.rel (0) target = $region32
            $region31: #{fwd.5} parent=27 // pred_region
              %s180 = scalar_lea.vmem %s175, 8
              %s181 = scalar_lea.vmem %s169, 8 [#allocation3]
              loop: start=0, step=1, limit=1
              $region33: #{fwd.5} parent=31 // loop_pre_header
                _
              $region34: #{fwd.5} parent=31 // loop_header
                %s183 = sphi 0, %s187
                %p184 = scmp.ge.s32.totalorder %s183, 1
                %s188 = sphi %s175, %s175
                %s189 = sphi %s169, %s169
              $region35: #{fwd.5} parent=31 // loop_header_branch
                %186 = sbr.rel (%p184) target = $region39
              $region36: #{fwd.5} parent=31 // loop_body
                %v190 = vld [vmem:[%s188] sm:$0xff]
                %191 = vst [vmem:[%s189] sm:$0xff] %v190
                %v192 = vld [vmem:[%s188 + $0x24] sm:$0xff]
                %193 = vst [vmem:[%s189 + $0xc] sm:$0xff] %v192
                %v194 = vld [vmem:[%s188 + $0x48] sm:$0xff]
                %195 = vst [vmem:[%s189 + $0x18] sm:$0xff] %v194
                %v196 = vld [vmem:[%s188 + $0x6c] sm:$0xff]
                %197 = vst [vmem:[%s189 + $0x24] sm:$0xff] %v196
              $region37: #{fwd.5} parent=31 // loop_footer
                %s187 = sadd.s32 1, %s183
              $region38: #{fwd.5} parent=31 // loop_footer_branch
                %182 = sbr.rel target = $region34
              $region39: #{fwd.5} parent=31 // loop_exit
                _
              %s199 = ssub.s32 16, 1
              loop: start=0, step=1, limit=1
              $region40: #{fwd.5} parent=31 // loop_pre_header
                _
              $region41: #{fwd.5} parent=31 // loop_header
                %s201 = sphi 0, %s205
                %p202 = scmp.ge.s32.totalorder %s201, 1
                %s206 = sphi %s180, %s180
                %s207 = sphi %s181, %s181
              $region42: #{fwd.5} parent=31 // loop_header_branch
                %204 = sbr.rel (%p202) target = $region46
              $region43: #{fwd.5} parent=31 // loop_body
                %v208 = vld [vmem:[%s206] sm:%s199]
                %209 = vst [vmem:[%s207] sm:%s199] %v208
                %v210 = vld [vmem:[%s206 + $0x24] sm:%s199]
                %211 = vst [vmem:[%s207 + $0xc] sm:%s199] %v210
                %v212 = vld [vmem:[%s206 + $0x48] sm:%s199]
                %213 = vst [vmem:[%s207 + $0x18] sm:%s199] %v212
                %v214 = vld [vmem:[%s206 + $0x6c] sm:%s199]
                %215 = vst [vmem:[%s207 + $0x24] sm:%s199] %v214
              $region44: #{fwd.5} parent=31 // loop_footer
                %s205 = sadd.s32 1, %s201
              $region45: #{fwd.5} parent=31 // loop_footer_branch
                %200 = sbr.rel target = $region41
              $region46: #{fwd.5} parent=31 // loop_exit
                _
            $region32: #{fwd.5} parent=27 // pred_fallthru
              _
          $region28: #{fwd.5} parent=23 // pred_fallthru
            _
          %216 = vnop
        $region24: #{fwd.5} parent=19 // pred_fallthru
          _
        // Predicated region
        $region47: #{fwd.5} parent=19 // pred_check
          %p217 = pneg %p78
        $region48: #{fwd.5} parent=19 // pred_check_branch
          %219 = sbr.rel (%p217) target = $region50
        $region49: #{fwd.5} parent=19 // pred_region
          %s220 = smul.u32 48, %s18
          %p221 = scmp.lt.s32.totalorder %s220, 143
          %s222 = scalar_select %p221, %s220, 143
          %p223 = scmp.lt.s32.totalorder %s17, 0
          %s224 = scalar_select %p223, %s17, 0
          %s225 = sadd.s32 %s224, %s222
          %s226 = smul.addr %s225, 4
          %s227 = scalar_lea.vmem %s1, %s226
          %s228 = smul.u32 48, %s18
        $region50: #{fwd.5} parent=19 // pred_fallthru
          _
      $region20: #{fwd.5} parent=5 // pred_fallthru
        _
      %p229 = scmp.le.s32.totalorder 1, %s9
      %p230 = scmp.lt.s32.totalorder %s9, 4
      %p231 = pnand %p229, %p230
      %p232 = pneg %p231
      // Predicated region
      $region51: #{fwd.5} parent=5 // pred_check
        _
      $region52: #{fwd.5} parent=5 // pred_check_branch
        %234 = sbr.rel (%p231) target = $region54
      $region53: #{fwd.5} parent=5 // pred_region
        %s235 = ssub.s32 %s9, 1
        %s236 = sand.u32 %s43, 1
        %s237 = sand.u32 %s43, 1
        %s238 = smul.addr %s237, 48
        %s239 = scalar_lea.vmem [#allocation3], %s238
        // Predicated region
        $region55: #{fwd.5} parent=53 // pred_check
          %p240 = pneg %p56
        $region56: #{fwd.5} parent=53 // pred_check_branch
          %242 = sbr.rel (%p240) target = $region58
        $region57: #{fwd.5} parent=53 // pred_region
          _
        $region58: #{fwd.5} parent=53 // pred_fallthru
          _
        %s243 = sand.u32 %s43, 1
        %s244 = sand.u32 %s43, 1
        %s245 = smul.addr %s244, 48
        %s246 = scalar_lea.vmem [#allocation3], %s245
        %p247 = pneg %p56
        %p248 = pneg %p53
        %s249 = smul.u32 48, %s21
        %p250 = scmp.lt.s32.totalorder %s249, 143
        %s251 = scalar_select %p250, %s249, 143
        %p252 = scmp.lt.s32.totalorder %s20, 0
        %s253 = scalar_select %p252, %s20, 0
        %s254 = sadd.s32 %s253, %s251
        %s255 = smul.addr %s254, 4
        %s256 = scalar_lea.vmem %s1, %s255
        %p257 = pneg %p84
        %p258 = pneg %p81
        %p259 = scmp.lt.s32.totalorder %s20, 0
        %s260 = scalar_select %p259, %s20, 0
        %s261 = scalar_lea.vmem %s2, %s260
        %p262 = pneg %p110
        %p263 = pneg %p107
        %p264 = pneg %p138
        %p265 = pneg %p135
        %s266 = smul.u32 4, %s19
        %p267 = scmp.lt.s32.totalorder %s266, 3
        %s268 = scalar_select %p267, %s266, 3
        %p269 = scmp.lt.s32.totalorder %s20, 0
        %s270 = scalar_select %p269, %s20, 0
        %s271 = sadd.s32 %s270, %s268
        %s272 = smul.addr %s271, 4
        %s273 = scalar_lea.vmem %s3, %s272
        %s274 = smul.u32 4, %s19
        %s275 = smul.u32 3, %s21
        %s276 = smul.u32 48, %s21
        %p277 = scmp.lt.s32.totalorder %s276, 143
        %s278 = scalar_select %p277, %s276, 143
        %p279 = scmp.lt.s32.totalorder %s20, 0
        %s280 = scalar_select %p279, %s20, 0
        %s281 = sadd.s32 %s280, %s278
        %s282 = smul.addr %s281, 4
        %s283 = scalar_lea.vmem %s1, %s282
        %s284 = smul.u32 48, %s21
        %p285 = scmp.lt.s32.totalorder %s20, 0
        %s286 = scalar_select %p285, %s20, 0
        %s287 = scalar_lea.vmem %s2, %s286
        %s288 = smul.u32 4, %s19
        %p289 = scmp.lt.s32.totalorder %s288, 3
        %s290 = scalar_select %p289, %s288, 3
        %p291 = scmp.lt.s32.totalorder %s20, 0
        %s292 = scalar_select %p291, %s20, 0
        %s293 = sadd.s32 %s292, %s290
        %s294 = smul.addr %s293, 4
        %s295 = scalar_lea.vmem %s3, %s294
        %s296 = smul.u32 4, %s19
        %p297 = scmp.eq.s32.totalorder %s21, 0
        // Predicated region
        $region59: #{fwd.5} parent=53 // pred_check
          %p298 = pneg %p297
        $region60: #{fwd.5} parent=53 // pred_check_branch
          %300 = sbr.rel (%p298) target = $region62
        $region61: #{fwd.5} parent=53 // pred_region
          %301 = vst [vmem:[#allocation2] sm:$0xff] 0.0
          %302 = vst [vmem:[#allocation2 + $0x8] sm:$0xff] 0.0
          %303 = vst [vmem:[#allocation2 + $0x10] sm:$0xff] 0.0
          %304 = vst [vmem:[#allocation2 + $0x18] sm:$0xff] 0.0
        $region62: #{fwd.5} parent=53 // pred_fallthru
          _
        %v305 = vld [vmem:[#allocation2] sm:$0xff]
        %v306 = vld [vmem:[#allocation2 + $0x8] sm:$0xff]
        %v307 = vld [vmem:[#allocation2 + $0x10] sm:$0xff]
        %v308 = vld [vmem:[#allocation2 + $0x18] sm:$0xff]
        %v309 = vld [vmem:[%s239] sm:$0xff]
        %v310 = vld [vmem:[%s239 + $0x8] sm:$0xf]
        %v311 = vld [vmem:[%s239 + $0xc] sm:$0xff]
        %v312 = vld [vmem:[%s239 + $0x14] sm:$0xf]
        %v313 = vld [vmem:[%s239 + $0x18] sm:$0xff]
        %v314 = vld [vmem:[%s239 + $0x20] sm:$0xf]
        %v315 = vld [vmem:[%s239 + $0x24] sm:$0xff]
        %v316 = vld [vmem:[%s239 + $0x2c] sm:$0xf]
        %v317 = vld [vmem:[%s283] sm:$0xf]
        %v318 = vld [vmem:[%s283 + $0x4] sm:$0xf]
        %v319 = vld [vmem:[%s283 + $0x8] sm:$0xf]
        %v320 = vld [vmem:[%s283 + $0xc] sm:$0xf]
        %v321 = vld [vmem:[%s283 + $0x10] sm:$0xf]
        %v322 = vld [vmem:[%s283 + $0x14] sm:$0xf]
        %v323 = vld [vmem:[%s283 + $0x18] sm:$0xf]
        %v324 = vld [vmem:[%s283 + $0x1c] sm:$0xf]
        %v325 = vld [vmem:[%s283 + $0x20] sm:$0xf]
        %v326 = vld [vmem:[%s283 + $0x24] sm:$0xf]
        %v327 = vld [vmem:[%s283 + $0x28] sm:$0xf]
        %v328 = vld [vmem:[%s283 + $0x2c] sm:$0xf]
        %v329 = vld [vmem:[%s283 + $0x30] sm:$0xf]
        %v330 = vld [vmem:[%s283 + $0x34] sm:$0xf]
        %v331 = vld [vmem:[%s283 + $0x38] sm:$0xf]
        %v332 = vld [vmem:[%s283 + $0x3c] sm:$0xf]
        %v333 = vld [vmem:[%s283 + $0x40] sm:$0xf]
        %v334 = vld [vmem:[%s283 + $0x44] sm:$0xf]
        %v335 = vld [vmem:[%s283 + $0x48] sm:$0xf]
        %v336 = vld [vmem:[%s283 + $0x4c] sm:$0xf]
        %v337 = vld [vmem:[%s283 + $0x50] sm:$0xf]
        %v338 = vld [vmem:[%s283 + $0x54] sm:$0xf]
        %v339 = vld [vmem:[%s283 + $0x58] sm:$0xf]
        %v340 = vld [vmem:[%s283 + $0x5c] sm:$0xf]
        %v341 = vld [vmem:[%s283 + $0x60] sm:$0xf]
        %v342 = vld [vmem:[%s283 + $0x64] sm:$0xf]
        %v343 = vld [vmem:[%s283 + $0x68] sm:$0xf]
        %v344 = vld [vmem:[%s283 + $0x6c] sm:$0xf]
        %v345 = vld [vmem:[%s283 + $0x70] sm:$0xf]
        %v346 = vld [vmem:[%s283 + $0x74] sm:$0xf]
        %v347 = vld [vmem:[%s283 + $0x78] sm:$0xf]
        %v348 = vld [vmem:[%s283 + $0x7c] sm:$0xf]
        %v349 = vld [vmem:[%s283 + $0x80] sm:$0xf]
        %v350 = vld [vmem:[%s283 + $0x84] sm:$0xf]
        %v351 = vld [vmem:[%s283 + $0x88] sm:$0xf]
        %v352 = vld [vmem:[%s283 + $0x8c] sm:$0xf]
        %v353 = vld [vmem:[%s283 + $0x90] sm:$0xf]
        %v354 = vld [vmem:[%s283 + $0x94] sm:$0xf]
        %v355 = vld [vmem:[%s283 + $0x98] sm:$0xf]
        %v356 = vld [vmem:[%s283 + $0x9c] sm:$0xf]
        %v357 = vld [vmem:[%s283 + $0xa0] sm:$0xf]
        %v358 = vld [vmem:[%s283 + $0xa4] sm:$0xf]
        %v359 = vld [vmem:[%s283 + $0xa8] sm:$0xf]
        %v360 = vld [vmem:[%s283 + $0xac] sm:$0xf]
        %v361 = vld [vmem:[%s283 + $0xb0] sm:$0xf]
        %v362 = vld [vmem:[%s283 + $0xb4] sm:$0xf]
        %v363 = vld [vmem:[%s283 + $0xb8] sm:$0xf]
        %v364 = vld [vmem:[%s283 + $0xbc] sm:$0xf]
        %v373 = vunpack.c.l.b16 %v309
        %v374 = vunpack.c.h.b16 %v309
        %v375 = vunpack.c.l.b16 %v310
        %v376 = vunpack.c.l.b16 %v311
        %v377 = vunpack.c.h.b16 %v311
        %v378 = vunpack.c.l.b16 %v312
        %v379 = vunpack.c.l.b16 %v313
        %v380 = vunpack.c.h.b16 %v313
        %v381 = vunpack.c.l.b16 %v314
        %v382 = vunpack.c.l.b16 %v315
        %v383 = vunpack.c.h.b16 %v315
        %v384 = vunpack.c.l.b16 %v316
        %v385 = vpack.c.b16 %v376, %v373
        %v386 = vpack.c.b16 %v377, %v374
        %v387 = vpack.c.b16 %v378, %v375
        %v388 = vpack.c.b16 %v382, %v379
        %v389 = vpack.c.b16 %v383, %v380
        %v390 = vpack.c.b16 %v384, %v381
        %v445 = vunpack.c.l.b16 %v317
        %v446 = vunpack.c.l.b16 %v318
        %v447 = vunpack.c.l.b16 %v319
        %v448 = vunpack.c.l.b16 %v320
        %v449 = vunpack.c.l.b16 %v321
        %v450 = vunpack.c.l.b16 %v322
        %v451 = vunpack.c.l.b16 %v323
        %v452 = vunpack.c.l.b16 %v324
        %v453 = vunpack.c.l.b16 %v325
        %v454 = vunpack.c.l.b16 %v326
        %v455 = vunpack.c.l.b16 %v327
        %v456 = vunpack.c.l.b16 %v328
        %v457 = vunpack.c.l.b16 %v329
        %v458 = vunpack.c.l.b16 %v330
        %v459 = vunpack.c.l.b16 %v331
        %v460 = vunpack.c.l.b16 %v332
        %v461 = vunpack.c.l.b16 %v333
        %v462 = vunpack.c.l.b16 %v334
        %v463 = vunpack.c.l.b16 %v335
        %v464 = vunpack.c.l.b16 %v336
        %v465 = vunpack.c.l.b16 %v337
        %v466 = vunpack.c.l.b16 %v338
        %v467 = vunpack.c.l.b16 %v339
        %v468 = vunpack.c.l.b16 %v340
        %v469 = vunpack.c.l.b16 %v341
        %v470 = vunpack.c.l.b16 %v342
        %v471 = vunpack.c.l.b16 %v343
        %v472 = vunpack.c.l.b16 %v344
        %v473 = vunpack.c.l.b16 %v345
        %v474 = vunpack.c.l.b16 %v346
        %v475 = vunpack.c.l.b16 %v347
        %v476 = vunpack.c.l.b16 %v348
        %v477 = vunpack.c.l.b16 %v349
        %v478 = vunpack.c.l.b16 %v350
        %v479 = vunpack.c.l.b16 %v351
        %v480 = vunpack.c.l.b16 %v352
        %v481 = vunpack.c.l.b16 %v353
        %v482 = vunpack.c.l.b16 %v354
        %v483 = vunpack.c.l.b16 %v355
        %v484 = vunpack.c.l.b16 %v356
        %v485 = vunpack.c.l.b16 %v357
        %v486 = vunpack.c.l.b16 %v358
        %v487 = vunpack.c.l.b16 %v359
        %v488 = vunpack.c.l.b16 %v360
        %v489 = vunpack.c.l.b16 %v361
        %v490 = vunpack.c.l.b16 %v362
        %v491 = vunpack.c.l.b16 %v363
        %v492 = vunpack.c.l.b16 %v364
        %v493 = vpack.c.b16 %v446, %v445
        %v494 = vpack.c.b16 %v448, %v447
        %v495 = vpack.c.b16 %v450, %v449
        %v496 = vpack.c.b16 %v452, %v451
        %v497 = vpack.c.b16 %v454, %v453
        %v498 = vpack.c.b16 %v456, %v455
        %v499 = vpack.c.b16 %v458, %v457
        %v500 = vpack.c.b16 %v460, %v459
        %v501 = vpack.c.b16 %v462, %v461
        %v502 = vpack.c.b16 %v464, %v463
        %v503 = vpack.c.b16 %v466, %v465
        %v504 = vpack.c.b16 %v468, %v467
        %v505 = vpack.c.b16 %v470, %v469
        %v506 = vpack.c.b16 %v472, %v471
        %v507 = vpack.c.b16 %v474, %v473
        %v508 = vpack.c.b16 %v476, %v475
        %v509 = vpack.c.b16 %v478, %v477
        %v510 = vpack.c.b16 %v480, %v479
        %v511 = vpack.c.b16 %v482, %v481
        %v512 = vpack.c.b16 %v484, %v483
        %v513 = vpack.c.b16 %v486, %v485
        %v514 = vpack.c.b16 %v488, %v487
        %v515 = vpack.c.b16 %v490, %v489
        %v516 = vpack.c.b16 %v492, %v491
        %541 = vmatpush.bf16.msra.mxu0 %v500
        %542 = vmatpush.bf16.msra.mxu0 %v499
        %543 = vmatpush.bf16.msra.mxu0 %v498
        %544 = vmatpush.bf16.msra.mxu0 %v497
        %545 = vmatpush.bf16.msra.mxu0 %v496
        %546 = vmatpush.bf16.msra.mxu0 %v495
        %547 = vmatpush.bf16.msra.mxu0 %v494
        %548 = vmatpush.bf16.msra.mxu0 %v493
        %549 = vmatmul.bf16.gmra.mxu0 %v385
        %v550 = vpop.f32.mrf.mxu0
        %v551 = vadd.f32 0.0, %v550
        %v552 = vpop.f32.mrf.mxu0
        %v553 = vadd.f32 0.0, %v552
        %554 = vmatmul.bf16.gmra.mxu0 %v388
        %v555 = vpop.f32.mrf.mxu0
        %v556 = vadd.f32 0.0, %v555
        %v557 = vpop.f32.mrf.mxu0
        %v558 = vadd.f32 0.0, %v557
        %559 = vdwg.mxu0
        %560 = vmatpush.bf16.msra.mxu0 %v508
        %561 = vmatpush.bf16.msra.mxu0 %v507
        %562 = vmatpush.bf16.msra.mxu0 %v506
        %563 = vmatpush.bf16.msra.mxu0 %v505
        %564 = vmatpush.bf16.msra.mxu0 %v504
        %565 = vmatpush.bf16.msra.mxu0 %v503
        %566 = vmatpush.bf16.msra.mxu0 %v502
        %567 = vmatpush.bf16.msra.mxu0 %v501
        %568 = vmatmul.bf16.gmra.mxu0 %v386
        %v569 = vpop.f32.mrf.mxu0
        %v570 = vadd.f32 %v551, %v569
        %v571 = vpop.f32.mrf.mxu0
        %v572 = vadd.f32 %v553, %v571
        %573 = vmatmul.bf16.gmra.mxu0 %v389
        %v574 = vpop.f32.mrf.mxu0
        %v575 = vadd.f32 %v556, %v574
        %v576 = vpop.f32.mrf.mxu0
        %v577 = vadd.f32 %v558, %v576
        %578 = vdwg.mxu0
        %579 = vmatpush.bf16.msra.mxu0 %v516
        %580 = vmatpush.bf16.msra.mxu0 %v515
        %581 = vmatpush.bf16.msra.mxu0 %v514
        %582 = vmatpush.bf16.msra.mxu0 %v513
        %583 = vmatpush.bf16.msra.mxu0 %v512
        %584 = vmatpush.bf16.msra.mxu0 %v511
        %585 = vmatpush.bf16.msra.mxu0 %v510
        %586 = vmatpush.bf16.msra.mxu0 %v509
        %587 = vmatmul.bf16.gmra.mxu0 %v387
        %v588 = vpop.f32.mrf.mxu0
        %v589 = vadd.f32 %v570, %v588
        %v590 = vpop.f32.mrf.mxu0
        %v591 = vadd.f32 %v572, %v590
        %592 = vmatmul.bf16.gmra.mxu0 %v390
        %v593 = vpop.f32.mrf.mxu0
        %v594 = vadd.f32 %v575, %v593
        %v595 = vpop.f32.mrf.mxu0
        %v596 = vadd.f32 %v577, %v595
        %597 = vdwg.mxu0
        %v598 = vadd.f32 %v305, %v589
        %v599 = vadd.f32 %v306, %v591
        %v600 = vadd.f32 %v307, %v594
        %v601 = vadd.f32 %v308, %v596
        %602 = vst [vmem:[#allocation2] sm:$0xff] %v598
        %603 = vst [vmem:[#allocation2 + $0x8] sm:$0xff] %v599
        %604 = vst [vmem:[#allocation2 + $0x10] sm:$0xff] %v600
        %605 = vst [vmem:[#allocation2 + $0x18] sm:$0xff] %v601
        %p606 = scmp.eq.s32.totalorder %s21, 2
        // Predicated region
        $region63: #{fwd.5} parent=53 // pred_check
          %p607 = pneg %p606
        $region64: #{fwd.5} parent=53 // pred_check_branch
          %609 = sbr.rel (%p607) target = $region66
        $region65: #{fwd.5} parent=53 // pred_region
          %v610 = vld [vmem:[#allocation2] sm:$0xff]
          %v611 = vld [vmem:[#allocation2 + $0x8] sm:$0xff]
          %v612 = vld [vmem:[#allocation2 + $0x10] sm:$0xff]
          %v613 = vld [vmem:[#allocation2 + $0x18] sm:$0xff]
          %v614 = vld [vmem:[%s287] sm:$0x1]
          %v616 = vperm.slane %v614, 0
          %v618 = vadd.f32 %v610, %v616
          %v619 = vadd.f32 %v611, %v616
          %v620 = vadd.f32 %v612, %v616
          %v621 = vadd.f32 %v613, %v616
          %vm622 = vcmp.gt.f32.partialorder %v618, 0.0
          %vm623 = vcmp.gt.f32.partialorder %v619, 0.0
          %vm624 = vcmp.gt.f32.partialorder %v620, 0.0
          %vm625 = vcmp.gt.f32.partialorder %v621, 0.0
          %v626 = vmul.f32 %v618, 0.01
          %v627 = vmul.f32 %v619, 0.01
          %v628 = vmul.f32 %v620, 0.01
          %v629 = vmul.f32 %v621, 0.01
          %v630 = vsel %vm622, %v618, %v626
          %v631 = vsel %vm623, %v619, %v627
          %v632 = vsel %vm624, %v620, %v628
          %v633 = vsel %vm625, %v621, %v629
          %v634 = vpack.c.bf16 %v630, %v630
          %v635 = vpack.c.bf16 %v631, %v631
          %v636 = vpack.c.bf16 %v632, %v632
          %v637 = vpack.c.bf16 %v633, %v633
          %638 = vst [vmem:[%s295] sm:$0xf] %v634
          %639 = vst [vmem:[%s295 + $0x4] sm:$0xf] %v635
          %640 = vst [vmem:[%s295 + $0x8] sm:$0xf] %v636
          %641 = vst [vmem:[%s295 + $0xc] sm:$0xf] %v637
        $region66: #{fwd.5} parent=53 // pred_fallthru
          _
        %s642 = smul.u32 4, %s19
        %p643 = scmp.lt.s32.totalorder %s642, 3
        %s644 = scalar_select %p643, %s642, 3
        %p645 = scmp.lt.s32.totalorder %s20, 0
        %s646 = scalar_select %p645, %s20, 0
        %s647 = sadd.s32 %s646, %s644
        %s648 = smul.addr %s647, 4
        %s649 = scalar_lea.vmem %s3, %s648
        // Predicated region
        $region67: #{fwd.5} parent=53 // pred_check
          %p650 = pneg %p135
        $region68: #{fwd.5} parent=53 // pred_check_branch
          %652 = sbr.rel (%p650) target = $region70
        $region69: #{fwd.5} parent=53 // pred_region
          %s653 = smul.u32 4, %s19
        $region70: #{fwd.5} parent=53 // pred_fallthru
          _
        // Predicated region
        $region71: #{fwd.5} parent=53 // pred_check
          %p654 = pneg %p135
        $region72: #{fwd.5} parent=53 // pred_check_branch
          %656 = sbr.rel (%p654) target = $region74
        $region73: #{fwd.5} parent=53 // pred_region
          %s657 = smul.u32 4, %s19
          %p658 = scmp.lt.s32.totalorder %s657, 3
          %s659 = scalar_select %p658, %s657, 3
          %p660 = scmp.lt.s32.totalorder %s20, 0
          %s661 = scalar_select %p660, %s20, 0
          %s662 = sadd.s32 %s661, %s659
          %s663 = smul.addr %s662, 4
          %s664 = scalar_lea.vmem %s3, %s663
        $region74: #{fwd.5} parent=53 // pred_fallthru
          _
      $region54: #{fwd.5} parent=5 // pred_fallthru
        _
      %p665 = scmp.le.s32.totalorder 2, %s9
      // Predicated region
      $region75: #{fwd.5} parent=5 // pred_check
        %p666 = pneg %p665
      $region76: #{fwd.5} parent=5 // pred_check_branch
        %668 = sbr.rel (%p666) target = $region78
      $region77: #{fwd.5} parent=5 // pred_region
        %s669 = ssub.s32 %s9, 2
      $region78: #{fwd.5} parent=5 // pred_fallthru
        _
    $region6: #{fwd.5} parent=1 // loop_footer
      %s13 = sadd.s32 1, %s9
    $region7: #{fwd.5} parent=1 // loop_footer_branch
      %8 = sbr.rel target = $region3
    $region8: #{fwd.5} parent=1 // loop_exit
      _

// kernel: fwd.4
$region0: #{fwd.4}
  #allocation0 [shape = 'u32[]', space=smem, size = 0x4, offset = 0x4, fixed_abs, tag = 'smem constant byte address 0x4 - core index']
  #allocation1 [shape = 'u32[72,128]{1,0:T(1,128)}', space=vmem, size = 0x9000, scoped, tag = 'internal scratch']
  #allocation2 [shape = 'f32[128,128]{1,0:T(8,128)}', space=vmem, size = 0x10000, scoped, tag = 'scratch operand']
  %s0 = inlined_call_operand.vmem [shape: bf16[4,9,2,9,4], index: 0, kind: input, shape index: {}]
  %s1 = inlined_call_operand.vmem [shape: bf16[3,3,4,128], index: 1, kind: input, shape index: {}]
  %s2 = inlined_call_operand.vmem [shape: f32[1,128], index: 2, kind: input, shape index: {}]
  %s3 = inlined_call_operand.vmem [shape: bf16[2,64,128], index: 3, kind: output, shape index: {}]
  %s4 = sld [smem:[#allocation0]]
  $region53: #{fwd.4} parent=0
    _
  %s6 = ssub.s32 1, %s4
  %s7 = scalar_select 0, %s6, %s4
  loop: start=0, step=1, limit=4
  $region2: #{fwd.4} parent=0 // loop_pre_header
    _
  $region3: #{fwd.4} parent=0 // loop_header
    %s9 = sphi 0, %s13
    %p10 = scmp.ge.s32.totalorder %s9, 4
    %s16 = sphi 0, %s28
    %s17 = sphi 0, %s24
    %s18 = sphi 0, %s16
    %s19 = sphi 0, %s17
    %s20 = sphi 0, %s18
    %s21 = sphi 0, %s19
    %s33 = sphi 0, %s35
    %s36 = sphi 0, %s33
    %s37 = sphi 0, %s36
    %s53 = sphi 0, %s37
    %s57 = sphi 0, %s57
    %s59 = sphi 0, %s57
    %s60 = sphi 0, %s59
    %s74 = sphi 0, %s60
    %s78 = sphi 0, %s78
    %s80 = sphi 0, %s78
    %s81 = sphi 0, %s80
    %s95 = sphi 0, %s81
    %s101 = sphi 0, %s103
    %s104 = sphi 0, %s101
    %s105 = sphi 0, %s104
    %s121 = sphi 0, %s105
  $region4: #{fwd.4} parent=0 // loop_header_branch
    %12 = sbr.rel (%p10) target = $region8
  $region5: #{fwd.4} parent=0 // loop_body
    %s14 = ssub.s32 %s9, 1
    %s15 = ssub.s32 %s9, 2
    %s22 = sadd.s32 1, %s17
    %p23 = scmp.ge.s32.totalorder %s22, 2
    %s24 = scalar_select %p23, 0, %s22
    %s25 = sadd.s32 1, %s16
    %s26 = scalar_select %p23, %s25, %s16
    %p27 = scmp.ge.s32.totalorder %s26, 1
    %s28 = scalar_select %p27, 0, %s26
    %s29 = sadd.s32 %s17, %s16
    %s30 = sadd.s32 %s24, %s28
    %s31 = ssub.s32 %s29, %s30
    %p32 = scmp.eq.s32.totalorder %s31, 0
    %s34 = sadd.s32 %s33, 1
    %s35 = scalar_select %p32, %s33, %s34
    %p38 = pneg %p32
    %p39 = scmp.eq.s32.totalorder %s9, 1
    %p40 = por %p38, %p39
    %p41 = scmp.ne.s32.totalorder %s33, %s36
    %p42 = scmp.eq.s32.totalorder %s9, 0
    %p43 = por %p41, %p42
    %p44 = scmp.ne.s32.totalorder %s33, %s36
    %p45 = scmp.eq.s32.totalorder %s14, 1
    %p46 = por %p44, %p45
    %p47 = scmp.ne.s32.totalorder %s36, %s37
    %p48 = scmp.eq.s32.totalorder %s14, 0
    %p49 = por %p47, %p48
    %p50 = scmp.ne.s32.totalorder %s36, %s37
    %p51 = scmp.eq.s32.totalorder %s15, 1
    %p52 = por %p50, %p51
    %p54 = scmp.ne.s32.totalorder %s37, %s53
    %p55 = scmp.eq.s32.totalorder %s15, 0
    %p56 = por %p54, %p55
    %s58 = sadd.s32 %s57, 1
    %p61 = scmp.eq.s32.totalorder %s9, 1
    %p62 = scmp.ne.s32.totalorder %s57, %s59
    %p63 = scmp.eq.s32.totalorder %s9, 0
    %p64 = por %p62, %p63
    %p65 = scmp.ne.s32.totalorder %s57, %s59
    %p66 = scmp.eq.s32.totalorder %s14, 1
    %p67 = por %p65, %p66
    %p68 = scmp.ne.s32.totalorder %s59, %s60
    %p69 = scmp.eq.s32.totalorder %s14, 0
    %p70 = por %p68, %p69
    %p71 = scmp.ne.s32.totalorder %s59, %s60
    %p72 = scmp.eq.s32.totalorder %s15, 1
    %p73 = por %p71, %p72
    %p75 = scmp.ne.s32.totalorder %s60, %s74
    %p76 = scmp.eq.s32.totalorder %s15, 0
    %p77 = por %p75, %p76
    %s79 = sadd.s32 %s78, 1
    %p82 = scmp.eq.s32.totalorder %s9, 1
    %p83 = scmp.ne.s32.totalorder %s78, %s80
    %p84 = scmp.eq.s32.totalorder %s9, 0
    %p85 = por %p83, %p84
    %p86 = scmp.ne.s32.totalorder %s78, %s80
    %p87 = scmp.eq.s32.totalorder %s14, 1
    %p88 = por %p86, %p87
    %p89 = scmp.ne.s32.totalorder %s80, %s81
    %p90 = scmp.eq.s32.totalorder %s14, 0
    %p91 = por %p89, %p90
    %p92 = scmp.ne.s32.totalorder %s80, %s81
    %p93 = scmp.eq.s32.totalorder %s15, 1
    %p94 = por %p92, %p93
    %p96 = scmp.ne.s32.totalorder %s81, %s95
    %p97 = scmp.eq.s32.totalorder %s15, 0
    %p98 = por %p96, %p97
    %s99 = ssub.s32 %s16, %s28
    %p100 = scmp.eq.s32.totalorder %s99, 0
    %s102 = sadd.s32 %s101, 1
    %s103 = scalar_select %p100, %s101, %s102
    %p106 = pneg %p100
    %p107 = scmp.eq.s32.totalorder %s9, 1
    %p108 = por %p106, %p107
    %p109 = scmp.ne.s32.totalorder %s101, %s104
    %p110 = scmp.eq.s32.totalorder %s9, 0
    %p111 = por %p109, %p110
    %p112 = scmp.ne.s32.totalorder %s101, %s104
    %p113 = scmp.eq.s32.totalorder %s14, 1
    %p114 = por %p112, %p113
    %p115 = scmp.ne.s32.totalorder %s104, %s105
    %p116 = scmp.eq.s32.totalorder %s14, 0
    %p117 = por %p115, %p116
    %p118 = scmp.ne.s32.totalorder %s104, %s105
    %p119 = scmp.eq.s32.totalorder %s15, 1
    %p120 = por %p118, %p119
    %p122 = scmp.ne.s32.totalorder %s105, %s121
    %p123 = scmp.eq.s32.totalorder %s15, 0
    %p124 = por %p122, %p123
    %p125 = scmp.le.s32.totalorder 1, %s9
    %p126 = scmp.lt.s32.totalorder %s9, 3
    %p127 = pnand %p125, %p126
    %p128 = pneg %p127
    // Predicated region
    $region9: #{fwd.4} parent=5 // pred_check
      _
    $region10: #{fwd.4} parent=5 // pred_check_branch
      %130 = sbr.rel (%p127) target = $region12
    $region11: #{fwd.4} parent=5 // pred_region
      %s131 = ssub.s32 %s9, 1
      // Predicated region
      $region13: #{fwd.4} parent=11 // pred_check
        %p132 = pneg %p70
      $region14: #{fwd.4} parent=11 // pred_check_branch
        %134 = sbr.rel (%p132) target = $region16
      $region15: #{fwd.4} parent=11 // pred_region
        _
      $region16: #{fwd.4} parent=11 // pred_fallthru
        _
      // Predicated region
      $region17: #{fwd.4} parent=11 // pred_check
        %p135 = pneg %p91
      $region18: #{fwd.4} parent=11 // pred_check_branch
        %137 = sbr.rel (%p135) target = $region20
      $region19: #{fwd.4} parent=11 // pred_region
        _
      $region20: #{fwd.4} parent=11 // pred_fallthru
        _
    $region12: #{fwd.4} parent=5 // pred_fallthru
      _
    %p138 = scmp.lt.s32.totalorder %s9, 2
    // Predicated region
    $region21: #{fwd.4} parent=5 // pred_check
      %p139 = pneg %p138
    $region22: #{fwd.4} parent=5 // pred_check_branch
      %141 = sbr.rel (%p139) target = $region24
    $region23: #{fwd.4} parent=5 // pred_region
      // Predicated region
      $region25: #{fwd.4} parent=23 // pred_check
        %p142 = pneg %p43
      $region26: #{fwd.4} parent=23 // pred_check_branch
        %144 = sbr.rel (%p142) target = $region28
      $region27: #{fwd.4} parent=23 // pred_region
        %s145 = sadd.s32 %s17, %s16
        %s146 = smul.u32 2, %s145
        %p147 = scmp.lt.s32.totalorder %s146, 3
        %s148 = scalar_select %p147, %s146, 3
        %s149 = smul.addr %s148, 36
        %s150 = smul.addr %s149, 4
        %s151 = scalar_lea.vmem %s0, %s150
        %s152 = sadd.s32 %s17, %s16
        %s153 = smul.u32 2, %s152
      $region28: #{fwd.4} parent=23 // pred_fallthru
        _
    $region24: #{fwd.4} parent=5 // pred_fallthru
      _
    %p154 = scmp.le.s32.totalorder 1, %s9
    %p155 = scmp.lt.s32.totalorder %s9, 3
    %p156 = pnand %p154, %p155
    %p157 = pneg %p156
    // Predicated region
    $region29: #{fwd.4} parent=5 // pred_check
      _
    $region30: #{fwd.4} parent=5 // pred_check_branch
      %159 = sbr.rel (%p156) target = $region32
    $region31: #{fwd.4} parent=5 // pred_region
      %s160 = ssub.s32 %s9, 1
      %s161 = sadd.s32 %s19, %s18
      %s162 = smul.u32 2, %s161
      %p163 = scmp.lt.s32.totalorder %s162, 3
      %s164 = scalar_select %p163, %s162, 3
      %s165 = smul.addr %s164, 36
      %s166 = smul.addr %s165, 4
      %s167 = scalar_lea.vmem %s0, %s166
      %p168 = pneg %p49
      %p169 = pneg %p46
      %p170 = pneg %p70
      %p171 = pneg %p67
      %p172 = pneg %p91
      %p173 = pneg %p88
      %p174 = pneg %p117
      %p175 = pneg %p114
      %s176 = smul.u32 2, %s18
      %p177 = scmp.lt.s32.totalorder %s176, 1
      %s178 = scalar_select %p177, %s176, 1
      %s179 = smul.addr %s178, 8
      %s180 = smul.addr %s179, 4
      %s181 = scalar_lea.vmem %s3, %s180
      %s182 = sadd.s32 %s19, %s18
      %s183 = smul.u32 2, %s182
      %p184 = scmp.lt.s32.totalorder %s183, 3
      %s185 = scalar_select %p184, %s183, 3
      %s186 = smul.addr %s185, 36
      %s187 = smul.addr %s186, 4
      %s188 = scalar_lea.vmem %s0, %s187
      %s189 = sadd.s32 %s19, %s18
      %s190 = smul.u32 2, %s189
      %s191 = smul.u32 2, %s18
      %p192 = scmp.lt.s32.totalorder %s191, 1
      %s193 = scalar_select %p192, %s191, 1
      %s194 = smul.addr %s193, 8
      %s195 = smul.addr %s194, 4
      %s196 = scalar_lea.vmem %s3, %s195
      %s197 = smul.u32 2, %s18
      %p199 = scmp.eq.s32.totalorder %s19, 0
      // Predicated region
      $region33: #{fwd.4} parent=31 // pred_check
        %p200 = pneg %p199
      $region34: #{fwd.4} parent=31 // pred_check_branch
        %202 = sbr.rel (%p200) target = $region36
      $region35: #{fwd.4} parent=31 // pred_region
        %v203 = vld [vmem:[%s188] sm:$0xf]
        %v204 = vld [vmem:[%s188 + $0x10] sm:$0xf]
        %v205 = vld [vmem:[%s188 + $0x20] sm:$0xf]
        %v206 = vld [vmem:[%s188 + $0x30] sm:$0xf]
        %v207 = vld [vmem:[%s188 + $0x40] sm:$0xf]
        %v208 = vld [vmem:[%s188 + $0x50] sm:$0xf]
        %v209 = vld [vmem:[%s188 + $0x60] sm:$0xf]
        %v210 = vld [vmem:[%s188 + $0x70] sm:$0xf]
        %v211 = vld [vmem:[%s188 + $0x90] sm:$0xf]
        %v212 = vld [vmem:[%s188 + $0xa0] sm:$0xf]
        %v213 = vld [vmem:[%s188 + $0xb0] sm:$0xf]
        %v214 = vld [vmem:[%s188 + $0xc0] sm:$0xf]
        %v215 = vld [vmem:[%s188 + $0xd0] sm:$0xf]
        %v216 = vld [vmem:[%s188 + $0xe0] sm:$0xf]
        %v217 = vld [vmem:[%s188 + $0xf0] sm:$0xf]
        %v218 = vld [vmem:[%s188 + $0x100] sm:$0xf]
        %v219 = vld [vmem:[%s1] sm:$0x3]
        %s220 = scalar_lea.vmem %s188, 8
        %v221 = vld [vmem:[%s220] sm:$0xf]
        %v222 = vld [vmem:[%s220 + $0x10] sm:$0xf]
        %v223 = vld [vmem:[%s220 + $0x20] sm:$0xf]
        %v224 = vld [vmem:[%s220 + $0x30] sm:$0xf]
        %v225 = vld [vmem:[%s220 + $0x40] sm:$0xf]
        %v226 = vld [vmem:[%s220 + $0x50] sm:$0xf]
        %v227 = vld [vmem:[%s220 + $0x60] sm:$0xf]
        %v228 = vld [vmem:[%s220 + $0x70] sm:$0xf]
        %v229 = vld [vmem:[%s220 + $0x90] sm:$0xf]
        %v230 = vld [vmem:[%s220 + $0xa0] sm:$0xf]
        %v231 = vld [vmem:[%s220 + $0xb0] sm:$0xf]
        %v232 = vld [vmem:[%s220 + $0xc0] sm:$0xf]
        %v233 = vld [vmem:[%s220 + $0xd0] sm:$0xf]
        %v234 = vld [vmem:[%s220 + $0xe0] sm:$0xf]
        %v235 = vld [vmem:[%s220 + $0xf0] sm:$0xf]
        %v236 = vld [vmem:[%s220 + $0x100] sm:$0xf]
        %s237 = scalar_lea.vmem %s1, 2
        %v238 = vld [vmem:[%s237] sm:$0x3]
        %v255 = vunpack.c.l.b16 %v221
        %v256 = vunpack.c.l.b16 %v222
        %v257 = vunpack.c.l.b16 %v223
        %v258 = vunpack.c.l.b16 %v224
        %v259 = vunpack.c.l.b16 %v225
        %v260 = vunpack.c.l.b16 %v226
        %v261 = vunpack.c.l.b16 %v227
        %v262 = vunpack.c.l.b16 %v228
        %v263 = vunpack.c.l.b16 %v229
        %v264 = vunpack.c.l.b16 %v230
        %v265 = vunpack.c.l.b16 %v231
        %v266 = vunpack.c.l.b16 %v232
        %v267 = vunpack.c.l.b16 %v233
        %v268 = vunpack.c.l.b16 %v234
        %v269 = vunpack.c.l.b16 %v235
        %v270 = vunpack.c.l.b16 %v236
        %v271 = vpack.c.b16 %v256, %v255
        %v272 = vpack.c.b16 %v258, %v257
        %v273 = vpack.c.b16 %v260, %v259
        %v274 = vpack.c.b16 %v262, %v261
        %v275 = vpack.c.b16 %v264, %v263
        %v276 = vpack.c.b16 %v266, %v265
        %v277 = vpack.c.b16 %v268, %v267
        %v278 = vpack.c.b16 %v270, %v269
        %vm279 = vcmask 31744
        %v281 = vsel %vm279, %v271, 0
        %v284 = vsel %vm279, %v272, 0
        %v287 = vsel %vm279, %v273, 0
        %v290 = vsel %vm279, %v274, 0
        %v293 = vsel %vm279, %v275, 0
        %v296 = vsel %vm279, %v276, 0
        %v299 = vsel %vm279, %v277, 0
        %v302 = vsel %vm279, %v278, 0
        %vm304 = vcmask 1041408
        %v306 = vsel %vm304, %v238, 0
        %308 = vmatpush.bf16.msra.mxu0 0
        %309 = vmatpush.bf16.msra.mxu0 0
        %310 = vmatpush.bf16.msra.mxu0 0
        %311 = vmatpush.bf16.msra.mxu0 0
        %312 = vmatpush.bf16.msra.mxu0 0
        %313 = vmatpush.bf16.msra.mxu0 0
        %314 = vmatpush.bf16.msra.mxu0 0
        %315 = vmatpush.bf16.msra.mxu0 %v306
        %316 = vmatmul.bf16.gmra.mxu0 %v281
        %v317 = vpop.f32.mrf.mxu0
        %v318 = vadd.f32 0.0, %v317
        %v319 = vpop.f32.mrf.mxu0
        %v320 = vadd.f32 0.0, %v319
        %321 = vmatmul.bf16.gmra.mxu0 %v284
        %v322 = vpop.f32.mrf.mxu0
        %v323 = vadd.f32 0.0, %v322
        %v324 = vpop.f32.mrf.mxu0
        %v325 = vadd.f32 0.0, %v324
        %326 = vmatmul.bf16.gmra.mxu0 %v287
        %v327 = vpop.f32.mrf.mxu0
        %v328 = vadd.f32 0.0, %v327
        %v329 = vpop.f32.mrf.mxu0
        %v330 = vadd.f32 0.0, %v329
        %331 = vmatmul.bf16.gmra.mxu0 %v290
        %v332 = vpop.f32.mrf.mxu0
        %v333 = vadd.f32 0.0, %v332
        %v334 = vpop.f32.mrf.mxu0
        %v335 = vadd.f32 0.0, %v334
        %336 = vmatmul.bf16.gmra.mxu0 %v293
        %v337 = vpop.f32.mrf.mxu0
        %v338 = vadd.f32 0.0, %v337
        %v339 = vpop.f32.mrf.mxu0
        %v340 = vadd.f32 0.0, %v339
        %341 = vmatmul.bf16.gmra.mxu0 %v296
        %v342 = vpop.f32.mrf.mxu0
        %v343 = vadd.f32 0.0, %v342
        %v344 = vpop.f32.mrf.mxu0
        %v345 = vadd.f32 0.0, %v344
        %346 = vmatmul.bf16.gmra.mxu0 %v299
        %v347 = vpop.f32.mrf.mxu0
        %v348 = vadd.f32 0.0, %v347
        %v349 = vpop.f32.mrf.mxu0
        %v350 = vadd.f32 0.0, %v349
        %351 = vmatmul.bf16.gmra.mxu0 %v302
        %v352 = vpop.f32.mrf.mxu0
        %v353 = vadd.f32 0.0, %v352
        %v354 = vpop.f32.mrf.mxu0
        %v355 = vadd.f32 0.0, %v354
        %356 = vdwg.mxu0
        %v373 = vunpack.c.l.b16 %v203
        %v374 = vunpack.c.l.b16 %v204
        %v375 = vunpack.c.l.b16 %v205
        %v376 = vunpack.c.l.b16 %v206
        %v377 = vunpack.c.l.b16 %v207
        %v378 = vunpack.c.l.b16 %v208
        %v379 = vunpack.c.l.b16 %v209
        %v380 = vunpack.c.l.b16 %v210
        %v381 = vunpack.c.l.b16 %v211
        %v382 = vunpack.c.l.b16 %v212
        %v383 = vunpack.c.l.b16 %v213
        %v384 = vunpack.c.l.b16 %v214
        %v385 = vunpack.c.l.b16 %v215
        %v386 = vunpack.c.l.b16 %v216
        %v387 = vunpack.c.l.b16 %v217
        %v388 = vunpack.c.l.b16 %v218
        %v389 = vpack.c.b16 %v374, %v373
        %v390 = vpack.c.b16 %v376, %v375
        %v391 = vpack.c.b16 %v378, %v377
        %v392 = vpack.c.b16 %v380, %v379
        %v393 = vpack.c.b16 %v382, %v381
        %v394 = vpack.c.b16 %v384, %v383
        %v395 = vpack.c.b16 %v386, %v385
        %v396 = vpack.c.b16 %v388, %v387
        %v398 = vsel %vm279, %v389, 0
        %v401 = vsel %vm279, %v390, 0
        %v404 = vsel %vm279, %v391, 0
        %v407 = vsel %vm279, %v392, 0
        %v410 = vsel %vm279, %v393, 0
        %v413 = vsel %vm279, %v394, 0
        %v416 = vsel %vm279, %v395, 0
        %v419 = vsel %vm279, %v396, 0
        %v422 = vsel %vm304, %v219, 0
        %424 = vmatpush.bf16.msra.mxu0 0
        %425 = vmatpush.bf16.msra.mxu0 0
        %426 = vmatpush.bf16.msra.mxu0 0
        %427 = vmatpush.bf16.msra.mxu0 0
        %428 = vmatpush.bf16.msra.mxu0 0
        %429 = vmatpush.bf16.msra.mxu0 0
        %430 = vmatpush.bf16.msra.mxu0 0
        %431 = vmatpush.bf16.msra.mxu0 %v422
        %432 = vmatmul.bf16.gmra.mxu0 %v398
        %v433 = vpop.f32.mrf.mxu0
        %v434 = vadd.f32 %v318, %v433
        %v435 = vpop.f32.mrf.mxu0
        %v436 = vadd.f32 %v320, %v435
        %437 = vmatmul.bf16.gmra.mxu0 %v401
        %v438 = vpop.f32.mrf.mxu0
        %v439 = vadd.f32 %v323, %v438
        %v440 = vpop.f32.mrf.mxu0
        %v441 = vadd.f32 %v325, %v440
        %442 = vmatmul.bf16.gmra.mxu0 %v404
        %v443 = vpop.f32.mrf.mxu0
        %v444 = vadd.f32 %v328, %v443
        %v445 = vpop.f32.mrf.mxu0
        %v446 = vadd.f32 %v330, %v445
        %447 = vmatmul.bf16.gmra.mxu0 %v407
        %v448 = vpop.f32.mrf.mxu0
        %v449 = vadd.f32 %v333, %v448
        %v450 = vpop.f32.mrf.mxu0
        %v451 = vadd.f32 %v335, %v450
        %452 = vmatmul.bf16.gmra.mxu0 %v410
        %v453 = vpop.f32.mrf.mxu0
        %v454 = vadd.f32 %v338, %v453
        %v455 = vpop.f32.mrf.mxu0
        %v456 = vadd.f32 %v340, %v455
        %457 = vmatmul.bf16.gmra.mxu0 %v413
        %v458 = vpop.f32.mrf.mxu0
        %v459 = vadd.f32 %v343, %v458
        %v460 = vpop.f32.mrf.mxu0
        %v461 = vadd.f32 %v345, %v460
        %462 = vmatmul.bf16.gmra.mxu0 %v416
        %v463 = vpop.f32.mrf.mxu0
        %v464 = vadd.f32 %v348, %v463
        %v465 = vpop.f32.mrf.mxu0
        %v466 = vadd.f32 %v350, %v465
        %467 = vmatmul.bf16.gmra.mxu0 %v419
        %v468 = vpop.f32.mrf.mxu0
        %v469 = vadd.f32 %v353, %v468
        %v470 = vpop.f32.mrf.mxu0
        %v471 = vadd.f32 %v355, %v470
        %472 = vdwg.mxu0
        %v473 = vld [vmem:[%s188] sm:$0xf]
        %v474 = vld [vmem:[%s188 + $0x4] sm:$0x1]
        %v475 = vld [vmem:[%s188 + $0x10] sm:$0xf]
        %v476 = vld [vmem:[%s188 + $0x14] sm:$0x1]
        %v477 = vld [vmem:[%s188 + $0x20] sm:$0xf]
        %v478 = vld [vmem:[%s188 + $0x24] sm:$0x1]
        %v479 = vld [vmem:[%s188 + $0x30] sm:$0xf]
        %v480 = vld [vmem:[%s188 + $0x34] sm:$0x1]
        %v481 = vld [vmem:[%s188 + $0x40] sm:$0xf]
        %v482 = vld [vmem:[%s188 + $0x44] sm:$0x1]
        %v483 = vld [vmem:[%s188 + $0x50] sm:$0xf]
        %v484 = vld [vmem:[%s188 + $0x54] sm:$0x1]
        %v485 = vld [vmem:[%s188 + $0x60] sm:$0xf]
        %v486 = vld [vmem:[%s188 + $0x64] sm:$0x1]
        %v487 = vld [vmem:[%s188 + $0x70] sm:$0xf]
        %v488 = vld [vmem:[%s188 + $0x74] sm:$0x1]
        %v489 = vld [vmem:[%s188 + $0x90] sm:$0xf]
        %v490 = vld [vmem:[%s188 + $0x94] sm:$0x1]
        %v491 = vld [vmem:[%s188 + $0xa0] sm:$0xf]
        %v492 = vld [vmem:[%s188 + $0xa4] sm:$0x1]
        %v493 = vld [vmem:[%s188 + $0xb0] sm:$0xf]
        %v494 = vld [vmem:[%s188 + $0xb4] sm:$0x1]
        %v495 = vld [vmem:[%s188 + $0xc0] sm:$0xf]
        %v496 = vld [vmem:[%s188 + $0xc4] sm:$0x1]
        %v497 = vld [vmem:[%s188 + $0xd0] sm:$0xf]
        %v498 = vld [vmem:[%s188 + $0xd4] sm:$0x1]
        %v499 = vld [vmem:[%s188 + $0xe0] sm:$0xf]
        %v500 = vld [vmem:[%s188 + $0xe4] sm:$0x1]
        %v501 = vld [vmem:[%s188 + $0xf0] sm:$0xf]
        %v502 = vld [vmem:[%s188 + $0xf4] sm:$0x1]
        %v503 = vld [vmem:[%s188 + $0x100] sm:$0xf]
        %v504 = vld [vmem:[%s188 + $0x104] sm:$0x1]
        %vm505 = vsmask.f32 3328
        %vm506 = vsmask.f32 7440
        %vm507 = vmor %vm505, %vm506
        %v509 = vshrl.u32 %v473, 16
        %v511 = vrot.slane %v509, 4
        %v512 = vshll.u32 %v473, 16
        %v514 = vrot.slane %v512, 5
        %v515 = vor.u32 %v511, %v514
        %v516 = vrot.slane %v515, 4
        %v518 = vshll.u32 %v474, 16
        %v520 = vrot.slane %v518, 5
        %v521 = vsel %vm507, %v516, %v520
        %v523 = vshrl.u32 %v475, 16
        %v525 = vrot.slane %v523, 4
        %v526 = vshll.u32 %v475, 16
        %v528 = vrot.slane %v526, 5
        %v529 = vor.u32 %v525, %v528
        %v530 = vrot.slane %v529, 4
        %v532 = vshll.u32 %v476, 16
        %v534 = vrot.slane %v532, 5
        %v535 = vsel %vm507, %v530, %v534
        %v537 = vshrl.u32 %v477, 16
        %v539 = vrot.slane %v537, 4
        %v540 = vshll.u32 %v477, 16
        %v542 = vrot.slane %v540, 5
        %v543 = vor.u32 %v539, %v542
        %v544 = vrot.slane %v543, 4
        %v546 = vshll.u32 %v478, 16
        %v548 = vrot.slane %v546, 5
        %v549 = vsel %vm507, %v544, %v548
        %v551 = vshrl.u32 %v479, 16
        %v553 = vrot.slane %v551, 4
        %v554 = vshll.u32 %v479, 16
        %v556 = vrot.slane %v554, 5
        %v557 = vor.u32 %v553, %v556
        %v558 = vrot.slane %v557, 4
        %v560 = vshll.u32 %v480, 16
        %v562 = vrot.slane %v560, 5
        %v563 = vsel %vm507, %v558, %v562
        %v565 = vshrl.u32 %v481, 16
        %v567 = vrot.slane %v565, 4
        %v568 = vshll.u32 %v481, 16
        %v570 = vrot.slane %v568, 5
        %v571 = vor.u32 %v567, %v570
        %v572 = vrot.slane %v571, 4
        %v574 = vshll.u32 %v482, 16
        %v576 = vrot.slane %v574, 5
        %v577 = vsel %vm507, %v572, %v576
        %v579 = vshrl.u32 %v483, 16
        %v581 = vrot.slane %v579, 4
        %v582 = vshll.u32 %v483, 16
        %v584 = vrot.slane %v582, 5
        %v585 = vor.u32 %v581, %v584
        %v586 = vrot.slane %v585, 4
        %v588 = vshll.u32 %v484, 16
        %v590 = vrot.slane %v588, 5
        %v591 = vsel %vm507, %v586, %v590
        %v593 = vshrl.u32 %v485, 16
        %v595 = vrot.slane %v593, 4
        %v596 = vshll.u32 %v485, 16
        %v598 = vrot.slane %v596, 5
        %v599 = vor.u32 %v595, %v598
        %v600 = vrot.slane %v599, 4
        %v602 = vshll.u32 %v486, 16
        %v604 = vrot.slane %v602, 5
        %v605 = vsel %vm507, %v600, %v604
        %v607 = vshrl.u32 %v487, 16
        %v609 = vrot.slane %v607, 4
        %v610 = vshll.u32 %v487, 16
        %v612 = vrot.slane %v610, 5
        %v613 = vor.u32 %v609, %v612
        %v614 = vrot.slane %v613, 4
        %v616 = vshll.u32 %v488, 16
        %v618 = vrot.slane %v616, 5
        %v619 = vsel %vm507, %v614, %v618
        %v621 = vshrl.u32 %v489, 16
        %v623 = vrot.slane %v621, 4
        %v624 = vshll.u32 %v489, 16
        %v626 = vrot.slane %v624, 5
        %v627 = vor.u32 %v623, %v626
        %v628 = vrot.slane %v627, 4
        %v630 = vshll.u32 %v490, 16
        %v632 = vrot.slane %v630, 5
        %v633 = vsel %vm507, %v628, %v632
        %v635 = vshrl.u32 %v491, 16
        %v637 = vrot.slane %v635, 4
        %v638 = vshll.u32 %v491, 16
        %v640 = vrot.slane %v638, 5
        %v641 = vor.u32 %v637, %v640
        %v642 = vrot.slane %v641, 4
        %v644 = vshll.u32 %v492, 16
        %v646 = vrot.slane %v644, 5
        %v647 = vsel %vm507, %v642, %v646
        %v649 = vshrl.u32 %v493, 16
        %v651 = vrot.slane %v649, 4
        %v652 = vshll.u32 %v493, 16
        %v654 = vrot.slane %v652, 5
        %v655 = vor.u32 %v651, %v654
        %v656 = vrot.slane %v655, 4
        %v658 = vshll.u32 %v494, 16
        %v660 = vrot.slane %v658, 5
        %v661 = vsel %vm507, %v656, %v660
        %v663 = vshrl.u32 %v495, 16
        %v665 = vrot.slane %v663, 4
        %v666 = vshll.u32 %v495, 16
        %v668 = vrot.slane %v666, 5
        %v669 = vor.u32 %v665, %v668
        %v670 = vrot.slane %v669, 4
        %v672 = vshll.u32 %v496, 16
        %v674 = vrot.slane %v672, 5
        %v675 = vsel %vm507, %v670, %v674
        %v677 = vshrl.u32 %v497, 16
        %v679 = vrot.slane %v677, 4
        %v680 = vshll.u32 %v497, 16
        %v682 = vrot.slane %v680, 5
        %v683 = vor.u32 %v679, %v682
        %v684 = vrot.slane %v683, 4
        %v686 = vshll.u32 %v498, 16
        %v688 = vrot.slane %v686, 5
        %v689 = vsel %vm507, %v684, %v688
        %v691 = vshrl.u32 %v499, 16
        %v693 = vrot.slane %v691, 4
        %v694 = vshll.u32 %v499, 16
        %v696 = vrot.slane %v694, 5
        %v697 = vor.u32 %v693, %v696
        %v698 = vrot.slane %v697, 4
        %v700 = vshll.u32 %v500, 16
        %v702 = vrot.slane %v700, 5
        %v703 = vsel %vm507, %v698, %v702
        %v705 = vshrl.u32 %v501, 16
        %v707 = vrot.slane %v705, 4
        %v708 = vshll.u32 %v501, 16
        %v710 = vrot.slane %v708, 5
        %v711 = vor.u32 %v707, %v710
        %v712 = vrot.slane %v711, 4
        %v714 = vshll.u32 %v502, 16
        %v716 = vrot.slane %v714, 5
        %v717 = vsel %vm507, %v712, %v716
        %v719 = vshrl.u32 %v503, 16
        %v721 = vrot.slane %v719, 4
        %v722 = vshll.u32 %v503, 16
        %v724 = vrot.slane %v722, 5
        %v725 = vor.u32 %v721, %v724
        %v726 = vrot.slane %v725, 4
        %v728 = vshll.u32 %v504, 16
        %v730 = vrot.slane %v728, 5
        %v731 = vsel %vm507, %v726, %v730
        %s732 = scalar_lea.vmem %s1, 4
        %v733 = vld [vmem:[%s732] sm:$0x3]
        %v734 = vunpack.c.l.b16 %v521
        %v735 = vunpack.c.l.b16 %v535
        %v736 = vunpack.c.l.b16 %v549
        %v737 = vunpack.c.l.b16 %v563
        %v738 = vunpack.c.l.b16 %v577
        %v739 = vunpack.c.l.b16 %v591
        %v740 = vunpack.c.l.b16 %v605
        %v741 = vunpack.c.l.b16 %v619
        %v742 = vunpack.c.l.b16 %v633
        %v743 = vunpack.c.l.b16 %v647
        %v744 = vunpack.c.l.b16 %v661
        %v745 = vunpack.c.l.b16 %v675
        %v746 = vunpack.c.l.b16 %v689
        %v747 = vunpack.c.l.b16 %v703
        %v748 = vunpack.c.l.b16 %v717
        %v749 = vunpack.c.l.b16 %v731
        %v750 = vpack.c.b16 %v735, %v734
        %v751 = vpack.c.b16 %v737, %v736
        %v752 = vpack.c.b16 %v739, %v738
        %v753 = vpack.c.b16 %v741, %v740
        %v754 = vpack.c.b16 %v743, %v742
        %v755 = vpack.c.b16 %v745, %v744
        %v756 = vpack.c.b16 %v747, %v746
        %v757 = vpack.c.b16 %v749, %v748
        %v759 = vsel %vm279, %v750, 0
        %v762 = vsel %vm279, %v751, 0
        %v765 = vsel %vm279, %v752, 0
        %v768 = vsel %vm279, %v753, 0
        %v771 = vsel %vm279, %v754, 0
        %v774 = vsel %vm279, %v755, 0
        %v777 = vsel %vm279, %v756, 0
        %v780 = vsel %vm279, %v757, 0
        %v783 = vsel %vm304, %v733, 0
        %785 = vmatpush.bf16.msra.mxu0 0
        %786 = vmatpush.bf16.msra.mxu0 0
        %787 = vmatpush.bf16.msra.mxu0 0
        %788 = vmatpush.bf16.msra.mxu0 0
        %789 = vmatpush.bf16.msra.mxu0 0
        %790 = vmatpush.bf16.msra.mxu0 0
        %791 = vmatpush.bf16.msra.mxu0 0
        %792 = vmatpush.bf16.msra.mxu0 %v783
        %793 = vmatmul.bf16.gmra.mxu0 %v759
        %v794 = vpop.f32.mrf.mxu0
        %v795 = vadd.f32 0.0, %v794
        %v796 = vpop.f32.mrf.mxu0
        %v797 = vadd.f32 0.0, %v796
        %798 = vmatmul.bf16.gmra.mxu0 %v762
        %v799 = vpop.f32.mrf.mxu0
        %v800 = vadd.f32 0.0, %v799
        %v801 = vpop.f32.mrf.mxu0
        %v802 = vadd.f32 0.0, %v801
        %803 = vmatmul.bf16.gmra.mxu0 %v765
        %v804 = vpop.f32.mrf.mxu0
        %v805 = vadd.f32 0.0, %v804
        %v806 = vpop.f32.mrf.mxu0
        %v807 = vadd.f32 0.0, %v806
        %808 = vmatmul.bf16.gmra.mxu0 %v768
        %v809 = vpop.f32.mrf.mxu0
        %v810 = vadd.f32 0.0, %v809
        %v811 = vpop.f32.mrf.mxu0
        %v812 = vadd.f32 0.0, %v811
        %813 = vmatmul.bf16.gmra.mxu0 %v771
        %v814 = vpop.f32.mrf.mxu0
        %v815 = vadd.f32 0.0, %v814
        %v816 = vpop.f32.mrf.mxu0
        %v817 = vadd.f32 0.0, %v816
        %818 = vmatmul.bf16.gmra.mxu0 %v774
        %v819 = vpop.f32.mrf.mxu0
        %v820 = vadd.f32 0.0, %v819
        %v821 = vpop.f32.mrf.mxu0
        %v822 = vadd.f32 0.0, %v821
        %823 = vmatmul.bf16.gmra.mxu0 %v777
        %v824 = vpop.f32.mrf.mxu0
        %v825 = vadd.f32 0.0, %v824
        %v826 = vpop.f32.mrf.mxu0
        %v827 = vadd.f32 0.0, %v826
        %828 = vmatmul.bf16.gmra.mxu0 %v780
        %v829 = vpop.f32.mrf.mxu0
        %v830 = vadd.f32 0.0, %v829
        %v831 = vpop.f32.mrf.mxu0
        %v832 = vadd.f32 0.0, %v831
        %833 = vdwg.mxu0
        %v834 = vadd.f32 %v434, %v795
        %v835 = vadd.f32 %v436, %v797
        %v836 = vadd.f32 %v439, %v800
        %v837 = vadd.f32 %v441, %v802
        %v838 = vadd.f32 %v444, %v805
        %v839 = vadd.f32 %v446, %v807
        %v840 = vadd.f32 %v449, %v810
        %v841 = vadd.f32 %v451, %v812
        %v842 = vadd.f32 %v454, %v815
        %v843 = vadd.f32 %v456, %v817
        %v844 = vadd.f32 %v459, %v820
        %v845 = vadd.f32 %v461, %v822
        %v846 = vadd.f32 %v464, %v825
        %v847 = vadd.f32 %v466, %v827
        %v848 = vadd.f32 %v469, %v830
        %v849 = vadd.f32 %v471, %v832
        %s850 = scalar_lea.vmem %s188, 16
        %v851 = vld [vmem:[%s850] sm:$0xf]
        %v852 = vld [vmem:[%s850 + $0x10] sm:$0xf]
        %v853 = vld [vmem:[%s850 + $0x20] sm:$0xf]
        %v854 = vld [vmem:[%s850 + $0x30] sm:$0xf]
        %v855 = vld [vmem:[%s850 + $0x40] sm:$0xf]
        %v856 = vld [vmem:[%s850 + $0x50] sm:$0xf]
        %v857 = vld [vmem:[%s850 + $0x60] sm:$0xf]
        %v858 = vld [vmem:[%s850 + $0x70] sm:$0xf]
        %v859 = vld [vmem:[%s850 + $0x90] sm:$0xf]
        %v860 = vld [vmem:[%s850 + $0xa0] sm:$0xf]
        %v861 = vld [vmem:[%s850 + $0xb0] sm:$0xf]
        %v862 = vld [vmem:[%s850 + $0xc0] sm:$0xf]
        %v863 = vld [vmem:[%s850 + $0xd0] sm:$0xf]
        %v864 = vld [vmem:[%s850 + $0xe0] sm:$0xf]
        %v865 = vld [vmem:[%s850 + $0xf0] sm:$0xf]
        %v866 = vld [vmem:[%s850 + $0x100] sm:$0xf]
        %s867 = scalar_lea.vmem %s1, 12
        %v868 = vld [vmem:[%s867] sm:$0x3]
        %v885 = vunpack.c.l.b16 %v851
        %v886 = vunpack.c.l.b16 %v852
        %v887 = vunpack.c.l.b16 %v853
        %v888 = vunpack.c.l.b16 %v854
        %v889 = vunpack.c.l.b16 %v855
        %v890 = vunpack.c.l.b16 %v856
        %v891 = vunpack.c.l.b16 %v857
        %v892 = vunpack.c.l.b16 %v858
        %v893 = vunpack.c.l.b16 %v859
        %v894 = vunpack.c.l.b16 %v860
        %v895 = vunpack.c.l.b16 %v861
        %v896 = vunpack.c.l.b16 %v862
        %v897 = vunpack.c.l.b16 %v863
        %v898 = vunpack.c.l.b16 %v864
        %v899 = vunpack.c.l.b16 %v865
        %v900 = vunpack.c.l.b16 %v866
        %v901 = vpack.c.b16 %v886, %v885
        %v902 = vpack.c.b16 %v888, %v887
        %v903 = vpack.c.b16 %v890, %v889
        %v904 = vpack.c.b16 %v892, %v891
        %v905 = vpack.c.b16 %v894, %v893
        %v906 = vpack.c.b16 %v896, %v895
        %v907 = vpack.c.b16 %v898, %v897
        %v908 = vpack.c.b16 %v900, %v899
        %v910 = vsel %vm279, %v901, 0
        %v913 = vsel %vm279, %v902, 0
        %v916 = vsel %vm279, %v903, 0
        %v919 = vsel %vm279, %v904, 0
        %v922 = vsel %vm279, %v905, 0
        %v925 = vsel %vm279, %v906, 0
        %v928 = vsel %vm279, %v907, 0
        %v931 = vsel %vm279, %v908, 0
        %v934 = vsel %vm304, %v868, 0
        %936 = vmatpush.bf16.msra.mxu0 0
        %937 = vmatpush.bf16.msra.mxu0 0
        %938 = vmatpush.bf16.msra.mxu0 0
        %939 = vmatpush.bf16.msra.mxu0 0
        %940 = vmatpush.bf16.msra.mxu0 0
        %941 = vmatpush.bf16.msra.mxu0 0
        %942 = vmatpush.bf16.msra.mxu0 0
        %943 = vmatpush.bf16.msra.mxu0 %v934
        %944 = vmatmul.bf16.gmra.mxu0 %v910
        %v945 = vpop.f32.mrf.mxu0
        %v946 = vadd.f32 0.0, %v945
        %v947 = vpop.f32.mrf.mxu0
        %v948 = vadd.f32 0.0, %v947
        %949 = vmatmul.bf16.gmra.mxu0 %v913
        %v950 = vpop.f32.mrf.mxu0
        %v951 = vadd.f32 0.0, %v950
        %v952 = vpop.f32.mrf.mxu0
        %v953 = vadd.f32 0.0, %v952
        %954 = vmatmul.bf16.gmra.mxu0 %v916
        %v955 = vpop.f32.mrf.mxu0
        %v956 = vadd.f32 0.0, %v955
        %v957 = vpop.f32.mrf.mxu0
        %v958 = vadd.f32 0.0, %v957
        %959 = vmatmul.bf16.gmra.mxu0 %v919
        %v960 = vpop.f32.mrf.mxu0
        %v961 = vadd.f32 0.0, %v960
        %v962 = vpop.f32.mrf.mxu0
        %v963 = vadd.f32 0.0, %v962
        %964 = vmatmul.bf16.gmra.mxu0 %v922
        %v965 = vpop.f32.mrf.mxu0
        %v966 = vadd.f32 0.0, %v965
        %v967 = vpop.f32.mrf.mxu0
        %v968 = vadd.f32 0.0, %v967
        %969 = vmatmul.bf16.gmra.mxu0 %v925
        %v970 = vpop.f32.mrf.mxu0
        %v971 = vadd.f32 0.0, %v970
        %v972 = vpop.f32.mrf.mxu0
        %v973 = vadd.f32 0.0, %v972
        %974 = vmatmul.bf16.gmra.mxu0 %v928
        %v975 = vpop.f32.mrf.mxu0
        %v976 = vadd.f32 0.0, %v975
        %v977 = vpop.f32.mrf.mxu0
        %v978 = vadd.f32 0.0, %v977
        %979 = vmatmul.bf16.gmra.mxu0 %v931
        %v980 = vpop.f32.mrf.mxu0
        %v981 = vadd.f32 0.0, %v980
        %v982 = vpop.f32.mrf.mxu0
        %v983 = vadd.f32 0.0, %v982
        %984 = vdwg.mxu0
        %v985 = vadd.f32 %v834, %v946
        %v986 = vadd.f32 %v835, %v948
        %v987 = vadd.f32 %v836, %v951
        %v988 = vadd.f32 %v837, %v953
        %v989 = vadd.f32 %v838, %v956
        %v990 = vadd.f32 %v839, %v958
        %v991 = vadd.f32 %v840, %v961
        %v992 = vadd.f32 %v841, %v963
        %v993 = vadd.f32 %v842, %v966
        %v994 = vadd.f32 %v843, %v968
        %v995 = vadd.f32 %v844, %v971
        %v996 = vadd.f32 %v845, %v973
        %v997 = vadd.f32 %v846, %v976
        %v998 = vadd.f32 %v847, %v978
        %v999 = vadd.f32 %v848, %v981
        %v1000 = vadd.f32 %v849, %v983
        %s1001 = scalar_lea.vmem %s188, 24
        %v1002 = vld [vmem:[%s1001] sm:$0xf]
        %v1003 = vld [vmem:[%s1001 + $0x10] sm:$0xf]
        %v1004 = vld [vmem:[%s1001 + $0x20] sm:$0xf]
        %v1005 = vld [vmem:[%s1001 + $0x30] sm:$0xf]
        %v1006 = vld [vmem:[%s1001 + $0x40] sm:$0xf]
        %v1007 = vld [vmem:[%s1001 + $0x50] sm:$0xf]
        %v1008 = vld [vmem:[%s1001 + $0x60] sm:$0xf]
        %v1009 = vld [vmem:[%s1001 + $0x70] sm:$0xf]
        %v1010 = vld [vmem:[%s1001 + $0x90] sm:$0xf]
        %v1011 = vld [vmem:[%s1001 + $0xa0] sm:$0xf]
        %v1012 = vld [vmem:[%s1001 + $0xb0] sm:$0xf]
        %v1013 = vld [vmem:[%s1001 + $0xc0] sm:$0xf]
        %v1014 = vld [vmem:[%s1001 + $0xd0] sm:$0xf]
        %v1015 = vld [vmem:[%s1001 + $0xe0] sm:$0xf]
        %v1016 = vld [vmem:[%s1001 + $0xf0] sm:$0xf]
        %v1017 = vld [vmem:[%s1001 + $0x100] sm:$0xf]
        %s1018 = scalar_lea.vmem %s1, 14
        %v1019 = vld [vmem:[%s1018] sm:$0x3]
        %v1036 = vunpack.c.l.b16 %v1002
        %v1037 = vunpack.c.l.b16 %v1003
        %v1038 = vunpack.c.l.b16 %v1004
        %v1039 = vunpack.c.l.b16 %v1005
        %v1040 = vunpack.c.l.b16 %v1006
        %v1041 = vunpack.c.l.b16 %v1007
        %v1042 = vunpack.c.l.b16 %v1008
        %v1043 = vunpack.c.l.b16 %v1009
        %v1044 = vunpack.c.l.b16 %v1010
        %v1045 = vunpack.c.l.b16 %v1011
        %v1046 = vunpack.c.l.b16 %v1012
        %v1047 = vunpack.c.l.b16 %v1013
        %v1048 = vunpack.c.l.b16 %v1014
        %v1049 = vunpack.c.l.b16 %v1015
        %v1050 = vunpack.c.l.b16 %v1016
        %v1051 = vunpack.c.l.b16 %v1017
        %v1052 = vpack.c.b16 %v1037, %v1036
        %v1053 = vpack.c.b16 %v1039, %v1038
        %v1054 = vpack.c.b16 %v1041, %v1040
        %v1055 = vpack.c.b16 %v1043, %v1042
        %v1056 = vpack.c.b16 %v1045, %v1044
        %v1057 = vpack.c.b16 %v1047, %v1046
        %v1058 = vpack.c.b16 %v1049, %v1048
        %v1059 = vpack.c.b16 %v1051, %v1050
        %v1061 = vsel %vm279, %v1052, 0
        %v1064 = vsel %vm279, %v1053, 0
        %v1067 = vsel %vm279, %v1054, 0
        %v1070 = vsel %vm279, %v1055, 0
        %v1073 = vsel %vm279, %v1056, 0
        %v1076 = vsel %vm279, %v1057, 0
        %v1079 = vsel %vm279, %v1058, 0
        %v1082 = vsel %vm279, %v1059, 0
        %v1085 = vsel %vm304, %v1019, 0
        %1087 = vmatpush.bf16.msra.mxu0 0
        %1088 = vmatpush.bf16.msra.mxu0 0
        %1089 = vmatpush.bf16.msra.mxu0 0
        %1090 = vmatpush.bf16.msra.mxu0 0
        %1091 = vmatpush.bf16.msra.mxu0 0
        %1092 = vmatpush.bf16.msra.mxu0 0
        %1093 = vmatpush.bf16.msra.mxu0 0
        %1094 = vmatpush.bf16.msra.mxu0 %v1085
        %1095 = vmatmul.bf16.gmra.mxu0 %v1061
        %v1096 = vpop.f32.mrf.mxu0
        %v1097 = vadd.f32 0.0, %v1096
        %v1098 = vpop.f32.mrf.mxu0
        %v1099 = vadd.f32 0.0, %v1098
        %1100 = vmatmul.bf16.gmra.mxu0 %v1064
        %v1101 = vpop.f32.mrf.mxu0
        %v1102 = vadd.f32 0.0, %v1101
        %v1103 = vpop.f32.mrf.mxu0
        %v1104 = vadd.f32 0.0, %v1103
        %1105 = vmatmul.bf16.gmra.mxu0 %v1067
        %v1106 = vpop.f32.mrf.mxu0
        %v1107 = vadd.f32 0.0, %v1106
        %v1108 = vpop.f32.mrf.mxu0
        %v1109 = vadd.f32 0.0, %v1108
        %1110 = vmatmul.bf16.gmra.mxu0 %v1070
        %v1111 = vpop.f32.mrf.mxu0
        %v1112 = vadd.f32 0.0, %v1111
        %v1113 = vpop.f32.mrf.mxu0
        %v1114 = vadd.f32 0.0, %v1113
        %1115 = vmatmul.bf16.gmra.mxu0 %v1073
        %v1116 = vpop.f32.mrf.mxu0
        %v1117 = vadd.f32 0.0, %v1116
        %v1118 = vpop.f32.mrf.mxu0
        %v1119 = vadd.f32 0.0, %v1118
        %1120 = vmatmul.bf16.gmra.mxu0 %v1076
        %v1121 = vpop.f32.mrf.mxu0
        %v1122 = vadd.f32 0.0, %v1121
        %v1123 = vpop.f32.mrf.mxu0
        %v1124 = vadd.f32 0.0, %v1123
        %1125 = vmatmul.bf16.gmra.mxu0 %v1079
        %v1126 = vpop.f32.mrf.mxu0
        %v1127 = vadd.f32 0.0, %v1126
        %v1128 = vpop.f32.mrf.mxu0
        %v1129 = vadd.f32 0.0, %v1128
        %1130 = vmatmul.bf16.gmra.mxu0 %v1082
        %v1131 = vpop.f32.mrf.mxu0
        %v1132 = vadd.f32 0.0, %v1131
        %v1133 = vpop.f32.mrf.mxu0
        %v1134 = vadd.f32 0.0, %v1133
        %1135 = vdwg.mxu0
        %v1136 = vadd.f32 %v985, %v1097
        %v1137 = vadd.f32 %v986, %v1099
        %v1138 = vadd.f32 %v987, %v1102
        %v1139 = vadd.f32 %v988, %v1104
        %v1140 = vadd.f32 %v989, %v1107
        %v1141 = vadd.f32 %v990, %v1109
        %v1142 = vadd.f32 %v991, %v1112
        %v1143 = vadd.f32 %v992, %v1114
        %v1144 = vadd.f32 %v993, %v1117
        %v1145 = vadd.f32 %v994, %v1119
        %v1146 = vadd.f32 %v995, %v1122
        %v1147 = vadd.f32 %v996, %v1124
        %v1148 = vadd.f32 %v997, %v1127
        %v1149 = vadd.f32 %v998, %v1129
        %v1150 = vadd.f32 %v999, %v1132
        %v1151 = vadd.f32 %v1000, %v1134
        %v1152 = vld [vmem:[%s850] sm:$0xf]
        %v1153 = vld [vmem:[%s850 + $0x4] sm:$0x1]
        %v1154 = vld [vmem:[%s850 + $0x10] sm:$0xf]
        %v1155 = vld [vmem:[%s850 + $0x14] sm:$0x1]
        %v1156 = vld [vmem:[%s850 + $0x20] sm:$0xf]
        %v1157 = vld [vmem:[%s850 + $0x24] sm:$0x1]
        %v1158 = vld [vmem:[%s850 + $0x30] sm:$0xf]
        %v1159 = vld [vmem:[%s850 + $0x34] sm:$0x1]
        %v1160 = vld [vmem:[%s850 + $0x40] sm:$0xf]
        %v1161 = vld [vmem:[%s850 + $0x44] sm:$0x1]
        %v1162 = vld [vmem:[%s850 + $0x50] sm:$0xf]
        %v1163 = vld [vmem:[%s850 + $0x54] sm:$0x1]
        %v1164 = vld [vmem:[%s850 + $0x60] sm:$0xf]
        %v1165 = vld [vmem:[%s850 + $0x64] sm:$0x1]
        %v1166 = vld [vmem:[%s850 + $0x70] sm:$0xf]
        %v1167 = vld [vmem:[%s850 + $0x74] sm:$0x1]
        %v1168 = vld [vmem:[%s850 + $0x90] sm:$0xf]
        %v1169 = vld [vmem:[%s850 + $0x94] sm:$0x1]
        %v1170 = vld [vmem:[%s850 + $0xa0] sm:$0xf]
        %v1171 = vld [vmem:[%s850 + $0xa4] sm:$0x1]
        %v1172 = vld [vmem:[%s850 + $0xb0] sm:$0xf]
        %v1173 = vld [vmem:[%s850 + $0xb4] sm:$0x1]
        %v1174 = vld [vmem:[%s850 + $0xc0] sm:$0xf]
        %v1175 = vld [vmem:[%s850 + $0xc4] sm:$0x1]
        %v1176 = vld [vmem:[%s850 + $0xd0] sm:$0xf]
        %v1177 = vld [vmem:[%s850 + $0xd4] sm:$0x1]
        %v1178 = vld [vmem:[%s850 + $0xe0] sm:$0xf]
        %v1179 = vld [vmem:[%s850 + $0xe4] sm:$0x1]
        %v1180 = vld [vmem:[%s850 + $0xf0] sm:$0xf]
        %v1181 = vld [vmem:[%s850 + $0xf4] sm:$0x1]
        %v1182 = vld [vmem:[%s850 + $0x100] sm:$0xf]
        %v1183 = vld [vmem:[%s850 + $0x104] sm:$0x1]
        %v1185 = vshrl.u32 %v1152, 16
        %v1187 = vrot.slane %v1185, 4
        %v1188 = vshll.u32 %v1152, 16
        %v1190 = vrot.slane %v1188, 5
        %v1191 = vor.u32 %v1187, %v1190
        %v1192 = vrot.slane %v1191, 4
        %v1194 = vshll.u32 %v1153, 16
        %v1196 = vrot.slane %v1194, 5
        %v1197 = vsel %vm507, %v1192, %v1196
        %v1199 = vshrl.u32 %v1154, 16
        %v1201 = vrot.slane %v1199, 4
        %v1202 = vshll.u32 %v1154, 16
        %v1204 = vrot.slane %v1202, 5
        %v1205 = vor.u32 %v1201, %v1204
        %v1206 = vrot.slane %v1205, 4
        %v1208 = vshll.u32 %v1155, 16
        %v1210 = vrot.slane %v1208, 5
        %v1211 = vsel %vm507, %v1206, %v1210
        %v1213 = vshrl.u32 %v1156, 16
        %v1215 = vrot.slane %v1213, 4
        %v1216 = vshll.u32 %v1156, 16
        %v1218 = vrot.slane %v1216, 5
        %v1219 = vor.u32 %v1215, %v1218
        %v1220 = vrot.slane %v1219, 4
        %v1222 = vshll.u32 %v1157, 16
        %v1224 = vrot.slane %v1222, 5
        %v1225 = vsel %vm507, %v1220, %v1224
        %v1227 = vshrl.u32 %v1158, 16
        %v1229 = vrot.slane %v1227, 4
        %v1230 = vshll.u32 %v1158, 16
        %v1232 = vrot.slane %v1230, 5
        %v1233 = vor.u32 %v1229, %v1232
        %v1234 = vrot.slane %v1233, 4
        %v1236 = vshll.u32 %v1159, 16
        %v1238 = vrot.slane %v1236, 5
        %v1239 = vsel %vm507, %v1234, %v1238
        %v1241 = vshrl.u32 %v1160, 16
        %v1243 = vrot.slane %v1241, 4
        %v1244 = vshll.u32 %v1160, 16
        %v1246 = vrot.slane %v1244, 5
        %v1247 = vor.u32 %v1243, %v1246
        %v1248 = vrot.slane %v1247, 4
        %v1250 = vshll.u32 %v1161, 16
        %v1252 = vrot.slane %v1250, 5
        %v1253 = vsel %vm507, %v1248, %v1252
        %v1255 = vshrl.u32 %v1162, 16
        %v1257 = vrot.slane %v1255, 4
        %v1258 = vshll.u32 %v1162, 16
        %v1260 = vrot.slane %v1258, 5
        %v1261 = vor.u32 %v1257, %v1260
        %v1262 = vrot.slane %v1261, 4
        %v1264 = vshll.u32 %v1163, 16
        %v1266 = vrot.slane %v1264, 5
        %v1267 = vsel %vm507, %v1262, %v1266
        %v1269 = vshrl.u32 %v1164, 16
        %v1271 = vrot.slane %v1269, 4
        %v1272 = vshll.u32 %v1164, 16
        %v1274 = vrot.slane %v1272, 5
        %v1275 = vor.u32 %v1271, %v1274
        %v1276 = vrot.slane %v1275, 4
        %v1278 = vshll.u32 %v1165, 16
        %v1280 = vrot.slane %v1278, 5
        %v1281 = vsel %vm507, %v1276, %v1280
        %v1283 = vshrl.u32 %v1166, 16
        %v1285 = vrot.slane %v1283, 4
        %v1286 = vshll.u32 %v1166, 16
        %v1288 = vrot.slane %v1286, 5
        %v1289 = vor.u32 %v1285, %v1288
        %v1290 = vrot.slane %v1289, 4
        %v1292 = vshll.u32 %v1167, 16
        %v1294 = vrot.slane %v1292, 5
        %v1295 = vsel %vm507, %v1290, %v1294
        %v1297 = vshrl.u32 %v1168, 16
        %v1299 = vrot.slane %v1297, 4
        %v1300 = vshll.u32 %v1168, 16
        %v1302 = vrot.slane %v1300, 5
        %v1303 = vor.u32 %v1299, %v1302
        %v1304 = vrot.slane %v1303, 4
        %v1306 = vshll.u32 %v1169, 16
        %v1308 = vrot.slane %v1306, 5
        %v1309 = vsel %vm507, %v1304, %v1308
        %v1311 = vshrl.u32 %v1170, 16
        %v1313 = vrot.slane %v1311, 4
        %v1314 = vshll.u32 %v1170, 16
        %v1316 = vrot.slane %v1314, 5
        %v1317 = vor.u32 %v1313, %v1316
        %v1318 = vrot.slane %v1317, 4
        %v1320 = vshll.u32 %v1171, 16
        %v1322 = vrot.slane %v1320, 5
        %v1323 = vsel %vm507, %v1318, %v1322
        %v1325 = vshrl.u32 %v1172, 16
        %v1327 = vrot.slane %v1325, 4
        %v1328 = vshll.u32 %v1172, 16
        %v1330 = vrot.slane %v1328, 5
        %v1331 = vor.u32 %v1327, %v1330
        %v1332 = vrot.slane %v1331, 4
        %v1334 = vshll.u32 %v1173, 16
        %v1336 = vrot.slane %v1334, 5
        %v1337 = vsel %vm507, %v1332, %v1336
        %v1339 = vshrl.u32 %v1174, 16
        %v1341 = vrot.slane %v1339, 4
        %v1342 = vshll.u32 %v1174, 16
        %v1344 = vrot.slane %v1342, 5
        %v1345 = vor.u32 %v1341, %v1344
        %v1346 = vrot.slane %v1345, 4
        %v1348 = vshll.u32 %v1175, 16
        %v1350 = vrot.slane %v1348, 5
        %v1351 = vsel %vm507, %v1346, %v1350
        %v1353 = vshrl.u32 %v1176, 16
        %v1355 = vrot.slane %v1353, 4
        %v1356 = vshll.u32 %v1176, 16
        %v1358 = vrot.slane %v1356, 5
        %v1359 = vor.u32 %v1355, %v1358
        %v1360 = vrot.slane %v1359, 4
        %v1362 = vshll.u32 %v1177, 16
        %v1364 = vrot.slane %v1362, 5
        %v1365 = vsel %vm507, %v1360, %v1364
        %v1367 = vshrl.u32 %v1178, 16
        %v1369 = vrot.slane %v1367, 4
        %v1370 = vshll.u32 %v1178, 16
        %v1372 = vrot.slane %v1370, 5
        %v1373 = vor.u32 %v1369, %v1372
        %v1374 = vrot.slane %v1373, 4
        %v1376 = vshll.u32 %v1179, 16
        %v1378 = vrot.slane %v1376, 5
        %v1379 = vsel %vm507, %v1374, %v1378
        %v1381 = vshrl.u32 %v1180, 16
        %v1383 = vrot.slane %v1381, 4
        %v1384 = vshll.u32 %v1180, 16
        %v1386 = vrot.slane %v1384, 5
        %v1387 = vor.u32 %v1383, %v1386
        %v1388 = vrot.slane %v1387, 4
        %v1390 = vshll.u32 %v1181, 16
        %v1392 = vrot.slane %v1390, 5
        %v1393 = vsel %vm507, %v1388, %v1392
        %v1395 = vshrl.u32 %v1182, 16
        %v1397 = vrot.slane %v1395, 4
        %v1398 = vshll.u32 %v1182, 16
        %v1400 = vrot.slane %v1398, 5
        %v1401 = vor.u32 %v1397, %v1400
        %v1402 = vrot.slane %v1401, 4
        %v1404 = vshll.u32 %v1183, 16
        %v1406 = vrot.slane %v1404, 5
        %v1407 = vsel %vm507, %v1402, %v1406
        %s1408 = scalar_lea.vmem %s1, 16
        %v1409 = vld [vmem:[%s1408] sm:$0x3]
        %v1410 = vunpack.c.l.b16 %v1197
        %v1411 = vunpack.c.l.b16 %v1211
        %v1412 = vunpack.c.l.b16 %v1225
        %v1413 = vunpack.c.l.b16 %v1239
        %v1414 = vunpack.c.l.b16 %v1253
        %v1415 = vunpack.c.l.b16 %v1267
        %v1416 = vunpack.c.l.b16 %v1281
        %v1417 = vunpack.c.l.b16 %v1295
        %v1418 = vunpack.c.l.b16 %v1309
        %v1419 = vunpack.c.l.b16 %v1323
        %v1420 = vunpack.c.l.b16 %v1337
        %v1421 = vunpack.c.l.b16 %v1351
        %v1422 = vunpack.c.l.b16 %v1365
        %v1423 = vunpack.c.l.b16 %v1379
        %v1424 = vunpack.c.l.b16 %v1393
        %v1425 = vunpack.c.l.b16 %v1407
        %v1426 = vpack.c.b16 %v1411, %v1410
        %v1427 = vpack.c.b16 %v1413, %v1412
        %v1428 = vpack.c.b16 %v1415, %v1414
        %v1429 = vpack.c.b16 %v1417, %v1416
        %v1430 = vpack.c.b16 %v1419, %v1418
        %v1431 = vpack.c.b16 %v1421, %v1420
        %v1432 = vpack.c.b16 %v1423, %v1422
        %v1433 = vpack.c.b16 %v1425, %v1424
        %v1435 = vsel %vm279, %v1426, 0
        %v1438 = vsel %vm279, %v1427, 0
        %v1441 = vsel %vm279, %v1428, 0
        %v1444 = vsel %vm279, %v1429, 0
        %v1447 = vsel %vm279, %v1430, 0
        %v1450 = vsel %vm279, %v1431, 0
        %v1453 = vsel %vm279, %v1432, 0
        %v1456 = vsel %vm279, %v1433, 0
        %v1459 = vsel %vm304, %v1409, 0
        %1461 = vmatpush.bf16.msra.mxu0 0
        %1462 = vmatpush.bf16.msra.mxu0 0
        %1463 = vmatpush.bf16.msra.mxu0 0
        %1464 = vmatpush.bf16.msra.mxu0 0
        %1465 = vmatpush.bf16.msra.mxu0 0
        %1466 = vmatpush.bf16.msra.mxu0 0
        %1467 = vmatpush.bf16.msra.mxu0 0
        %1468 = vmatpush.bf16.msra.mxu0 %v1459
        %1469 = vmatmul.bf16.gmra.mxu0 %v1435
        %v1470 = vpop.f32.mrf.mxu0
        %v1471 = vadd.f32 0.0, %v1470
        %v1472 = vpop.f32.mrf.mxu0
        %v1473 = vadd.f32 0.0, %v1472
        %1474 = vmatmul.bf16.gmra.mxu0 %v1438
        %v1475 = vpop.f32.mrf.mxu0
        %v1476 = vadd.f32 0.0, %v1475
        %v1477 = vpop.f32.mrf.mxu0
        %v1478 = vadd.f32 0.0, %v1477
        %1479 = vmatmul.bf16.gmra.mxu0 %v1441
        %v1480 = vpop.f32.mrf.mxu0
        %v1481 = vadd.f32 0.0, %v1480
        %v1482 = vpop.f32.mrf.mxu0
        %v1483 = vadd.f32 0.0, %v1482
        %1484 = vmatmul.bf16.gmra.mxu0 %v1444
        %v1485 = vpop.f32.mrf.mxu0
        %v1486 = vadd.f32 0.0, %v1485
        %v1487 = vpop.f32.mrf.mxu0
        %v1488 = vadd.f32 0.0, %v1487
        %1489 = vmatmul.bf16.gmra.mxu0 %v1447
        %v1490 = vpop.f32.mrf.mxu0
        %v1491 = vadd.f32 0.0, %v1490
        %v1492 = vpop.f32.mrf.mxu0
        %v1493 = vadd.f32 0.0, %v1492
        %1494 = vmatmul.bf16.gmra.mxu0 %v1450
        %v1495 = vpop.f32.mrf.mxu0
        %v1496 = vadd.f32 0.0, %v1495
        %v1497 = vpop.f32.mrf.mxu0
        %v1498 = vadd.f32 0.0, %v1497
        %1499 = vmatmul.bf16.gmra.mxu0 %v1453
        %v1500 = vpop.f32.mrf.mxu0
        %v1501 = vadd.f32 0.0, %v1500
        %v1502 = vpop.f32.mrf.mxu0
        %v1503 = vadd.f32 0.0, %v1502
        %1504 = vmatmul.bf16.gmra.mxu0 %v1456
        %v1505 = vpop.f32.mrf.mxu0
        %v1506 = vadd.f32 0.0, %v1505
        %v1507 = vpop.f32.mrf.mxu0
        %v1508 = vadd.f32 0.0, %v1507
        %1509 = vdwg.mxu0
        %v1510 = vadd.f32 %v1136, %v1471
        %v1511 = vadd.f32 %v1137, %v1473
        %v1512 = vadd.f32 %v1138, %v1476
        %v1513 = vadd.f32 %v1139, %v1478
        %v1514 = vadd.f32 %v1140, %v1481
        %v1515 = vadd.f32 %v1141, %v1483
        %v1516 = vadd.f32 %v1142, %v1486
        %v1517 = vadd.f32 %v1143, %v1488
        %v1518 = vadd.f32 %v1144, %v1491
        %v1519 = vadd.f32 %v1145, %v1493
        %v1520 = vadd.f32 %v1146, %v1496
        %v1521 = vadd.f32 %v1147, %v1498
        %v1522 = vadd.f32 %v1148, %v1501
        %v1523 = vadd.f32 %v1149, %v1503
        %v1524 = vadd.f32 %v1150, %v1506
        %v1525 = vadd.f32 %v1151, %v1508
        %1526 = vst [vmem:[#allocation2] sm:$0xff] %v1510
        %1527 = vst [vmem:[#allocation2 + $0x8] sm:$0xff] %v1511
        %1528 = vst [vmem:[#allocation2 + $0x10] sm:$0xff] %v1512
        %1529 = vst [vmem:[#allocation2 + $0x18] sm:$0xff] %v1513
        %1530 = vst [vmem:[#allocation2 + $0x20] sm:$0xff] %v1514
        %1531 = vst [vmem:[#allocation2 + $0x28] sm:$0xff] %v1515
        %1532 = vst [vmem:[#allocation2 + $0x30] sm:$0xff] %v1516
        %1533 = vst [vmem:[#allocation2 + $0x38] sm:$0xff] %v1517
        %1534 = vst [vmem:[#allocation2 + $0x40] sm:$0xff] %v1518
        %1535 = vst [vmem:[#allocation2 + $0x48] sm:$0xff] %v1519
        %1536 = vst [vmem:[#allocation2 + $0x50] sm:$0xff] %v1520
        %1537 = vst [vmem:[#allocation2 + $0x58] sm:$0xff] %v1521
        %1538 = vst [vmem:[#allocation2 + $0x60] sm:$0xff] %v1522
        %1539 = vst [vmem:[#allocation2 + $0x68] sm:$0xff] %v1523
        %1540 = vst [vmem:[#allocation2 + $0x70] sm:$0xff] %v1524
        %1541 = vst [vmem:[#allocation2 + $0x78] sm:$0xff] %v1525
      $region36: #{fwd.4} parent=31 // pred_fallthru
        _
      %p1542 = scmp.eq.s32.totalorder %s19, 1
      // Predicated region
      $region37: #{fwd.4} parent=31 // pred_check
        %p1543 = pneg %p1542
      $region38: #{fwd.4} parent=31 // pred_check_branch
        %1545 = sbr.rel (%p1543) target = $region40
      $region39: #{fwd.4} parent=31 // pred_region
        %v1546 = vld [vmem:[#allocation2] sm:$0xff]
        %v1547 = vld [vmem:[#allocation2 + $0x8] sm:$0xff]
        %v1548 = vld [vmem:[#allocation2 + $0x10] sm:$0xff]
        %v1549 = vld [vmem:[#allocation2 + $0x18] sm:$0xff]
        %v1550 = vld [vmem:[#allocation2 + $0x20] sm:$0xff]
        %v1551 = vld [vmem:[#allocation2 + $0x28] sm:$0xff]
        %v1552 = vld [vmem:[#allocation2 + $0x30] sm:$0xff]
        %v1553 = vld [vmem:[#allocation2 + $0x38] sm:$0xff]
        %v1554 = vld [vmem:[#allocation2 + $0x40] sm:$0xff]
        %v1555 = vld [vmem:[#allocation2 + $0x48] sm:$0xff]
        %v1556 = vld [vmem:[#allocation2 + $0x50] sm:$0xff]
        %v1557 = vld [vmem:[#allocation2 + $0x58] sm:$0xff]
        %v1558 = vld [vmem:[#allocation2 + $0x60] sm:$0xff]
        %v1559 = vld [vmem:[#allocation2 + $0x68] sm:$0xff]
        %v1560 = vld [vmem:[#allocation2 + $0x70] sm:$0xff]
        %v1561 = vld [vmem:[#allocation2 + $0x78] sm:$0xff]
        %v1562 = vld [vmem:[%s188] sm:$0xf]
        %v1563 = vld [vmem:[%s188 + $0x10] sm:$0xf]
        %v1564 = vld [vmem:[%s188 + $0x20] sm:$0xf]
        %v1565 = vld [vmem:[%s188 + $0x30] sm:$0xf]
        %v1566 = vld [vmem:[%s188 + $0x40] sm:$0xf]
        %v1567 = vld [vmem:[%s188 + $0x50] sm:$0xf]
        %v1568 = vld [vmem:[%s188 + $0x60] sm:$0xf]
        %v1569 = vld [vmem:[%s188 + $0x70] sm:$0xf]
        %v1570 = vld [vmem:[%s188 + $0x90] sm:$0xf]
        %v1571 = vld [vmem:[%s188 + $0xa0] sm:$0xf]
        %v1572 = vld [vmem:[%s188 + $0xb0] sm:$0xf]
        %v1573 = vld [vmem:[%s188 + $0xc0] sm:$0xf]
        %v1574 = vld [vmem:[%s188 + $0xd0] sm:$0xf]
        %v1575 = vld [vmem:[%s188 + $0xe0] sm:$0xf]
        %v1576 = vld [vmem:[%s188 + $0xf0] sm:$0xf]
        %v1577 = vld [vmem:[%s188 + $0x100] sm:$0xf]
        %s1578 = scalar_lea.vmem %s1, 6
        %v1579 = vld [vmem:[%s1578] sm:$0x3]
        %v1596 = vunpack.c.l.b16 %v1562
        %v1597 = vunpack.c.l.b16 %v1563
        %v1598 = vunpack.c.l.b16 %v1564
        %v1599 = vunpack.c.l.b16 %v1565
        %v1600 = vunpack.c.l.b16 %v1566
        %v1601 = vunpack.c.l.b16 %v1567
        %v1602 = vunpack.c.l.b16 %v1568
        %v1603 = vunpack.c.l.b16 %v1569
        %v1604 = vunpack.c.l.b16 %v1570
        %v1605 = vunpack.c.l.b16 %v1571
        %v1606 = vunpack.c.l.b16 %v1572
        %v1607 = vunpack.c.l.b16 %v1573
        %v1608 = vunpack.c.l.b16 %v1574
        %v1609 = vunpack.c.l.b16 %v1575
        %v1610 = vunpack.c.l.b16 %v1576
        %v1611 = vunpack.c.l.b16 %v1577
        %v1612 = vpack.c.b16 %v1597, %v1596
        %v1613 = vpack.c.b16 %v1599, %v1598
        %v1614 = vpack.c.b16 %v1601, %v1600
        %v1615 = vpack.c.b16 %v1603, %v1602
        %v1616 = vpack.c.b16 %v1605, %v1604
        %v1617 = vpack.c.b16 %v1607, %v1606
        %v1618 = vpack.c.b16 %v1609, %v1608
        %v1619 = vpack.c.b16 %v1611, %v1610
        %vm1620 = vcmask 31744
        %v1622 = vsel %vm1620, %v1612, 0
        %v1625 = vsel %vm1620, %v1613, 0
        %v1628 = vsel %vm1620, %v1614, 0
        %v1631 = vsel %vm1620, %v1615, 0
        %v1634 = vsel %vm1620, %v1616, 0
        %v1637 = vsel %vm1620, %v1617, 0
        %v1640 = vsel %vm1620, %v1618, 0
        %v1643 = vsel %vm1620, %v1619, 0
        %vm1645 = vcmask 1041408
        %v1647 = vsel %vm1645, %v1579, 0
        %1649 = vmatpush.bf16.msra.mxu0 0
        %1650 = vmatpush.bf16.msra.mxu0 0
        %1651 = vmatpush.bf16.msra.mxu0 0
        %1652 = vmatpush.bf16.msra.mxu0 0
        %1653 = vmatpush.bf16.msra.mxu0 0
        %1654 = vmatpush.bf16.msra.mxu0 0
        %1655 = vmatpush.bf16.msra.mxu0 0
        %1656 = vmatpush.bf16.msra.mxu0 %v1647
        %1657 = vmatmul.bf16.gmra.mxu0 %v1622
        %v1658 = vpop.f32.mrf.mxu0
        %v1659 = vadd.f32 0.0, %v1658
        %v1660 = vpop.f32.mrf.mxu0
        %v1661 = vadd.f32 0.0, %v1660
        %1662 = vmatmul.bf16.gmra.mxu0 %v1625
        %v1663 = vpop.f32.mrf.mxu0
        %v1664 = vadd.f32 0.0, %v1663
        %v1665 = vpop.f32.mrf.mxu0
        %v1666 = vadd.f32 0.0, %v1665
        %1667 = vmatmul.bf16.gmra.mxu0 %v1628
        %v1668 = vpop.f32.mrf.mxu0
        %v1669 = vadd.f32 0.0, %v1668
        %v1670 = vpop.f32.mrf.mxu0
        %v1671 = vadd.f32 0.0, %v1670
        %1672 = vmatmul.bf16.gmra.mxu0 %v1631
        %v1673 = vpop.f32.mrf.mxu0
        %v1674 = vadd.f32 0.0, %v1673
        %v1675 = vpop.f32.mrf.mxu0
        %v1676 = vadd.f32 0.0, %v1675
        %1677 = vmatmul.bf16.gmra.mxu0 %v1634
        %v1678 = vpop.f32.mrf.mxu0
        %v1679 = vadd.f32 0.0, %v1678
        %v1680 = vpop.f32.mrf.mxu0
        %v1681 = vadd.f32 0.0, %v1680
        %1682 = vmatmul.bf16.gmra.mxu0 %v1637
        %v1683 = vpop.f32.mrf.mxu0
        %v1684 = vadd.f32 0.0, %v1683
        %v1685 = vpop.f32.mrf.mxu0
        %v1686 = vadd.f32 0.0, %v1685
        %1687 = vmatmul.bf16.gmra.mxu0 %v1640
        %v1688 = vpop.f32.mrf.mxu0
        %v1689 = vadd.f32 0.0, %v1688
        %v1690 = vpop.f32.mrf.mxu0
        %v1691 = vadd.f32 0.0, %v1690
        %1692 = vmatmul.bf16.gmra.mxu0 %v1643
        %v1693 = vpop.f32.mrf.mxu0
        %v1694 = vadd.f32 0.0, %v1693
        %v1695 = vpop.f32.mrf.mxu0
        %v1696 = vadd.f32 0.0, %v1695
        %1697 = vdwg.mxu0
        %v1698 = vadd.f32 %v1546, %v1659
        %v1699 = vadd.f32 %v1547, %v1661
        %v1700 = vadd.f32 %v1548, %v1664
        %v1701 = vadd.f32 %v1549, %v1666
        %v1702 = vadd.f32 %v1550, %v1669
        %v1703 = vadd.f32 %v1551, %v1671
        %v1704 = vadd.f32 %v1552, %v1674
        %v1705 = vadd.f32 %v1553, %v1676
        %v1706 = vadd.f32 %v1554, %v1679
        %v1707 = vadd.f32 %v1555, %v1681
        %v1708 = vadd.f32 %v1556, %v1684
        %v1709 = vadd.f32 %v1557, %v1686
        %v1710 = vadd.f32 %v1558, %v1689
        %v1711 = vadd.f32 %v1559, %v1691
        %v1712 = vadd.f32 %v1560, %v1694
        %v1713 = vadd.f32 %v1561, %v1696
        %s1714 = scalar_lea.vmem %s188, 8
        %v1715 = vld [vmem:[%s1714] sm:$0xf]
        %v1716 = vld [vmem:[%s1714 + $0x10] sm:$0xf]
        %v1717 = vld [vmem:[%s1714 + $0x20] sm:$0xf]
        %v1718 = vld [vmem:[%s1714 + $0x30] sm:$0xf]
        %v1719 = vld [vmem:[%s1714 + $0x40] sm:$0xf]
        %v1720 = vld [vmem:[%s1714 + $0x50] sm:$0xf]
        %v1721 = vld [vmem:[%s1714 + $0x60] sm:$0xf]
        %v1722 = vld [vmem:[%s1714 + $0x70] sm:$0xf]
        %v1723 = vld [vmem:[%s1714 + $0x90] sm:$0xf]
        %v1724 = vld [vmem:[%s1714 + $0xa0] sm:$0xf]
        %v1725 = vld [vmem:[%s1714 + $0xb0] sm:$0xf]
        %v1726 = vld [vmem:[%s1714 + $0xc0] sm:$0xf]
        %v1727 = vld [vmem:[%s1714 + $0xd0] sm:$0xf]
        %v1728 = vld [vmem:[%s1714 + $0xe0] sm:$0xf]
        %v1729 = vld [vmem:[%s1714 + $0xf0] sm:$0xf]
        %v1730 = vld [vmem:[%s1714 + $0x100] sm:$0xf]
        %s1731 = scalar_lea.vmem %s1, 8
        %v1732 = vld [vmem:[%s1731] sm:$0x3]
        %v1749 = vunpack.c.l.b16 %v1715
        %v1750 = vunpack.c.l.b16 %v1716
        %v1751 = vunpack.c.l.b16 %v1717
        %v1752 = vunpack.c.l.b16 %v1718
        %v1753 = vunpack.c.l.b16 %v1719
        %v1754 = vunpack.c.l.b16 %v1720
        %v1755 = vunpack.c.l.b16 %v1721
        %v1756 = vunpack.c.l.b16 %v1722
        %v1757 = vunpack.c.l.b16 %v1723
        %v1758 = vunpack.c.l.b16 %v1724
        %v1759 = vunpack.c.l.b16 %v1725
        %v1760 = vunpack.c.l.b16 %v1726
        %v1761 = vunpack.c.l.b16 %v1727
        %v1762 = vunpack.c.l.b16 %v1728
        %v1763 = vunpack.c.l.b16 %v1729
        %v1764 = vunpack.c.l.b16 %v1730
        %v1765 = vpack.c.b16 %v1750, %v1749
        %v1766 = vpack.c.b16 %v1752, %v1751
        %v1767 = vpack.c.b16 %v1754, %v1753
        %v1768 = vpack.c.b16 %v1756, %v1755
        %v1769 = vpack.c.b16 %v1758, %v1757
        %v1770 = vpack.c.b16 %v1760, %v1759
        %v1771 = vpack.c.b16 %v1762, %v1761
        %v1772 = vpack.c.b16 %v1764, %v1763
        %v1774 = vsel %vm1620, %v1765, 0
        %v1777 = vsel %vm1620, %v1766, 0
        %v1780 = vsel %vm1620, %v1767, 0
        %v1783 = vsel %vm1620, %v1768, 0
        %v1786 = vsel %vm1620, %v1769, 0
        %v1789 = vsel %vm1620, %v1770, 0
        %v1792 = vsel %vm1620, %v1771, 0
        %v1795 = vsel %vm1620, %v1772, 0
        %v1798 = vsel %vm1645, %v1732, 0
        %1800 = vmatpush.bf16.msra.mxu0 0
        %1801 = vmatpush.bf16.msra.mxu0 0
        %1802 = vmatpush.bf16.msra.mxu0 0
        %1803 = vmatpush.bf16.msra.mxu0 0
        %1804 = vmatpush.bf16.msra.mxu0 0
        %1805 = vmatpush.bf16.msra.mxu0 0
        %1806 = vmatpush.bf16.msra.mxu0 0
        %1807 = vmatpush.bf16.msra.mxu0 %v1798
        %1808 = vmatmul.bf16.gmra.mxu0 %v1774
        %v1809 = vpop.f32.mrf.mxu0
        %v1810 = vadd.f32 0.0, %v1809
        %v1811 = vpop.f32.mrf.mxu0
        %v1812 = vadd.f32 0.0, %v1811
        %1813 = vmatmul.bf16.gmra.mxu0 %v1777
        %v1814 = vpop.f32.mrf.mxu0
        %v1815 = vadd.f32 0.0, %v1814
        %v1816 = vpop.f32.mrf.mxu0
        %v1817 = vadd.f32 0.0, %v1816
        %1818 = vmatmul.bf16.gmra.mxu0 %v1780
        %v1819 = vpop.f32.mrf.mxu0
        %v1820 = vadd.f32 0.0, %v1819
        %v1821 = vpop.f32.mrf.mxu0
        %v1822 = vadd.f32 0.0, %v1821
        %1823 = vmatmul.bf16.gmra.mxu0 %v1783
        %v1824 = vpop.f32.mrf.mxu0
        %v1825 = vadd.f32 0.0, %v1824
        %v1826 = vpop.f32.mrf.mxu0
        %v1827 = vadd.f32 0.0, %v1826
        %1828 = vmatmul.bf16.gmra.mxu0 %v1786
        %v1829 = vpop.f32.mrf.mxu0
        %v1830 = vadd.f32 0.0, %v1829
        %v1831 = vpop.f32.mrf.mxu0
        %v1832 = vadd.f32 0.0, %v1831
        %1833 = vmatmul.bf16.gmra.mxu0 %v1789
        %v1834 = vpop.f32.mrf.mxu0
        %v1835 = vadd.f32 0.0, %v1834
        %v1836 = vpop.f32.mrf.mxu0
        %v1837 = vadd.f32 0.0, %v1836
        %1838 = vmatmul.bf16.gmra.mxu0 %v1792
        %v1839 = vpop.f32.mrf.mxu0
        %v1840 = vadd.f32 0.0, %v1839
        %v1841 = vpop.f32.mrf.mxu0
        %v1842 = vadd.f32 0.0, %v1841
        %1843 = vmatmul.bf16.gmra.mxu0 %v1795
        %v1844 = vpop.f32.mrf.mxu0
        %v1845 = vadd.f32 0.0, %v1844
        %v1846 = vpop.f32.mrf.mxu0
        %v1847 = vadd.f32 0.0, %v1846
        %1848 = vdwg.mxu0
        %v1849 = vadd.f32 %v1698, %v1810
        %v1850 = vadd.f32 %v1699, %v1812
        %v1851 = vadd.f32 %v1700, %v1815
        %v1852 = vadd.f32 %v1701, %v1817
        %v1853 = vadd.f32 %v1702, %v1820
        %v1854 = vadd.f32 %v1703, %v1822
        %v1855 = vadd.f32 %v1704, %v1825
        %v1856 = vadd.f32 %v1705, %v1827
        %v1857 = vadd.f32 %v1706, %v1830
        %v1858 = vadd.f32 %v1707, %v1832
        %v1859 = vadd.f32 %v1708, %v1835
        %v1860 = vadd.f32 %v1709, %v1837
        %v1861 = vadd.f32 %v1710, %v1840
        %v1862 = vadd.f32 %v1711, %v1842
        %v1863 = vadd.f32 %v1712, %v1845
        %v1864 = vadd.f32 %v1713, %v1847
        %v1865 = vld [vmem:[%s188] sm:$0xf]
        %v1866 = vld [vmem:[%s188 + $0x4] sm:$0x1]
        %v1867 = vld [vmem:[%s188 + $0x10] sm:$0xf]
        %v1868 = vld [vmem:[%s188 + $0x14] sm:$0x1]
        %v1869 = vld [vmem:[%s188 + $0x20] sm:$0xf]
        %v1870 = vld [vmem:[%s188 + $0x24] sm:$0x1]
        %v1871 = vld [vmem:[%s188 + $0x30] sm:$0xf]
        %v1872 = vld [vmem:[%s188 + $0x34] sm:$0x1]
        %v1873 = vld [vmem:[%s188 + $0x40] sm:$0xf]
        %v1874 = vld [vmem:[%s188 + $0x44] sm:$0x1]
        %v1875 = vld [vmem:[%s188 + $0x50] sm:$0xf]
        %v1876 = vld [vmem:[%s188 + $0x54] sm:$0x1]
        %v1877 = vld [vmem:[%s188 + $0x60] sm:$0xf]
        %v1878 = vld [vmem:[%s188 + $0x64] sm:$0x1]
        %v1879 = vld [vmem:[%s188 + $0x70] sm:$0xf]
        %v1880 = vld [vmem:[%s188 + $0x74] sm:$0x1]
        %v1881 = vld [vmem:[%s188 + $0x90] sm:$0xf]
        %v1882 = vld [vmem:[%s188 + $0x94] sm:$0x1]
        %v1883 = vld [vmem:[%s188 + $0xa0] sm:$0xf]
        %v1884 = vld [vmem:[%s188 + $0xa4] sm:$0x1]
        %v1885 = vld [vmem:[%s188 + $0xb0] sm:$0xf]
        %v1886 = vld [vmem:[%s188 + $0xb4] sm:$0x1]
        %v1887 = vld [vmem:[%s188 + $0xc0] sm:$0xf]
        %v1888 = vld [vmem:[%s188 + $0xc4] sm:$0x1]
        %v1889 = vld [vmem:[%s188 + $0xd0] sm:$0xf]
        %v1890 = vld [vmem:[%s188 + $0xd4] sm:$0x1]
        %v1891 = vld [vmem:[%s188 + $0xe0] sm:$0xf]
        %v1892 = vld [vmem:[%s188 + $0xe4] sm:$0x1]
        %v1893 = vld [vmem:[%s188 + $0xf0] sm:$0xf]
        %v1894 = vld [vmem:[%s188 + $0xf4] sm:$0x1]
        %v1895 = vld [vmem:[%s188 + $0x100] sm:$0xf]
        %v1896 = vld [vmem:[%s188 + $0x104] sm:$0x1]
        %vm1897 = vsmask.f32 3328
        %vm1898 = vsmask.f32 7440
        %vm1899 = vmor %vm1897, %vm1898
        %v1901 = vshrl.u32 %v1865, 16
        %v1903 = vrot.slane %v1901, 4
        %v1904 = vshll.u32 %v1865, 16
        %v1906 = vrot.slane %v1904, 5
        %v1907 = vor.u32 %v1903, %v1906
        %v1908 = vrot.slane %v1907, 4
        %v1910 = vshll.u32 %v1866, 16
        %v1912 = vrot.slane %v1910, 5
        %v1913 = vsel %vm1899, %v1908, %v1912
        %v1915 = vshrl.u32 %v1867, 16
        %v1917 = vrot.slane %v1915, 4
        %v1918 = vshll.u32 %v1867, 16
        %v1920 = vrot.slane %v1918, 5
        %v1921 = vor.u32 %v1917, %v1920
        %v1922 = vrot.slane %v1921, 4
        %v1924 = vshll.u32 %v1868, 16
        %v1926 = vrot.slane %v1924, 5
        %v1927 = vsel %vm1899, %v1922, %v1926
        %v1929 = vshrl.u32 %v1869, 16
        %v1931 = vrot.slane %v1929, 4
        %v1932 = vshll.u32 %v1869, 16
        %v1934 = vrot.slane %v1932, 5
        %v1935 = vor.u32 %v1931, %v1934
        %v1936 = vrot.slane %v1935, 4
        %v1938 = vshll.u32 %v1870, 16
        %v1940 = vrot.slane %v1938, 5
        %v1941 = vsel %vm1899, %v1936, %v1940
        %v1943 = vshrl.u32 %v1871, 16
        %v1945 = vrot.slane %v1943, 4
        %v1946 = vshll.u32 %v1871, 16
        %v1948 = vrot.slane %v1946, 5
        %v1949 = vor.u32 %v1945, %v1948
        %v1950 = vrot.slane %v1949, 4
        %v1952 = vshll.u32 %v1872, 16
        %v1954 = vrot.slane %v1952, 5
        %v1955 = vsel %vm1899, %v1950, %v1954
        %v1957 = vshrl.u32 %v1873, 16
        %v1959 = vrot.slane %v1957, 4
        %v1960 = vshll.u32 %v1873, 16
        %v1962 = vrot.slane %v1960, 5
        %v1963 = vor.u32 %v1959, %v1962
        %v1964 = vrot.slane %v1963, 4
        %v1966 = vshll.u32 %v1874, 16
        %v1968 = vrot.slane %v1966, 5
        %v1969 = vsel %vm1899, %v1964, %v1968
        %v1971 = vshrl.u32 %v1875, 16
        %v1973 = vrot.slane %v1971, 4
        %v1974 = vshll.u32 %v1875, 16
        %v1976 = vrot.slane %v1974, 5
        %v1977 = vor.u32 %v1973, %v1976
        %v1978 = vrot.slane %v1977, 4
        %v1980 = vshll.u32 %v1876, 16
        %v1982 = vrot.slane %v1980, 5
        %v1983 = vsel %vm1899, %v1978, %v1982
        %v1985 = vshrl.u32 %v1877, 16
        %v1987 = vrot.slane %v1985, 4
        %v1988 = vshll.u32 %v1877, 16
        %v1990 = vrot.slane %v1988, 5
        %v1991 = vor.u32 %v1987, %v1990
        %v1992 = vrot.slane %v1991, 4
        %v1994 = vshll.u32 %v1878, 16
        %v1996 = vrot.slane %v1994, 5
        %v1997 = vsel %vm1899, %v1992, %v1996
        %v1999 = vshrl.u32 %v1879, 16
        %v2001 = vrot.slane %v1999, 4
        %v2002 = vshll.u32 %v1879, 16
        %v2004 = vrot.slane %v2002, 5
        %v2005 = vor.u32 %v2001, %v2004
        %v2006 = vrot.slane %v2005, 4
        %v2008 = vshll.u32 %v1880, 16
        %v2010 = vrot.slane %v2008, 5
        %v2011 = vsel %vm1899, %v2006, %v2010
        %v2013 = vshrl.u32 %v1881, 16
        %v2015 = vrot.slane %v2013, 4
        %v2016 = vshll.u32 %v1881, 16
        %v2018 = vrot.slane %v2016, 5
        %v2019 = vor.u32 %v2015, %v2018
        %v2020 = vrot.slane %v2019, 4
        %v2022 = vshll.u32 %v1882, 16
        %v2024 = vrot.slane %v2022, 5
        %v2025 = vsel %vm1899, %v2020, %v2024
        %v2027 = vshrl.u32 %v1883, 16
        %v2029 = vrot.slane %v2027, 4
        %v2030 = vshll.u32 %v1883, 16
        %v2032 = vrot.slane %v2030, 5
        %v2033 = vor.u32 %v2029, %v2032
        %v2034 = vrot.slane %v2033, 4
        %v2036 = vshll.u32 %v1884, 16
        %v2038 = vrot.slane %v2036, 5
        %v2039 = vsel %vm1899, %v2034, %v2038
        %v2041 = vshrl.u32 %v1885, 16
        %v2043 = vrot.slane %v2041, 4
        %v2044 = vshll.u32 %v1885, 16
        %v2046 = vrot.slane %v2044, 5
        %v2047 = vor.u32 %v2043, %v2046
        %v2048 = vrot.slane %v2047, 4
        %v2050 = vshll.u32 %v1886, 16
        %v2052 = vrot.slane %v2050, 5
        %v2053 = vsel %vm1899, %v2048, %v2052
        %v2055 = vshrl.u32 %v1887, 16
        %v2057 = vrot.slane %v2055, 4
        %v2058 = vshll.u32 %v1887, 16
        %v2060 = vrot.slane %v2058, 5
        %v2061 = vor.u32 %v2057, %v2060
        %v2062 = vrot.slane %v2061, 4
        %v2064 = vshll.u32 %v1888, 16
        %v2066 = vrot.slane %v2064, 5
        %v2067 = vsel %vm1899, %v2062, %v2066
        %v2069 = vshrl.u32 %v1889, 16
        %v2071 = vrot.slane %v2069, 4
        %v2072 = vshll.u32 %v1889, 16
        %v2074 = vrot.slane %v2072, 5
        %v2075 = vor.u32 %v2071, %v2074
        %v2076 = vrot.slane %v2075, 4
        %v2078 = vshll.u32 %v1890, 16
        %v2080 = vrot.slane %v2078, 5
        %v2081 = vsel %vm1899, %v2076, %v2080
        %v2083 = vshrl.u32 %v1891, 16
        %v2085 = vrot.slane %v2083, 4
        %v2086 = vshll.u32 %v1891, 16
        %v2088 = vrot.slane %v2086, 5
        %v2089 = vor.u32 %v2085, %v2088
        %v2090 = vrot.slane %v2089, 4
        %v2092 = vshll.u32 %v1892, 16
        %v2094 = vrot.slane %v2092, 5
        %v2095 = vsel %vm1899, %v2090, %v2094
        %v2097 = vshrl.u32 %v1893, 16
        %v2099 = vrot.slane %v2097, 4
        %v2100 = vshll.u32 %v1893, 16
        %v2102 = vrot.slane %v2100, 5
        %v2103 = vor.u32 %v2099, %v2102
        %v2104 = vrot.slane %v2103, 4
        %v2106 = vshll.u32 %v1894, 16
        %v2108 = vrot.slane %v2106, 5
        %v2109 = vsel %vm1899, %v2104, %v2108
        %v2111 = vshrl.u32 %v1895, 16
        %v2113 = vrot.slane %v2111, 4
        %v2114 = vshll.u32 %v1895, 16
        %v2116 = vrot.slane %v2114, 5
        %v2117 = vor.u32 %v2113, %v2116
        %v2118 = vrot.slane %v2117, 4
        %v2120 = vshll.u32 %v1896, 16
        %v2122 = vrot.slane %v2120, 5
        %v2123 = vsel %vm1899, %v2118, %v2122
        %s2124 = scalar_lea.vmem %s1, 10
        %v2125 = vld [vmem:[%s2124] sm:$0x3]
        %v2126 = vunpack.c.l.b16 %v1913
        %v2127 = vunpack.c.l.b16 %v1927
        %v2128 = vunpack.c.l.b16 %v1941
        %v2129 = vunpack.c.l.b16 %v1955
        %v2130 = vunpack.c.l.b16 %v1969
        %v2131 = vunpack.c.l.b16 %v1983
        %v2132 = vunpack.c.l.b16 %v1997
        %v2133 = vunpack.c.l.b16 %v2011
        %v2134 = vunpack.c.l.b16 %v2025
        %v2135 = vunpack.c.l.b16 %v2039
        %v2136 = vunpack.c.l.b16 %v2053
        %v2137 = vunpack.c.l.b16 %v2067
        %v2138 = vunpack.c.l.b16 %v2081
        %v2139 = vunpack.c.l.b16 %v2095
        %v2140 = vunpack.c.l.b16 %v2109
        %v2141 = vunpack.c.l.b16 %v2123
        %v2142 = vpack.c.b16 %v2127, %v2126
        %v2143 = vpack.c.b16 %v2129, %v2128
        %v2144 = vpack.c.b16 %v2131, %v2130
        %v2145 = vpack.c.b16 %v2133, %v2132
        %v2146 = vpack.c.b16 %v2135, %v2134
        %v2147 = vpack.c.b16 %v2137, %v2136
        %v2148 = vpack.c.b16 %v2139, %v2138
        %v2149 = vpack.c.b16 %v2141, %v2140
        %v2151 = vsel %vm1620, %v2142, 0
        %v2154 = vsel %vm1620, %v2143, 0
        %v2157 = vsel %vm1620, %v2144, 0
        %v2160 = vsel %vm1620, %v2145, 0
        %v2163 = vsel %vm1620, %v2146, 0
        %v2166 = vsel %vm1620, %v2147, 0
        %v2169 = vsel %vm1620, %v2148, 0
        %v2172 = vsel %vm1620, %v2149, 0
        %v2175 = vsel %vm1645, %v2125, 0
        %2177 = vmatpush.bf16.msra.mxu0 0
        %2178 = vmatpush.bf16.msra.mxu0 0
        %2179 = vmatpush.bf16.msra.mxu0 0
        %2180 = vmatpush.bf16.msra.mxu0 0
        %2181 = vmatpush.bf16.msra.mxu0 0
        %2182 = vmatpush.bf16.msra.mxu0 0
        %2183 = vmatpush.bf16.msra.mxu0 0
        %2184 = vmatpush.bf16.msra.mxu0 %v2175
        %2185 = vmatmul.bf16.gmra.mxu0 %v2151
        %v2186 = vpop.f32.mrf.mxu0
        %v2187 = vadd.f32 0.0, %v2186
        %v2188 = vpop.f32.mrf.mxu0
        %v2189 = vadd.f32 0.0, %v2188
        %2190 = vmatmul.bf16.gmra.mxu0 %v2154
        %v2191 = vpop.f32.mrf.mxu0
        %v2192 = vadd.f32 0.0, %v2191
        %v2193 = vpop.f32.mrf.mxu0
        %v2194 = vadd.f32 0.0, %v2193
        %2195 = vmatmul.bf16.gmra.mxu0 %v2157
        %v2196 = vpop.f32.mrf.mxu0
        %v2197 = vadd.f32 0.0, %v2196
        %v2198 = vpop.f32.mrf.mxu0
        %v2199 = vadd.f32 0.0, %v2198
        %2200 = vmatmul.bf16.gmra.mxu0 %v2160
        %v2201 = vpop.f32.mrf.mxu0
        %v2202 = vadd.f32 0.0, %v2201
        %v2203 = vpop.f32.mrf.mxu0
        %v2204 = vadd.f32 0.0, %v2203
        %2205 = vmatmul.bf16.gmra.mxu0 %v2163
        %v2206 = vpop.f32.mrf.mxu0
        %v2207 = vadd.f32 0.0, %v2206
        %v2208 = vpop.f32.mrf.mxu0
        %v2209 = vadd.f32 0.0, %v2208
        %2210 = vmatmul.bf16.gmra.mxu0 %v2166
        %v2211 = vpop.f32.mrf.mxu0
        %v2212 = vadd.f32 0.0, %v2211
        %v2213 = vpop.f32.mrf.mxu0
        %v2214 = vadd.f32 0.0, %v2213
        %2215 = vmatmul.bf16.gmra.mxu0 %v2169
        %v2216 = vpop.f32.mrf.mxu0
        %v2217 = vadd.f32 0.0, %v2216
        %v2218 = vpop.f32.mrf.mxu0
        %v2219 = vadd.f32 0.0, %v2218
        %2220 = vmatmul.bf16.gmra.mxu0 %v2172
        %v2221 = vpop.f32.mrf.mxu0
        %v2222 = vadd.f32 0.0, %v2221
        %v2223 = vpop.f32.mrf.mxu0
        %v2224 = vadd.f32 0.0, %v2223
        %2225 = vdwg.mxu0
        %v2226 = vadd.f32 %v1849, %v2187
        %v2227 = vadd.f32 %v1850, %v2189
        %v2228 = vadd.f32 %v1851, %v2192
        %v2229 = vadd.f32 %v1852, %v2194
        %v2230 = vadd.f32 %v1853, %v2197
        %v2231 = vadd.f32 %v1854, %v2199
        %v2232 = vadd.f32 %v1855, %v2202
        %v2233 = vadd.f32 %v1856, %v2204
        %v2234 = vadd.f32 %v1857, %v2207
        %v2235 = vadd.f32 %v1858, %v2209
        %v2236 = vadd.f32 %v1859, %v2212
        %v2237 = vadd.f32 %v1860, %v2214
        %v2238 = vadd.f32 %v1861, %v2217
        %v2239 = vadd.f32 %v1862, %v2219
        %v2240 = vadd.f32 %v1863, %v2222
        %v2241 = vadd.f32 %v1864, %v2224
        %v2242 = vld [vmem:[%s2] sm:$0x1]
        %v2244 = vperm.slane %v2242, 0
        %v2246 = vadd.f32 %v2226, %v2244
        %v2247 = vadd.f32 %v2227, %v2244
        %v2248 = vadd.f32 %v2228, %v2244
        %v2249 = vadd.f32 %v2229, %v2244
        %v2250 = vadd.f32 %v2230, %v2244
        %v2251 = vadd.f32 %v2231, %v2244
        %v2252 = vadd.f32 %v2232, %v2244
        %v2253 = vadd.f32 %v2233, %v2244
        %v2254 = vadd.f32 %v2234, %v2244
        %v2255 = vadd.f32 %v2235, %v2244
        %v2256 = vadd.f32 %v2236, %v2244
        %v2257 = vadd.f32 %v2237, %v2244
        %v2258 = vadd.f32 %v2238, %v2244
        %v2259 = vadd.f32 %v2239, %v2244
        %v2260 = vadd.f32 %v2240, %v2244
        %v2261 = vadd.f32 %v2241, %v2244
        %vm2262 = vcmp.gt.f32.partialorder %v2246, 0.0
        %vm2263 = vcmp.gt.f32.partialorder %v2247, 0.0
        %vm2264 = vcmp.gt.f32.partialorder %v2248, 0.0
        %vm2265 = vcmp.gt.f32.partialorder %v2249, 0.0
        %vm2266 = vcmp.gt.f32.partialorder %v2250, 0.0
        %vm2267 = vcmp.gt.f32.partialorder %v2251, 0.0
        %vm2268 = vcmp.gt.f32.partialorder %v2252, 0.0
        %vm2269 = vcmp.gt.f32.partialorder %v2253, 0.0
        %vm2270 = vcmp.gt.f32.partialorder %v2254, 0.0
        %vm2271 = vcmp.gt.f32.partialorder %v2255, 0.0
        %vm2272 = vcmp.gt.f32.partialorder %v2256, 0.0
        %vm2273 = vcmp.gt.f32.partialorder %v2257, 0.0
        %vm2274 = vcmp.gt.f32.partialorder %v2258, 0.0
        %vm2275 = vcmp.gt.f32.partialorder %v2259, 0.0
        %vm2276 = vcmp.gt.f32.partialorder %v2260, 0.0
        %vm2277 = vcmp.gt.f32.partialorder %v2261, 0.0
        %v2278 = vmul.f32 %v2246, 0.01
        %v2279 = vmul.f32 %v2247, 0.01
        %v2280 = vmul.f32 %v2248, 0.01
        %v2281 = vmul.f32 %v2249, 0.01
        %v2282 = vmul.f32 %v2250, 0.01
        %v2283 = vmul.f32 %v2251, 0.01
        %v2284 = vmul.f32 %v2252, 0.01
        %v2285 = vmul.f32 %v2253, 0.01
        %v2286 = vmul.f32 %v2254, 0.01
        %v2287 = vmul.f32 %v2255, 0.01
        %v2288 = vmul.f32 %v2256, 0.01
        %v2289 = vmul.f32 %v2257, 0.01
        %v2290 = vmul.f32 %v2258, 0.01
        %v2291 = vmul.f32 %v2259, 0.01
        %v2292 = vmul.f32 %v2260, 0.01
        %v2293 = vmul.f32 %v2261, 0.01
        %v2294 = vsel %vm2262, %v2246, %v2278
        %v2295 = vsel %vm2263, %v2247, %v2279
        %v2296 = vsel %vm2264, %v2248, %v2280
        %v2297 = vsel %vm2265, %v2249, %v2281
        %v2298 = vsel %vm2266, %v2250, %v2282
        %v2299 = vsel %vm2267, %v2251, %v2283
        %v2300 = vsel %vm2268, %v2252, %v2284
        %v2301 = vsel %vm2269, %v2253, %v2285
        %v2302 = vsel %vm2270, %v2254, %v2286
        %v2303 = vsel %vm2271, %v2255, %v2287
        %v2304 = vsel %vm2272, %v2256, %v2288
        %v2305 = vsel %vm2273, %v2257, %v2289
        %v2306 = vsel %vm2274, %v2258, %v2290
        %v2307 = vsel %vm2275, %v2259, %v2291
        %v2308 = vsel %vm2276, %v2260, %v2292
        %v2309 = vsel %vm2277, %v2261, %v2293
        %v2310 = vpack.c.bf16 %v2294, %v2294
        %v2311 = vpack.c.bf16 %v2295, %v2295
        %v2312 = vpack.c.bf16 %v2296, %v2296
        %v2313 = vpack.c.bf16 %v2297, %v2297
        %v2314 = vpack.c.bf16 %v2298, %v2298
        %v2315 = vpack.c.bf16 %v2299, %v2299
        %v2316 = vpack.c.bf16 %v2300, %v2300
        %v2317 = vpack.c.bf16 %v2301, %v2301
        %v2318 = vpack.c.bf16 %v2302, %v2302
        %v2319 = vpack.c.bf16 %v2303, %v2303
        %v2320 = vpack.c.bf16 %v2304, %v2304
        %v2321 = vpack.c.bf16 %v2305, %v2305
        %v2322 = vpack.c.bf16 %v2306, %v2306
        %v2323 = vpack.c.bf16 %v2307, %v2307
        %v2324 = vpack.c.bf16 %v2308, %v2308
        %v2325 = vpack.c.bf16 %v2309, %v2309
        %2326 = vst [vmem:[%s196] sm:$0xf] %v2310
        %2327 = vst [vmem:[%s196 + $0x4] sm:$0xf] %v2311
        %2328 = vst [vmem:[%s196 + $0x8] sm:$0xf] %v2312
        %2329 = vst [vmem:[%s196 + $0xc] sm:$0xf] %v2313
        %2330 = vst [vmem:[%s196 + $0x10] sm:$0xf] %v2314
        %2331 = vst [vmem:[%s196 + $0x14] sm:$0xf] %v2315
        %2332 = vst [vmem:[%s196 + $0x18] sm:$0xf] %v2316
        %2333 = vst [vmem:[%s196 + $0x1c] sm:$0xf] %v2317
        %2334 = vst [vmem:[%s196 + $0x20] sm:$0xf] %v2318
        %2335 = vst [vmem:[%s196 + $0x24] sm:$0xf] %v2319
        %2336 = vst [vmem:[%s196 + $0x28] sm:$0xf] %v2320
        %2337 = vst [vmem:[%s196 + $0x2c] sm:$0xf] %v2321
        %2338 = vst [vmem:[%s196 + $0x30] sm:$0xf] %v2322
        %2339 = vst [vmem:[%s196 + $0x34] sm:$0xf] %v2323
        %2340 = vst [vmem:[%s196 + $0x38] sm:$0xf] %v2324
        %2341 = vst [vmem:[%s196 + $0x3c] sm:$0xf] %v2325
      $region40: #{fwd.4} parent=31 // pred_fallthru
        _
      %s2342 = smul.u32 2, %s18
      %p2343 = scmp.lt.s32.totalorder %s2342, 1
      %s2344 = scalar_select %p2343, %s2342, 1
      %s2345 = smul.addr %s2344, 8
      %s2346 = smul.addr %s2345, 4
      %s2347 = scalar_lea.vmem %s3, %s2346
      // Predicated region
      $region41: #{fwd.4} parent=31 // pred_check
        %p2348 = pneg %p114
      $region42: #{fwd.4} parent=31 // pred_check_branch
        %2350 = sbr.rel (%p2348) target = $region44
      $region43: #{fwd.4} parent=31 // pred_region
        %s2351 = smul.u32 2, %s18
      $region44: #{fwd.4} parent=31 // pred_fallthru
        _
      // Predicated region
      $region45: #{fwd.4} parent=31 // pred_check
        %p2352 = pneg %p114
      $region46: #{fwd.4} parent=31 // pred_check_branch
        %2354 = sbr.rel (%p2352) target = $region48
      $region47: #{fwd.4} parent=31 // pred_region
        %s2355 = smul.u32 2, %s18
        %p2356 = scmp.lt.s32.totalorder %s2355, 1
        %s2357 = scalar_select %p2356, %s2355, 1
        %s2358 = smul.addr %s2357, 8
        %s2359 = smul.addr %s2358, 4
        %s2360 = scalar_lea.vmem %s3, %s2359
      $region48: #{fwd.4} parent=31 // pred_fallthru
        _
    $region32: #{fwd.4} parent=5 // pred_fallthru
      _
    %p2361 = scmp.le.s32.totalorder 2, %s9
    // Predicated region
    $region49: #{fwd.4} parent=5 // pred_check
      %p2362 = pneg %p2361
    $region50: #{fwd.4} parent=5 // pred_check_branch
      %2364 = sbr.rel (%p2362) target = $region52
    $region51: #{fwd.4} parent=5 // pred_region
      %s2365 = ssub.s32 %s9, 2
    $region52: #{fwd.4} parent=5 // pred_fallthru
      _
  $region6: #{fwd.4} parent=0 // loop_footer
    %s13 = sadd.s32 1, %s9
  $region7: #{fwd.4} parent=0 // loop_footer_branch
    %8 = sbr.rel target = $region3
  $region8: #{fwd.4} parent=0 // loop_exit
    _

// kernel: fwd.6
$region0: #{fwd.6}
  #allocation0 [shape = 'u32[]', space=smem, size = 0x4, offset = 0x4, fixed_abs, tag = 'smem constant byte address 0x4 - core index']
  #allocation1 [shape = 'u32[72,128]{1,0:T(1,128)}', space=vmem, size = 0x9000, scoped, tag = 'internal scratch']
  #allocation2 [shape = 'f32[8,128]{1,0:T(8,128)}', space=vmem, size = 0x1000, scoped, tag = 'scratch operand']
  %s0 = inlined_call_operand.vmem [shape: bf16[8,1152], index: 0, kind: input, shape index: {}]
  %s1 = inlined_call_operand.vmem [shape: bf16[1152,128], index: 1, kind: input, shape index: {}]
  %s2 = inlined_call_operand.vmem [shape: f32[1,128], index: 2, kind: input, shape index: {}]
  %s3 = inlined_call_operand.vmem [shape: bf16[8,128], index: 3, kind: output, shape index: {}]
  %s4 = sld [smem:[#allocation0]]
  $region53: #{fwd.6} parent=0
    _
  %s6 = ssub.s32 1, %s4
  %s7 = scalar_select 0, %s6, %s4
  loop: start=0, step=1, limit=5
  $region2: #{fwd.6} parent=0 // loop_pre_header
    _
  $region3: #{fwd.6} parent=0 // loop_header
    %s9 = sphi 0, %s13
    %p10 = scmp.ge.s32.totalorder %s9, 5
    %s16 = sphi 0, %s35
    %s17 = sphi 0, %s31
    %s18 = sphi 0, %s27
    %s19 = sphi 0, %s16
    %s20 = sphi 0, %s17
    %s21 = sphi 0, %s18
    %s22 = sphi 0, %s19
    %s23 = sphi 0, %s20
    %s24 = sphi 0, %s21
    %s40 = sphi 0, %s42
    %s43 = sphi 0, %s40
    %s44 = sphi 0, %s43
    %s60 = sphi 0, %s44
    %s68 = sphi 0, %s70
    %s71 = sphi 0, %s68
    %s72 = sphi 0, %s71
    %s88 = sphi 0, %s72
    %s94 = sphi 0, %s96
    %s97 = sphi 0, %s94
    %s98 = sphi 0, %s97
    %s114 = sphi 0, %s98
    %s122 = sphi 0, %s124
    %s125 = sphi 0, %s122
    %s126 = sphi 0, %s125
    %s142 = sphi 0, %s126
  $region4: #{fwd.6} parent=0 // loop_header_branch
    %12 = sbr.rel (%p10) target = $region8
  $region5: #{fwd.6} parent=0 // loop_body
    %s14 = ssub.s32 %s9, 1
    %s15 = ssub.s32 %s9, 2
    %s25 = sadd.s32 1, %s18
    %p26 = scmp.ge.s32.totalorder %s25, 3
    %s27 = scalar_select %p26, 0, %s25
    %s28 = sadd.s32 1, %s17
    %s29 = scalar_select %p26, %s28, %s17
    %p30 = scmp.ge.s32.totalorder %s29, 1
    %s31 = scalar_select %p30, 0, %s29
    %s32 = sadd.s32 1, %s16
    %s33 = scalar_select %p30, %s32, %s16
    %p34 = scmp.ge.s32.totalorder %s33, 1
    %s35 = scalar_select %p34, 0, %s33
    %s36 = ssub.s32 %s16, %s35
    %s37 = ssub.s32 %s18, %s27
    %s38 = sor.u32 %s36, %s37
    %p39 = scmp.eq.s32.totalorder %s38, 0
    %s41 = sadd.s32 %s40, 1
    %s42 = scalar_select %p39, %s40, %s41
    %p45 = pneg %p39
    %p46 = scmp.eq.s32.totalorder %s9, 2
    %p47 = por %p45, %p46
    %p48 = scmp.ne.s32.totalorder %s40, %s43
    %p49 = scmp.eq.s32.totalorder %s9, 0
    %p50 = por %p48, %p49
    %p51 = scmp.ne.s32.totalorder %s40, %s43
    %p52 = scmp.eq.s32.totalorder %s14, 2
    %p53 = por %p51, %p52
    %p54 = scmp.ne.s32.totalorder %s43, %s44
    %p55 = scmp.eq.s32.totalorder %s14, 0
    %p56 = por %p54, %p55
    %p57 = scmp.ne.s32.totalorder %s43, %s44
    %p58 = scmp.eq.s32.totalorder %s15, 2
    %p59 = por %p57, %p58
    %p61 = scmp.ne.s32.totalorder %s44, %s60
    %p62 = scmp.eq.s32.totalorder %s15, 0
    %p63 = por %p61, %p62
    %s64 = ssub.s32 %s18, %s27
    %s65 = ssub.s32 %s17, %s31
    %s66 = sor.u32 %s64, %s65
    %p67 = scmp.eq.s32.totalorder %s66, 0
    %s69 = sadd.s32 %s68, 1
    %s70 = scalar_select %p67, %s68, %s69
    %p73 = pneg %p67
    %p74 = scmp.eq.s32.totalorder %s9, 2
    %p75 = por %p73, %p74
    %p76 = scmp.ne.s32.totalorder %s68, %s71
    %p77 = scmp.eq.s32.totalorder %s9, 0
    %p78 = por %p76, %p77
    %p79 = scmp.ne.s32.totalorder %s68, %s71
    %p80 = scmp.eq.s32.totalorder %s14, 2
    %p81 = por %p79, %p80
    %p82 = scmp.ne.s32.totalorder %s71, %s72
    %p83 = scmp.eq.s32.totalorder %s14, 0
    %p84 = por %p82, %p83
    %p85 = scmp.ne.s32.totalorder %s71, %s72
    %p86 = scmp.eq.s32.totalorder %s15, 2
    %p87 = por %p85, %p86
    %p89 = scmp.ne.s32.totalorder %s72, %s88
    %p90 = scmp.eq.s32.totalorder %s15, 0
    %p91 = por %p89, %p90
    %s92 = ssub.s32 %s17, %s31
    %p93 = scmp.eq.s32.totalorder %s92, 0
    %s95 = sadd.s32 %s94, 1
    %s96 = scalar_select %p93, %s94, %s95
    %p99 = pneg %p93
    %p100 = scmp.eq.s32.totalorder %s9, 2
    %p101 = por %p99, %p100
    %p102 = scmp.ne.s32.totalorder %s94, %s97
    %p103 = scmp.eq.s32.totalorder %s9, 0
    %p104 = por %p102, %p103
    %p105 = scmp.ne.s32.totalorder %s94, %s97
    %p106 = scmp.eq.s32.totalorder %s14, 2
    %p107 = por %p105, %p106
    %p108 = scmp.ne.s32.totalorder %s97, %s98
    %p109 = scmp.eq.s32.totalorder %s14, 0
    %p110 = por %p108, %p109
    %p111 = scmp.ne.s32.totalorder %s97, %s98
    %p112 = scmp.eq.s32.totalorder %s15, 2
    %p113 = por %p111, %p112
    %p115 = scmp.ne.s32.totalorder %s98, %s114
    %p116 = scmp.eq.s32.totalorder %s15, 0
    %p117 = por %p115, %p116
    %s118 = ssub.s32 %s16, %s35
    %s119 = ssub.s32 %s17, %s31
    %s120 = sor.u32 %s118, %s119
    %p121 = scmp.eq.s32.totalorder %s120, 0
    %s123 = sadd.s32 %s122, 1
    %s124 = scalar_select %p121, %s122, %s123
    %p127 = pneg %p121
    %p128 = scmp.eq.s32.totalorder %s9, 2
    %p129 = por %p127, %p128
    %p130 = scmp.ne.s32.totalorder %s122, %s125
    %p131 = scmp.eq.s32.totalorder %s9, 0
    %p132 = por %p130, %p131
    %p133 = scmp.ne.s32.totalorder %s122, %s125
    %p134 = scmp.eq.s32.totalorder %s14, 2
    %p135 = por %p133, %p134
    %p136 = scmp.ne.s32.totalorder %s125, %s126
    %p137 = scmp.eq.s32.totalorder %s14, 0
    %p138 = por %p136, %p137
    %p139 = scmp.ne.s32.totalorder %s125, %s126
    %p140 = scmp.eq.s32.totalorder %s15, 2
    %p141 = por %p139, %p140
    %p143 = scmp.ne.s32.totalorder %s126, %s142
    %p144 = scmp.eq.s32.totalorder %s15, 0
    %p145 = por %p143, %p144
    %p146 = scmp.le.s32.totalorder 1, %s9
    %p147 = scmp.lt.s32.totalorder %s9, 4
    %p148 = pnand %p146, %p147
    %p149 = pneg %p148
    // Predicated region
    $region9: #{fwd.6} parent=5 // pred_check
      _
    $region10: #{fwd.6} parent=5 // pred_check_branch
      %151 = sbr.rel (%p148) target = $region12
    $region11: #{fwd.6} parent=5 // pred_region
      %s152 = ssub.s32 %s9, 1
      // Predicated region
      $region13: #{fwd.6} parent=11 // pred_check
        %p153 = pneg %p110
      $region14: #{fwd.6} parent=11 // pred_check_branch
        %155 = sbr.rel (%p153) target = $region16
      $region15: #{fwd.6} parent=11 // pred_region
        %p156 = scmp.lt.s32.totalorder %s20, 0
        %s157 = scalar_select %p156, %s20, 0
        %s158 = scalar_lea.vmem %s2, %s157
      $region16: #{fwd.6} parent=11 // pred_fallthru
        _
    $region12: #{fwd.6} parent=5 // pred_fallthru
      _
    %p159 = scmp.lt.s32.totalorder %s9, 3
    // Predicated region
    $region17: #{fwd.6} parent=5 // pred_check
      %p160 = pneg %p159
    $region18: #{fwd.6} parent=5 // pred_check_branch
      %162 = sbr.rel (%p160) target = $region20
    $region19: #{fwd.6} parent=5 // pred_region
      // Predicated region
      $region21: #{fwd.6} parent=19 // pred_check
        %p163 = pneg %p50
      $region22: #{fwd.6} parent=19 // pred_check_branch
        %165 = sbr.rel (%p163) target = $region24
      $region23: #{fwd.6} parent=19 // pred_region
        %s166 = smul.u32 3, %s18
        %p167 = scmp.lt.s32.totalorder %s16, 0
        %s168 = scalar_select %p167, %s16, 0
        %p169 = scmp.lt.s32.totalorder %s166, 8
        %s170 = scalar_select %p169, %s166, 8
        %s171 = smul.addr %s168, 9
        %s172 = sadd.s32 %s170, %s171
        %s173 = smul.addr %s172, 4
        %s174 = scalar_lea.vmem %s0, %s173
        %s175 = smul.u32 3, %s18
      $region24: #{fwd.6} parent=19 // pred_fallthru
        _
      // Predicated region
      $region25: #{fwd.6} parent=19 // pred_check
        %p176 = pneg %p78
      $region26: #{fwd.6} parent=19 // pred_check_branch
        %178 = sbr.rel (%p176) target = $region28
      $region27: #{fwd.6} parent=19 // pred_region
        %s179 = smul.u32 48, %s18
        %p180 = scmp.lt.s32.totalorder %s179, 143
        %s181 = scalar_select %p180, %s179, 143
        %p182 = scmp.lt.s32.totalorder %s17, 0
        %s183 = scalar_select %p182, %s17, 0
        %s184 = sadd.s32 %s183, %s181
        %s185 = smul.addr %s184, 4
        %s186 = scalar_lea.vmem %s1, %s185
        %s187 = smul.u32 48, %s18
      $region28: #{fwd.6} parent=19 // pred_fallthru
        _
    $region20: #{fwd.6} parent=5 // pred_fallthru
      _
    %p188 = scmp.le.s32.totalorder 1, %s9
    %p189 = scmp.lt.s32.totalorder %s9, 4
    %p190 = pnand %p188, %p189
    %p191 = pneg %p190
    // Predicated region
    $region29: #{fwd.6} parent=5 // pred_check
      _
    $region30: #{fwd.6} parent=5 // pred_check_branch
      %193 = sbr.rel (%p190) target = $region32
    $region31: #{fwd.6} parent=5 // pred_region
      %s194 = ssub.s32 %s9, 1
      %s195 = smul.u32 3, %s21
      %p196 = scmp.lt.s32.totalorder %s19, 0
      %s197 = scalar_select %p196, %s19, 0
      %p198 = scmp.lt.s32.totalorder %s195, 8
      %s199 = scalar_select %p198, %s195, 8
      %s200 = smul.addr %s197, 9
      %s201 = sadd.s32 %s199, %s200
      %s202 = smul.addr %s201, 4
      %s203 = scalar_lea.vmem %s0, %s202
      %p204 = pneg %p56
      %p205 = pneg %p53
      %s206 = smul.u32 48, %s21
      %p207 = scmp.lt.s32.totalorder %s206, 143
      %s208 = scalar_select %p207, %s206, 143
      %p209 = scmp.lt.s32.totalorder %s20, 0
      %s210 = scalar_select %p209, %s20, 0
      %s211 = sadd.s32 %s210, %s208
      %s212 = smul.addr %s211, 4
      %s213 = scalar_lea.vmem %s1, %s212
      %p214 = pneg %p84
      %p215 = pneg %p81
      %p216 = scmp.lt.s32.totalorder %s20, 0
      %s217 = scalar_select %p216, %s20, 0
      %s218 = scalar_lea.vmem %s2, %s217
      %p219 = pneg %p110
      %p220 = pneg %p107
      %p221 = pneg %p138
      %p222 = pneg %p135
      %p223 = scmp.lt.s32.totalorder %s19, 0
      %s224 = scalar_select %p223, %s19, 0
      %p225 = scmp.lt.s32.totalorder %s20, 0
      %s226 = scalar_select %p225, %s20, 0
      %s227 = sadd.s32 %s226, %s224
      %s228 = smul.addr %s227, 4
      %s229 = scalar_lea.vmem %s3, %s228
      %s230 = smul.u32 3, %s21
      %p231 = scmp.lt.s32.totalorder %s19, 0
      %s232 = scalar_select %p231, %s19, 0
      %p233 = scmp.lt.s32.totalorder %s230, 8
      %s234 = scalar_select %p233, %s230, 8
      %s235 = smul.addr %s232, 9
      %s236 = sadd.s32 %s234, %s235
      %s237 = smul.addr %s236, 4
      %s238 = scalar_lea.vmem %s0, %s237
      %s239 = smul.u32 3, %s21
      %s240 = smul.u32 48, %s21
      %p241 = scmp.lt.s32.totalorder %s240, 143
      %s242 = scalar_select %p241, %s240, 143
      %p243 = scmp.lt.s32.totalorder %s20, 0
      %s244 = scalar_select %p243, %s20, 0
      %s245 = sadd.s32 %s244, %s242
      %s246 = smul.addr %s245, 4
      %s247 = scalar_lea.vmem %s1, %s246
      %s248 = smul.u32 48, %s21
      %p249 = scmp.lt.s32.totalorder %s20, 0
      %s250 = scalar_select %p249, %s20, 0
      %s251 = scalar_lea.vmem %s2, %s250
      %p252 = scmp.lt.s32.totalorder %s19, 0
      %s253 = scalar_select %p252, %s19, 0
      %p254 = scmp.lt.s32.totalorder %s20, 0
      %s255 = scalar_select %p254, %s20, 0
      %s256 = sadd.s32 %s255, %s253
      %s257 = smul.addr %s256, 4
      %s258 = scalar_lea.vmem %s3, %s257
      %p259 = scmp.eq.s32.totalorder %s21, 0
      // Predicated region
      $region33: #{fwd.6} parent=31 // pred_check
        %p260 = pneg %p259
      $region34: #{fwd.6} parent=31 // pred_check_branch
        %262 = sbr.rel (%p260) target = $region36
      $region35: #{fwd.6} parent=31 // pred_region
        %263 = vst [vmem:[#allocation2] sm:$0xff] 0.0
      $region36: #{fwd.6} parent=31 // pred_fallthru
        _
      %v264 = vld [vmem:[#allocation2] sm:$0xff]
      %v265 = vld [vmem:[%s238] sm:$0xff]
      %v266 = vld [vmem:[%s238 + $0x8] sm:$0xf]
      %v267 = vld [vmem:[%s247] sm:$0xf]
      %v268 = vld [vmem:[%s247 + $0x4] sm:$0xf]
      %v269 = vld [vmem:[%s247 + $0x8] sm:$0xf]
      %v270 = vld [vmem:[%s247 + $0xc] sm:$0xf]
      %v271 = vld [vmem:[%s247 + $0x10] sm:$0xf]
      %v272 = vld [vmem:[%s247 + $0x14] sm:$0xf]
      %v273 = vld [vmem:[%s247 + $0x18] sm:$0xf]
      %v274 = vld [vmem:[%s247 + $0x1c] sm:$0xf]
      %v275 = vld [vmem:[%s247 + $0x20] sm:$0xf]
      %v276 = vld [vmem:[%s247 + $0x24] sm:$0xf]
      %v277 = vld [vmem:[%s247 + $0x28] sm:$0xf]
      %v278 = vld [vmem:[%s247 + $0x2c] sm:$0xf]
      %v279 = vld [vmem:[%s247 + $0x30] sm:$0xf]
      %v280 = vld [vmem:[%s247 + $0x34] sm:$0xf]
      %v281 = vld [vmem:[%s247 + $0x38] sm:$0xf]
      %v282 = vld [vmem:[%s247 + $0x3c] sm:$0xf]
      %v283 = vld [vmem:[%s247 + $0x40] sm:$0xf]
      %v284 = vld [vmem:[%s247 + $0x44] sm:$0xf]
      %v285 = vld [vmem:[%s247 + $0x48] sm:$0xf]
      %v286 = vld [vmem:[%s247 + $0x4c] sm:$0xf]
      %v287 = vld [vmem:[%s247 + $0x50] sm:$0xf]
      %v288 = vld [vmem:[%s247 + $0x54] sm:$0xf]
      %v289 = vld [vmem:[%s247 + $0x58] sm:$0xf]
      %v290 = vld [vmem:[%s247 + $0x5c] sm:$0xf]
      %v291 = vld [vmem:[%s247 + $0x60] sm:$0xf]
      %v292 = vld [vmem:[%s247 + $0x64] sm:$0xf]
      %v293 = vld [vmem:[%s247 + $0x68] sm:$0xf]
      %v294 = vld [vmem:[%s247 + $0x6c] sm:$0xf]
      %v295 = vld [vmem:[%s247 + $0x70] sm:$0xf]
      %v296 = vld [vmem:[%s247 + $0x74] sm:$0xf]
      %v297 = vld [vmem:[%s247 + $0x78] sm:$0xf]
      %v298 = vld [vmem:[%s247 + $0x7c] sm:$0xf]
      %v299 = vld [vmem:[%s247 + $0x80] sm:$0xf]
      %v300 = vld [vmem:[%s247 + $0x84] sm:$0xf]
      %v301 = vld [vmem:[%s247 + $0x88] sm:$0xf]
      %v302 = vld [vmem:[%s247 + $0x8c] sm:$0xf]
      %v303 = vld [vmem:[%s247 + $0x90] sm:$0xf]
      %v304 = vld [vmem:[%s247 + $0x94] sm:$0xf]
      %v305 = vld [vmem:[%s247 + $0x98] sm:$0xf]
      %v306 = vld [vmem:[%s247 + $0x9c] sm:$0xf]
      %v307 = vld [vmem:[%s247 + $0xa0] sm:$0xf]
      %v308 = vld [vmem:[%s247 + $0xa4] sm:$0xf]
      %v309 = vld [vmem:[%s247 + $0xa8] sm:$0xf]
      %v310 = vld [vmem:[%s247 + $0xac] sm:$0xf]
      %v311 = vld [vmem:[%s247 + $0xb0] sm:$0xf]
      %v312 = vld [vmem:[%s247 + $0xb4] sm:$0xf]
      %v313 = vld [vmem:[%s247 + $0xb8] sm:$0xf]
      %v314 = vld [vmem:[%s247 + $0xbc] sm:$0xf]
      %v317 = vunpack.c.l.b16 %v265
      %v318 = vunpack.c.h.b16 %v265
      %v319 = vunpack.c.l.b16 %v266
      %v320 = vpack.c.b16 %v317, %v317
      %v321 = vpack.c.b16 %v318, %v318
      %v322 = vpack.c.b16 %v319, %v319
      %v374 = vunpack.c.l.b16 %v267
      %v375 = vunpack.c.l.b16 %v268
      %v376 = vunpack.c.l.b16 %v269
      %v377 = vunpack.c.l.b16 %v270
      %v378 = vunpack.c.l.b16 %v271
      %v379 = vunpack.c.l.b16 %v272
      %v380 = vunpack.c.l.b16 %v273
      %v381 = vunpack.c.l.b16 %v274
      %v382 = vunpack.c.l.b16 %v275
      %v383 = vunpack.c.l.b16 %v276
      %v384 = vunpack.c.l.b16 %v277
      %v385 = vunpack.c.l.b16 %v278
      %v386 = vunpack.c.l.b16 %v279
      %v387 = vunpack.c.l.b16 %v280
      %v388 = vunpack.c.l.b16 %v281
      %v389 = vunpack.c.l.b16 %v282
      %v390 = vunpack.c.l.b16 %v283
      %v391 = vunpack.c.l.b16 %v284
      %v392 = vunpack.c.l.b16 %v285
      %v393 = vunpack.c.l.b16 %v286
      %v394 = vunpack.c.l.b16 %v287
      %v395 = vunpack.c.l.b16 %v288
      %v396 = vunpack.c.l.b16 %v289
      %v397 = vunpack.c.l.b16 %v290
      %v398 = vunpack.c.l.b16 %v291
      %v399 = vunpack.c.l.b16 %v292
      %v400 = vunpack.c.l.b16 %v293
      %v401 = vunpack.c.l.b16 %v294
      %v402 = vunpack.c.l.b16 %v295
      %v403 = vunpack.c.l.b16 %v296
      %v404 = vunpack.c.l.b16 %v297
      %v405 = vunpack.c.l.b16 %v298
      %v406 = vunpack.c.l.b16 %v299
      %v407 = vunpack.c.l.b16 %v300
      %v408 = vunpack.c.l.b16 %v301
      %v409 = vunpack.c.l.b16 %v302
      %v410 = vunpack.c.l.b16 %v303
      %v411 = vunpack.c.l.b16 %v304
      %v412 = vunpack.c.l.b16 %v305
      %v413 = vunpack.c.l.b16 %v306
      %v414 = vunpack.c.l.b16 %v307
      %v415 = vunpack.c.l.b16 %v308
      %v416 = vunpack.c.l.b16 %v309
      %v417 = vunpack.c.l.b16 %v310
      %v418 = vunpack.c.l.b16 %v311
      %v419 = vunpack.c.l.b16 %v312
      %v420 = vunpack.c.l.b16 %v313
      %v421 = vunpack.c.l.b16 %v314
      %v422 = vpack.c.b16 %v375, %v374
      %v423 = vpack.c.b16 %v377, %v376
      %v424 = vpack.c.b16 %v379, %v378
      %v425 = vpack.c.b16 %v381, %v380
      %v426 = vpack.c.b16 %v383, %v382
      %v427 = vpack.c.b16 %v385, %v384
      %v428 = vpack.c.b16 %v387, %v386
      %v429 = vpack.c.b16 %v389, %v388
      %v430 = vpack.c.b16 %v391, %v390
      %v431 = vpack.c.b16 %v393, %v392
      %v432 = vpack.c.b16 %v395, %v394
      %v433 = vpack.c.b16 %v397, %v396
      %v434 = vpack.c.b16 %v399, %v398
      %v435 = vpack.c.b16 %v401, %v400
      %v436 = vpack.c.b16 %v403, %v402
      %v437 = vpack.c.b16 %v405, %v404
      %v438 = vpack.c.b16 %v407, %v406
      %v439 = vpack.c.b16 %v409, %v408
      %v440 = vpack.c.b16 %v411, %v410
      %v441 = vpack.c.b16 %v413, %v412
      %v442 = vpack.c.b16 %v415, %v414
      %v443 = vpack.c.b16 %v417, %v416
      %v444 = vpack.c.b16 %v419, %v418
      %v445 = vpack.c.b16 %v421, %v420
      %470 = vmatpush.bf16.msra.mxu0 %v429
      %471 = vmatpush.bf16.msra.mxu0 %v428
      %472 = vmatpush.bf16.msra.mxu0 %v427
      %473 = vmatpush.bf16.msra.mxu0 %v426
      %474 = vmatpush.bf16.msra.mxu0 %v425
      %475 = vmatpush.bf16.msra.mxu0 %v424
      %476 = vmatpush.bf16.msra.mxu0 %v423
      %477 = vmatpush.bf16.msra.mxu0 %v422
      %478 = vmatmul.bf16.gmra.mxu0 %v320
      %v479 = vpop.f32.mrf.mxu0
      %v480 = vadd.f32 0.0, %v479
      %v481 = vpop.f32.mrf.mxu0
      %482 = vdwg.mxu0
      %483 = vmatpush.bf16.msra.mxu0 %v437
      %484 = vmatpush.bf16.msra.mxu0 %v436
      %485 = vmatpush.bf16.msra.mxu0 %v435
      %486 = vmatpush.bf16.msra.mxu0 %v434
      %487 = vmatpush.bf16.msra.mxu0 %v433
      %488 = vmatpush.bf16.msra.mxu0 %v432
      %489 = vmatpush.bf16.msra.mxu0 %v431
      %490 = vmatpush.bf16.msra.mxu0 %v430
      %491 = vmatmul.bf16.gmra.mxu0 %v321
      %v492 = vpop.f32.mrf.mxu0
      %v493 = vadd.f32 %v480, %v492
      %v494 = vpop.f32.mrf.mxu0
      %495 = vdwg.mxu0
      %496 = vmatpush.bf16.msra.mxu0 %v445
      %497 = vmatpush.bf16.msra.mxu0 %v444
      %498 = vmatpush.bf16.msra.mxu0 %v443
      %499 = vmatpush.bf16.msra.mxu0 %v442
      %500 = vmatpush.bf16.msra.mxu0 %v441
      %501 = vmatpush.bf16.msra.mxu0 %v440
      %502 = vmatpush.bf16.msra.mxu0 %v439
      %503 = vmatpush.bf16.msra.mxu0 %v438
      %504 = vmatmul.bf16.gmra.mxu0 %v322
      %v505 = vpop.f32.mrf.mxu0
      %v506 = vadd.f32 %v493, %v505
      %v507 = vpop.f32.mrf.mxu0
      %508 = vdwg.mxu0
      %v509 = vadd.f32 %v264, %v506
      %510 = vst [vmem:[#allocation2] sm:$0xff] %v509
      %p511 = scmp.eq.s32.totalorder %s21, 2
      // Predicated region
      $region37: #{fwd.6} parent=31 // pred_check
        %p512 = pneg %p511
      $region38: #{fwd.6} parent=31 // pred_check_branch
        %514 = sbr.rel (%p512) target = $region40
      $region39: #{fwd.6} parent=31 // pred_region
        %v515 = vld [vmem:[#allocation2] sm:$0xff]
        %v516 = vld [vmem:[%s251] sm:$0x1]
        %v518 = vperm.slane %v516, 0
        %v520 = vadd.f32 %v515, %v518
        %vm521 = vcmp.gt.f32.partialorder %v520, 0.0
        %v522 = vmul.f32 %v520, 0.01
        %v523 = vsel %vm521, %v520, %v522
        %v524 = vpack.c.bf16 %v523, %v523
        %525 = vst [vmem:[%s258] sm:$0xf] %v524
      $region40: #{fwd.6} parent=31 // pred_fallthru
        _
      %p526 = scmp.lt.s32.totalorder %s19, 0
      %s527 = scalar_select %p526, %s19, 0
      %p528 = scmp.lt.s32.totalorder %s20, 0
      %s529 = scalar_select %p528, %s20, 0
      %s530 = sadd.s32 %s529, %s527
      %s531 = smul.addr %s530, 4
      %s532 = scalar_lea.vmem %s3, %s531
      // Predicated region
      $region41: #{fwd.6} parent=31 // pred_check
        %p533 = pneg %p135
      $region42: #{fwd.6} parent=31 // pred_check_branch
        %535 = sbr.rel (%p533) target = $region44
      $region43: #{fwd.6} parent=31 // pred_region
        _
      $region44: #{fwd.6} parent=31 // pred_fallthru
        _
      // Predicated region
      $region45: #{fwd.6} parent=31 // pred_check
        %p536 = pneg %p135
      $region46: #{fwd.6} parent=31 // pred_check_branch
        %538 = sbr.rel (%p536) target = $region48
      $region47: #{fwd.6} parent=31 // pred_region
        %p539 = scmp.lt.s32.totalorder %s19, 0
        %s540 = scalar_select %p539, %s19, 0
        %p541 = scmp.lt.s32.totalorder %s20, 0
        %s542 = scalar_select %p541, %s20, 0
        %s543 = sadd.s32 %s542, %s540
        %s544 = smul.addr %s543, 4
        %s545 = scalar_lea.vmem %s3, %s544
      $region48: #{fwd.6} parent=31 // pred_fallthru
        _
    $region32: #{fwd.6} parent=5 // pred_fallthru
      _
    %p546 = scmp.le.s32.totalorder 2, %s9
    // Predicated region
    $region49: #{fwd.6} parent=5 // pred_check
      %p547 = pneg %p546
    $region50: #{fwd.6} parent=5 // pred_check_branch
      %549 = sbr.rel (%p547) target = $region52
    $region51: #{fwd.6} parent=5 // pred_region
      %s550 = ssub.s32 %s9, 2
    $region52: #{fwd.6} parent=5 // pred_fallthru
      _
  $region6: #{fwd.6} parent=0 // loop_footer
    %s13 = sadd.s32 1, %s9
  $region7: #{fwd.6} parent=0 // loop_footer_branch
    %8 = sbr.rel target = $region3
  $region8: #{fwd.6} parent=0 // loop_exit
    _

// kernel: fwd.7
$region0: #{fwd.7}
  #allocation0 [shape = 'u32[]', space=smem, size = 0x4, offset = 0x4, fixed_abs, tag = 'smem constant byte address 0x4 - core index']
  #allocation1 [shape = 'u32[72,128]{1,0:T(1,128)}', space=vmem, size = 0x9000, scoped, tag = 'internal scratch']
  %s0 = inlined_call_operand.vmem [shape: bf16[8,512], index: 0, kind: input, shape index: {}]
  %s1 = inlined_call_operand.vmem [shape: bf16[512,128], index: 1, kind: input, shape index: {}]
  %s2 = inlined_call_operand.vmem [shape: f32[1,128], index: 2, kind: input, shape index: {}]
  %s3 = inlined_call_operand.vmem [shape: bf16[128,128], index: 3, kind: input, shape index: {}]
  %s4 = inlined_call_operand.vmem [shape: f32[1,128], index: 4, kind: input, shape index: {}]
  %s5 = inlined_call_operand.vmem [shape: f32[8,128], index: 5, kind: output, shape index: {}]
  %s6 = sld [smem:[#allocation0]]
  $region30: #{fwd.7} parent=0
    _
  %s8 = ssub.s32 1, %s6
  %s9 = scalar_select 0, %s8, %s6
  // Predicated region
  $region2: #{fwd.7} parent=0 // pred_check
    _
  $region3: #{fwd.7} parent=0 // pred_check_branch
    %11 = sbr.rel (0) target = $region5
  $region4: #{fwd.7} parent=0 // pred_region
    _
  $region5: #{fwd.7} parent=0 // pred_fallthru
    _
  // Predicated region
  $region6: #{fwd.7} parent=0 // pred_check
    _
  $region7: #{fwd.7} parent=0 // pred_check_branch
    %13 = sbr.rel (0) target = $region9
  $region8: #{fwd.7} parent=0 // pred_region
    _
  $region9: #{fwd.7} parent=0 // pred_fallthru
    _
  // Predicated region
  $region10: #{fwd.7} parent=0 // pred_check
    _
  $region11: #{fwd.7} parent=0 // pred_check_branch
    %15 = sbr.rel (0) target = $region13
  $region12: #{fwd.7} parent=0 // pred_region
    _
  $region13: #{fwd.7} parent=0 // pred_fallthru
    _
  // Predicated region
  $region14: #{fwd.7} parent=0 // pred_check
    _
  $region15: #{fwd.7} parent=0 // pred_check_branch
    %17 = sbr.rel (0) target = $region17
  $region16: #{fwd.7} parent=0 // pred_region
    _
  $region17: #{fwd.7} parent=0 // pred_fallthru
    _
  // Predicated region
  $region18: #{fwd.7} parent=0 // pred_check
    _
  $region19: #{fwd.7} parent=0 // pred_check_branch
    %19 = sbr.rel (0) target = $region21
  $region20: #{fwd.7} parent=0 // pred_region
    _
  $region21: #{fwd.7} parent=0 // pred_fallthru
    _
  %v20 = vld [vmem:[%s0] sm:$0xff]
  %v21 = vld [vmem:[%s0 + $0x8] sm:$0xff]
  %v22 = vld [vmem:[%s1] sm:$0xf]
  %v23 = vld [vmem:[%s1 + $0x4] sm:$0xf]
  %v24 = vld [vmem:[%s1 + $0x8] sm:$0xf]
  %v25 = vld [vmem:[%s1 + $0xc] sm:$0xf]
  %v26 = vld [vmem:[%s1 + $0x10] sm:$0xf]
  %v27 = vld [vmem:[%s1 + $0x14] sm:$0xf]
  %v28 = vld [vmem:[%s1 + $0x18] sm:$0xf]
  %v29 = vld [vmem:[%s1 + $0x1c] sm:$0xf]
  %v30 = vld [vmem:[%s1 + $0x20] sm:$0xf]
  %v31 = vld [vmem:[%s1 + $0x24] sm:$0xf]
  %v32 = vld [vmem:[%s1 + $0x28] sm:$0xf]
  %v33 = vld [vmem:[%s1 + $0x2c] sm:$0xf]
  %v34 = vld [vmem:[%s1 + $0x30] sm:$0xf]
  %v35 = vld [vmem:[%s1 + $0x34] sm:$0xf]
  %v36 = vld [vmem:[%s1 + $0x38] sm:$0xf]
  %v37 = vld [vmem:[%s1 + $0x3c] sm:$0xf]
  %v38 = vld [vmem:[%s1 + $0x40] sm:$0xf]
  %v39 = vld [vmem:[%s1 + $0x44] sm:$0xf]
  %v40 = vld [vmem:[%s1 + $0x48] sm:$0xf]
  %v41 = vld [vmem:[%s1 + $0x4c] sm:$0xf]
  %v42 = vld [vmem:[%s1 + $0x50] sm:$0xf]
  %v43 = vld [vmem:[%s1 + $0x54] sm:$0xf]
  %v44 = vld [vmem:[%s1 + $0x58] sm:$0xf]
  %v45 = vld [vmem:[%s1 + $0x5c] sm:$0xf]
  %v46 = vld [vmem:[%s1 + $0x60] sm:$0xf]
  %v47 = vld [vmem:[%s1 + $0x64] sm:$0xf]
  %v48 = vld [vmem:[%s1 + $0x68] sm:$0xf]
  %v49 = vld [vmem:[%s1 + $0x6c] sm:$0xf]
  %v50 = vld [vmem:[%s1 + $0x70] sm:$0xf]
  %v51 = vld [vmem:[%s1 + $0x74] sm:$0xf]
  %v52 = vld [vmem:[%s1 + $0x78] sm:$0xf]
  %v53 = vld [vmem:[%s1 + $0x7c] sm:$0xf]
  %v54 = vld [vmem:[%s1 + $0x80] sm:$0xf]
  %v55 = vld [vmem:[%s1 + $0x84] sm:$0xf]
  %v56 = vld [vmem:[%s1 + $0x88] sm:$0xf]
  %v57 = vld [vmem:[%s1 + $0x8c] sm:$0xf]
  %v58 = vld [vmem:[%s1 + $0x90] sm:$0xf]
  %v59 = vld [vmem:[%s1 + $0x94] sm:$0xf]
  %v60 = vld [vmem:[%s1 + $0x98] sm:$0xf]
  %v61 = vld [vmem:[%s1 + $0x9c] sm:$0xf]
  %v62 = vld [vmem:[%s1 + $0xa0] sm:$0xf]
  %v63 = vld [vmem:[%s1 + $0xa4] sm:$0xf]
  %v64 = vld [vmem:[%s1 + $0xa8] sm:$0xf]
  %v65 = vld [vmem:[%s1 + $0xac] sm:$0xf]
  %v66 = vld [vmem:[%s1 + $0xb0] sm:$0xf]
  %v67 = vld [vmem:[%s1 + $0xb4] sm:$0xf]
  %v68 = vld [vmem:[%s1 + $0xb8] sm:$0xf]
  %v69 = vld [vmem:[%s1 + $0xbc] sm:$0xf]
  %v70 = vld [vmem:[%s1 + $0xc0] sm:$0xf]
  %v71 = vld [vmem:[%s1 + $0xc4] sm:$0xf]
  %v72 = vld [vmem:[%s1 + $0xc8] sm:$0xf]
  %v73 = vld [vmem:[%s1 + $0xcc] sm:$0xf]
  %v74 = vld [vmem:[%s1 + $0xd0] sm:$0xf]
  %v75 = vld [vmem:[%s1 + $0xd4] sm:$0xf]
  %v76 = vld [vmem:[%s1 + $0xd8] sm:$0xf]
  %v77 = vld [vmem:[%s1 + $0xdc] sm:$0xf]
  %v78 = vld [vmem:[%s1 + $0xe0] sm:$0xf]
  %v79 = vld [vmem:[%s1 + $0xe4] sm:$0xf]
  %v80 = vld [vmem:[%s1 + $0xe8] sm:$0xf]
  %v81 = vld [vmem:[%s1 + $0xec] sm:$0xf]
  %v82 = vld [vmem:[%s1 + $0xf0] sm:$0xf]
  %v83 = vld [vmem:[%s1 + $0xf4] sm:$0xf]
  %v84 = vld [vmem:[%s1 + $0xf8] sm:$0xf]
  %v85 = vld [vmem:[%s1 + $0xfc] sm:$0xf]
  %v86 = vld [vmem:[%s2] sm:$0x1]
  %v88 = vperm.slane %v86, 0
  %v92 = vunpack.c.l.b16 %v20
  %v93 = vunpack.c.h.b16 %v20
  %v94 = vunpack.c.l.b16 %v21
  %v95 = vunpack.c.h.b16 %v21
  %v96 = vpack.c.b16 %v92, %v92
  %v97 = vpack.c.b16 %v93, %v93
  %v98 = vpack.c.b16 %v94, %v94
  %v99 = vpack.c.b16 %v95, %v95
  %v168 = vunpack.c.l.b16 %v22
  %v169 = vunpack.c.l.b16 %v23
  %v170 = vunpack.c.l.b16 %v24
  %v171 = vunpack.c.l.b16 %v25
  %v172 = vunpack.c.l.b16 %v26
  %v173 = vunpack.c.l.b16 %v27
  %v174 = vunpack.c.l.b16 %v28
  %v175 = vunpack.c.l.b16 %v29
  %v176 = vunpack.c.l.b16 %v30
  %v177 = vunpack.c.l.b16 %v31
  %v178 = vunpack.c.l.b16 %v32
  %v179 = vunpack.c.l.b16 %v33
  %v180 = vunpack.c.l.b16 %v34
  %v181 = vunpack.c.l.b16 %v35
  %v182 = vunpack.c.l.b16 %v36
  %v183 = vunpack.c.l.b16 %v37
  %v184 = vunpack.c.l.b16 %v38
  %v185 = vunpack.c.l.b16 %v39
  %v186 = vunpack.c.l.b16 %v40
  %v187 = vunpack.c.l.b16 %v41
  %v188 = vunpack.c.l.b16 %v42
  %v189 = vunpack.c.l.b16 %v43
  %v190 = vunpack.c.l.b16 %v44
  %v191 = vunpack.c.l.b16 %v45
  %v192 = vunpack.c.l.b16 %v46
  %v193 = vunpack.c.l.b16 %v47
  %v194 = vunpack.c.l.b16 %v48
  %v195 = vunpack.c.l.b16 %v49
  %v196 = vunpack.c.l.b16 %v50
  %v197 = vunpack.c.l.b16 %v51
  %v198 = vunpack.c.l.b16 %v52
  %v199 = vunpack.c.l.b16 %v53
  %v200 = vunpack.c.l.b16 %v54
  %v201 = vunpack.c.l.b16 %v55
  %v202 = vunpack.c.l.b16 %v56
  %v203 = vunpack.c.l.b16 %v57
  %v204 = vunpack.c.l.b16 %v58
  %v205 = vunpack.c.l.b16 %v59
  %v206 = vunpack.c.l.b16 %v60
  %v207 = vunpack.c.l.b16 %v61
  %v208 = vunpack.c.l.b16 %v62
  %v209 = vunpack.c.l.b16 %v63
  %v210 = vunpack.c.l.b16 %v64
  %v211 = vunpack.c.l.b16 %v65
  %v212 = vunpack.c.l.b16 %v66
  %v213 = vunpack.c.l.b16 %v67
  %v214 = vunpack.c.l.b16 %v68
  %v215 = vunpack.c.l.b16 %v69
  %v216 = vunpack.c.l.b16 %v70
  %v217 = vunpack.c.l.b16 %v71
  %v218 = vunpack.c.l.b16 %v72
  %v219 = vunpack.c.l.b16 %v73
  %v220 = vunpack.c.l.b16 %v74
  %v221 = vunpack.c.l.b16 %v75
  %v222 = vunpack.c.l.b16 %v76
  %v223 = vunpack.c.l.b16 %v77
  %v224 = vunpack.c.l.b16 %v78
  %v225 = vunpack.c.l.b16 %v79
  %v226 = vunpack.c.l.b16 %v80
  %v227 = vunpack.c.l.b16 %v81
  %v228 = vunpack.c.l.b16 %v82
  %v229 = vunpack.c.l.b16 %v83
  %v230 = vunpack.c.l.b16 %v84
  %v231 = vunpack.c.l.b16 %v85
  %v232 = vpack.c.b16 %v169, %v168
  %v233 = vpack.c.b16 %v171, %v170
  %v234 = vpack.c.b16 %v173, %v172
  %v235 = vpack.c.b16 %v175, %v174
  %v236 = vpack.c.b16 %v177, %v176
  %v237 = vpack.c.b16 %v179, %v178
  %v238 = vpack.c.b16 %v181, %v180
  %v239 = vpack.c.b16 %v183, %v182
  %v240 = vpack.c.b16 %v185, %v184
  %v241 = vpack.c.b16 %v187, %v186
  %v242 = vpack.c.b16 %v189, %v188
  %v243 = vpack.c.b16 %v191, %v190
  %v244 = vpack.c.b16 %v193, %v192
  %v245 = vpack.c.b16 %v195, %v194
  %v246 = vpack.c.b16 %v197, %v196
  %v247 = vpack.c.b16 %v199, %v198
  %v248 = vpack.c.b16 %v201, %v200
  %v249 = vpack.c.b16 %v203, %v202
  %v250 = vpack.c.b16 %v205, %v204
  %v251 = vpack.c.b16 %v207, %v206
  %v252 = vpack.c.b16 %v209, %v208
  %v253 = vpack.c.b16 %v211, %v210
  %v254 = vpack.c.b16 %v213, %v212
  %v255 = vpack.c.b16 %v215, %v214
  %v256 = vpack.c.b16 %v217, %v216
  %v257 = vpack.c.b16 %v219, %v218
  %v258 = vpack.c.b16 %v221, %v220
  %v259 = vpack.c.b16 %v223, %v222
  %v260 = vpack.c.b16 %v225, %v224
  %v261 = vpack.c.b16 %v227, %v226
  %v262 = vpack.c.b16 %v229, %v228
  %v263 = vpack.c.b16 %v231, %v230
  %296 = vmatpush.bf16.msra.mxu0 %v239
  %297 = vmatpush.bf16.msra.mxu0 %v238
  %298 = vmatpush.bf16.msra.mxu0 %v237
  %299 = vmatpush.bf16.msra.mxu0 %v236
  %300 = vmatpush.bf16.msra.mxu0 %v235
  %301 = vmatpush.bf16.msra.mxu0 %v234
  %302 = vmatpush.bf16.msra.mxu0 %v233
  %303 = vmatpush.bf16.msra.mxu0 %v232
  %304 = vmatmul.bf16.gmra.mxu0 %v96
  %v305 = vpop.f32.mrf.mxu0
  %v306 = vadd.f32 %v88, %v305
  %v307 = vpop.f32.mrf.mxu0
  %308 = vdwg.mxu0
  %309 = vmatpush.bf16.msra.mxu0 %v247
  %310 = vmatpush.bf16.msra.mxu0 %v246
  %311 = vmatpush.bf16.msra.mxu0 %v245
  %312 = vmatpush.bf16.msra.mxu0 %v244
  %313 = vmatpush.bf16.msra.mxu0 %v243
  %314 = vmatpush.bf16.msra.mxu0 %v242
  %315 = vmatpush.bf16.msra.mxu0 %v241
  %316 = vmatpush.bf16.msra.mxu0 %v240
  %317 = vmatmul.bf16.gmra.mxu0 %v97
  %v318 = vpop.f32.mrf.mxu0
  %v319 = vadd.f32 %v306, %v318
  %v320 = vpop.f32.mrf.mxu0
  %321 = vdwg.mxu0
  %322 = vmatpush.bf16.msra.mxu0 %v255
  %323 = vmatpush.bf16.msra.mxu0 %v254
  %324 = vmatpush.bf16.msra.mxu0 %v253
  %325 = vmatpush.bf16.msra.mxu0 %v252
  %326 = vmatpush.bf16.msra.mxu0 %v251
  %327 = vmatpush.bf16.msra.mxu0 %v250
  %328 = vmatpush.bf16.msra.mxu0 %v249
  %329 = vmatpush.bf16.msra.mxu0 %v248
  %330 = vmatmul.bf16.gmra.mxu0 %v98
  %v331 = vpop.f32.mrf.mxu0
  %v332 = vadd.f32 %v319, %v331
  %v333 = vpop.f32.mrf.mxu0
  %334 = vdwg.mxu0
  %335 = vmatpush.bf16.msra.mxu0 %v263
  %336 = vmatpush.bf16.msra.mxu0 %v262
  %337 = vmatpush.bf16.msra.mxu0 %v261
  %338 = vmatpush.bf16.msra.mxu0 %v260
  %339 = vmatpush.bf16.msra.mxu0 %v259
  %340 = vmatpush.bf16.msra.mxu0 %v258
  %341 = vmatpush.bf16.msra.mxu0 %v257
  %342 = vmatpush.bf16.msra.mxu0 %v256
  %343 = vmatmul.bf16.gmra.mxu0 %v99
  %v344 = vpop.f32.mrf.mxu0
  %v345 = vadd.f32 %v332, %v344
  %v346 = vpop.f32.mrf.mxu0
  %347 = vdwg.mxu0
  %vm348 = vcmp.gt.f32.partialorder %v345, 0.0
  %v349 = vmul.f32 %v345, 0.01
  %v350 = vsel %vm348, %v345, %v349
  %v351 = vpack.c.bf16 %v350, %v350
  %v352 = vld [vmem:[%s3] sm:$0xf]
  %v353 = vld [vmem:[%s3 + $0x4] sm:$0xf]
  %v354 = vld [vmem:[%s3 + $0x8] sm:$0xf]
  %v355 = vld [vmem:[%s3 + $0xc] sm:$0xf]
  %v356 = vld [vmem:[%s3 + $0x10] sm:$0xf]
  %v357 = vld [vmem:[%s3 + $0x14] sm:$0xf]
  %v358 = vld [vmem:[%s3 + $0x18] sm:$0xf]
  %v359 = vld [vmem:[%s3 + $0x1c] sm:$0xf]
  %v360 = vld [vmem:[%s3 + $0x20] sm:$0xf]
  %v361 = vld [vmem:[%s3 + $0x24] sm:$0xf]
  %v362 = vld [vmem:[%s3 + $0x28] sm:$0xf]
  %v363 = vld [vmem:[%s3 + $0x2c] sm:$0xf]
  %v364 = vld [vmem:[%s3 + $0x30] sm:$0xf]
  %v365 = vld [vmem:[%s3 + $0x34] sm:$0xf]
  %v366 = vld [vmem:[%s3 + $0x38] sm:$0xf]
  %v367 = vld [vmem:[%s3 + $0x3c] sm:$0xf]
  %v368 = vld [vmem:[%s4] sm:$0x1]
  %v370 = vperm.slane %v368, 0
  %v388 = vunpack.c.l.b16 %v352
  %v389 = vunpack.c.l.b16 %v353
  %v390 = vunpack.c.l.b16 %v354
  %v391 = vunpack.c.l.b16 %v355
  %v392 = vunpack.c.l.b16 %v356
  %v393 = vunpack.c.l.b16 %v357
  %v394 = vunpack.c.l.b16 %v358
  %v395 = vunpack.c.l.b16 %v359
  %v396 = vunpack.c.l.b16 %v360
  %v397 = vunpack.c.l.b16 %v361
  %v398 = vunpack.c.l.b16 %v362
  %v399 = vunpack.c.l.b16 %v363
  %v400 = vunpack.c.l.b16 %v364
  %v401 = vunpack.c.l.b16 %v365
  %v402 = vunpack.c.l.b16 %v366
  %v403 = vunpack.c.l.b16 %v367
  %v404 = vpack.c.b16 %v389, %v388
  %v405 = vpack.c.b16 %v391, %v390
  %v406 = vpack.c.b16 %v393, %v392
  %v407 = vpack.c.b16 %v395, %v394
  %v408 = vpack.c.b16 %v397, %v396
  %v409 = vpack.c.b16 %v399, %v398
  %v410 = vpack.c.b16 %v401, %v400
  %v411 = vpack.c.b16 %v403, %v402
  %420 = vmatpush.bf16.msra.mxu0 %v411
  %421 = vmatpush.bf16.msra.mxu0 %v410
  %422 = vmatpush.bf16.msra.mxu0 %v409
  %423 = vmatpush.bf16.msra.mxu0 %v408
  %424 = vmatpush.bf16.msra.mxu0 %v407
  %425 = vmatpush.bf16.msra.mxu0 %v406
  %426 = vmatpush.bf16.msra.mxu0 %v405
  %427 = vmatpush.bf16.msra.mxu0 %v404
  %428 = vmatmul.bf16.gmra.mxu0 %v351
  %v429 = vpop.f32.mrf.mxu0
  %v430 = vadd.f32 %v370, %v429
  %v431 = vpop.f32.mrf.mxu0
  %432 = vdwg.mxu0
  %vm433 = vcmp.gt.f32.partialorder %v430, 0.0
  %v434 = vmul.f32 %v430, 0.01
  %v435 = vsel %vm433, %v430, %v434
  %436 = vst [vmem:[%s5] sm:$0xff] %v435
  // Predicated region
  $region22: #{fwd.7} parent=0 // pred_check
    _
  $region23: #{fwd.7} parent=0 // pred_check_branch
    %438 = sbr.rel (0) target = $region25
  $region24: #{fwd.7} parent=0 // pred_region
    _
  $region25: #{fwd.7} parent=0 // pred_fallthru
    _
  // Predicated region
  $region26: #{fwd.7} parent=0 // pred_check
    _
  $region27: #{fwd.7} parent=0 // pred_check_branch
    %440 = sbr.rel (0) target = $region29
  $region28: #{fwd.7} parent=0 // pred_region
    _
  $region29: #{fwd.7} parent=0 // pred_fallthru
    _

</llo_original>
